<compile_context>
chip_gen: v5e
topology: v5e:2x2
jax: 0.10.0
libtpu: 0.0.40
codegen_flags: <defaults>
</compile_context>

<pallas_src>
import numpy as np
import jax
import jax.numpy as jnp
from jax.experimental import pallas as pl
from jax.experimental.pallas import tpu as pltpu

EMBEDDING_DIM = 64
HIDDEN_SIZE = 64
NUM_LAYERS = 2
IMG_FEAT_DIM = 2048


# ----------------------------------------------------------------------------
# Fused forward kernel: fc -> wavefront(LSTM0, LSTM1) -> classifier
# ----------------------------------------------------------------------------
def _net_kernel(mask_ref, img_ref, emb_ref,
                fcw_ref, fcb_ref,
                win0_ref, bcomb_ref, wrec_ref,
                clsw_ref, clsb_ref,
                pred_ref, hn_ref, cn_ref,
                x_sc, g_sc, y_sc):
    bf16 = jnp.bfloat16
    f32 = jnp.float32

    B = img_ref.shape[0]
    H2 = wrec_ref.shape[0]            # 2 * hidden  (both layers packed side by side)
    H = H2 // 2
    TB = y_sc.shape[0]                # T * B
    T = TB // B
    S3 = 3 * H2                       # sigmoid-gate width [i|f|o]

    # ---- fc: image features -> hidden (timestep-0 input of layer 0) ---------
    img_h = (jnp.dot(img_ref[...].astype(bf16), fcw_ref[...],
                     preferred_element_type=f32) + fcb_ref[...])          # (B, H)

    # ---- unified layer-0 input slab  x = [fc(img); emb] ----------------------
    x_sc[0:B, :] = img_h
    x_sc[B:TB, :] = emb_ref[...]

    # ---- hoisted layer-0 input projection + both layers' biases (ONE matmul) -
    # win0 columns use the combined gate layout [i0|i1, f0|f1, o0|o1, g0|g1];
    # its layer-1 columns are zero, so layer-1 lanes carry only the bias here.
    g_sc[...] = (jnp.dot(x_sc[...].astype(bf16), win0_ref[...],
                         preferred_element_type=f32) + bcomb_ref[...])    # (T*B, 8H)

    # ---- wavefront recurrence: step s -> layer0 @ t=s  and  layer1 @ t=s-1 ---
    h = jnp.zeros((B, H2), f32)       # [h0 | h1]
    c = jnp.zeros((B, H2), f32)       # [c0 | c1]
    for s in range(T + 1):            # small static trip count -> fully unrolled
        t0 = min(s, T - 1)            # layer-0 gate block (s == T is masked out)
        gates = g_sc[t0 * B:(t0 + 1) * B, :] + jnp.dot(
            h.astype(bf16), wrec_ref[...], preferred_element_type=f32)    # (B, 8H)
        # 128-lane-aligned activations: sigmoid over [i|f|o], tanh over [g]
        sig = jax.nn.sigmoid(gates[:, 0:S3])
        g_t = jnp.tanh(gates[:, S3:])
        i_b = sig[:, 0:H2]
        f_b = sig[:, H2:2 * H2]
        o_b = sig[:, 2 * H2:S3]
        c_new = f_b * c + i_b * g_t                   # whole-vreg (B, 2H) math
        h_new = o_b * jnp.tanh(c_new)
        m = mask_ref[s * B:(s + 1) * B, :] > 0.5      # [mask_l0(t=s) | mask_l1(t=s-1)]
        h = jnp.where(m, h_new, h)                    # exact freeze past seq end
        c = jnp.where(m, c_new, c)
        if s >= 1:                                    # h[:, H:] now holds y1[t=s-1]
            y_sc[(s - 1) * B:s * B, :] = h

    # ---- classifier over the full [y0|y1] slab; clsw rows 0:H are zero so only
    # the layer-1 half contributes.  Lane-dense (V) output store. --------------
    pred_ref[...] = (jnp.dot(y_sc[...].astype(bf16), clsw_ref[...],
                             preferred_element_type=f32) + clsb_ref[...])

    # ---- final states, written exactly once ----------------------------------
    hn_ref[0, :, :] = h[:, 0:H]
    hn_ref[1, :, :] = h[:, H:H2]
    cn_ref[0, :, :] = c[:, 0:H]
    cn_ref[1, :, :] = c[:, H:H2]


def _build_pallas_net(T, B, V):
    H = HIDDEN_SIZE
    E = EMBEDDING_DIM
    H2 = 2 * H

    def spec2(shape):
        return pl.BlockSpec(shape, lambda i: (0, 0))

    def spec3(shape):
        return pl.BlockSpec(shape, lambda i: (0, 0, 0))

    return pl.pallas_call(
        _net_kernel,
        out_shape=(jax.ShapeDtypeStruct((T * B, V), jnp.float32),
                   jax.ShapeDtypeStruct((NUM_LAYERS, B, H), jnp.float32),
                   jax.ShapeDtypeStruct((NUM_LAYERS, B, H), jnp.float32)),
        grid=(1,),
        in_specs=[spec2(((T + 1) * B, H2)),     # wavefront validity mask (f32)
                  spec2((B, IMG_FEAT_DIM)),     # image features (f32)
                  spec2(((T - 1) * B, E)),      # caption embeddings, flattened (f32)
                  spec2((IMG_FEAT_DIM, H)),     # fc weight, transposed (bf16)
                  spec2((1, H)),                # fc bias (f32)
                  spec2((E, 8 * H)),            # layer-0 input weight, combined cols (bf16)
                  spec2((1, 8 * H)),            # combined bias for both layers (f32)
                  spec2((H2, 8 * H)),           # wavefront recurrent block weight (bf16)
                  spec2((H2, V)),               # classifier weight, row-padded (bf16)
                  spec2((1, V))],               # classifier bias (f32)
        out_specs=(spec2((T * B, V)),
                   spec3((NUM_LAYERS, B, H)),
                   spec3((NUM_LAYERS, B, H))),
        scratch_shapes=[pltpu.VMEM((T * B, E), jnp.float32),      # x slab [fc(img); emb]
                        pltpu.VMEM((T * B, 8 * H), jnp.float32),  # hoisted gate proj + biases
                        pltpu.VMEM((T * B, H2), jnp.float32)],    # [y0 | y1] output slab
        compiler_params=pltpu.CompilerParams(
            dimension_semantics=("arbitrary",)),
    )


# ----------------------------------------------------------------------------
# Parameters (deterministic synthetic init — shapes from Net.__init__)
# ----------------------------------------------------------------------------
def init_params(key, vocab_size):
    ks = jax.random.split(key, 11)
    s = 0.1
    return {
        "embedding": jax.random.normal(ks[0], (vocab_size, EMBEDDING_DIM), jnp.float32) * s,
        "fc_w_t":    jax.random.normal(ks[1], (IMG_FEAT_DIM, HIDDEN_SIZE), jnp.float32)
                     * (1.0 / np.sqrt(IMG_FEAT_DIM)),
        "fc_b":      jax.random.normal(ks[2], (HIDDEN_SIZE,), jnp.float32) * s,
        # LSTM layer 0 (input = embedding_dim); bias = b_ih + b_hh combined, [i,f,g,o]
        "w_ih_t_0":  jax.random.normal(ks[3], (EMBEDDING_DIM, 4 * HIDDEN_SIZE), jnp.float32) * s,
        "w_hh_t_0":  jax.random.normal(ks[4], (HIDDEN_SIZE, 4 * HIDDEN_SIZE), jnp.float32) * s,
        "b_0":       jax.random.normal(ks[5], (4 * HIDDEN_SIZE,), jnp.float32) * s,
        # LSTM layer 1 (input = hidden_size)
        "w_ih_t_1":  jax.random.normal(ks[6], (HIDDEN_SIZE, 4 * HIDDEN_SIZE), jnp.float32) * s,
        "w_hh_t_1":  jax.random.normal(ks[7], (HIDDEN_SIZE, 4 * HIDDEN_SIZE), jnp.float32) * s,
        "b_1":       jax.random.normal(ks[8], (4 * HIDDEN_SIZE,), jnp.float32) * s,
        "cls_w_t":   jax.random.normal(ks[9], (HIDDEN_SIZE, vocab_size), jnp.float32) * s,
        "cls_b":     jax.random.normal(ks[10], (vocab_size,), jnp.float32) * s,
    }


def prepare_kernel_params(params):
    """One-time re-layout of the torch-style parameters into kernel layout:
    bf16 weights, combined/permuted gate columns [i0|i1, f0|f1, o0|o1, g0|g1]."""
    H = HIDDEN_SIZE
    f32, bf16 = jnp.float32, jnp.bfloat16

    def comb_cols(w4h, layer):
        # w4h: (in_dim, 4H) with torch gate order [i, f, g, o] along columns.
        i = w4h[:, 0 * H:1 * H]
        f = w4h[:, 1 * H:2 * H]
        g = w4h[:, 2 * H:3 * H]
        o = w4h[:, 3 * H:4 * H]
        z = jnp.zeros_like(i)
        pieces = []
        for gate in (i, f, o, g):           # sigmoid gates first, tanh gate last
            pieces += ([gate, z] if layer == 0 else [z, gate])
        return jnp.concatenate(pieces, axis=1)          # (in_dim, 8H)

    w_in0 = comb_cols(params["w_ih_t_0"], 0)                           # (E, 8H)
    w_rec = jnp.concatenate(
        [comb_cols(params["w_hh_t_0"], 0) + comb_cols(params["w_ih_t_1"], 1),
         comb_cols(params["w_hh_t_1"], 1)], axis=0)                    # (2H, 8H)
    b_comb = (comb_cols(params["b_0"][None, :], 0)
              + comb_cols(params["b_1"][None, :], 1))                  # (1, 8H)
    V = params["cls_w_t"].shape[1]
    cls_w_pad = jnp.concatenate(
        [jnp.zeros((H, V), f32), params["cls_w_t"]], axis=0)           # (2H, V)

    return {
        "embedding": params["embedding"].astype(f32),
        "fc_w_t":    params["fc_w_t"].astype(bf16),
        "fc_b":      params["fc_b"].reshape(1, H).astype(f32),
        "w_in0":     w_in0.astype(bf16),
        "w_rec":     w_rec.astype(bf16),
        "b_comb":    b_comb.astype(f32),
        "cls_w_pad": cls_w_pad.astype(bf16),
        "cls_b":     params["cls_b"].reshape(1, V).astype(f32),
    }


# ----------------------------------------------------------------------------
# Net.forward equivalent
# ----------------------------------------------------------------------------
@jax.jit
def _net_forward_core(kp, img_feats, captions, lengths_arr):
    """Returns full (T*B, V) pred slab + (h_n, c_n). Only shapes are static —
    different lengths VALUES never recompile the Pallas kernel."""
    B = img_feats.shape[0]
    T = captions.shape[0] + 1
    H = HIDDEN_SIZE
    E = EMBEDDING_DIM
    V = kp["cls_b"].shape[1]

    # embedding lookup (gather) — plain-JAX glue
    emb = jnp.take(kp["embedding"], captions, axis=0).reshape((T - 1) * B, E)

    # wavefront validity mask: row block s = [mask_l0(t=s) | mask_l1(t=s-1)]
    s_col = jnp.arange(T + 1, dtype=jnp.int32)[:, None]              # (T+1, 1)
    len_row = lengths_arr[None, :].astype(jnp.int32)                 # (1, B)
    m0 = s_col < len_row                                             # layer0 @ t=s
    m1 = (s_col >= 1) & ((s_col - 1) < len_row)                      # layer1 @ t=s-1
    mask_wf = jnp.concatenate(
        [jnp.broadcast_to(m0[:, :, None], (T + 1, B, H)),
         jnp.broadcast_to(m1[:, :, None], (T + 1, B, H))],
        axis=-1).reshape((T + 1) * B, 2 * H).astype(jnp.float32)

    return _build_pallas_net(T, B, V)(
        mask_wf, img_feats, emb,
        kp["fc_w_t"], kp["fc_b"],
        kp["w_in0"], kp["b_comb"], kp["w_rec"],
        kp["cls_w_pad"], kp["cls_b"])


def net_forward(kparams, img_feats, captions, lengths):
    """
    img_feats: (B, 2048) f32
    captions:  (T_cap, B) int32 (time-major, like PyTorch batch_first=False)
    lengths:   sequence of ints, sorted descending, each <= T_cap + 1
    returns (pred, (h_n, c_n)) with
      pred: (sum(lengths), vocab)   h_n, c_n: (num_layers, B, hidden)
    """
    assert EMBEDDING_DIM == HIDDEN_SIZE  # implicit in the torch module (concat fc output with embeddings)
    lengths = tuple(int(l) for l in lengths)
    assert all(lengths[i] >= lengths[i + 1] for i in range(len(lengths) - 1)), \
        "pack_padded_sequence requires lengths sorted in decreasing order"

    B = img_feats.shape[0]
    T = captions.shape[0] + 1
    lengths_arr = jnp.asarray(lengths, jnp.int32)

    pred_full, h_n, c_n = _net_forward_core(kparams, img_feats, captions, lengths_arr)

    # pack_padded_sequence data ordering: for each t, the first batch_sizes[t] rows
    flat_idx = []
    for t in range(T):
        bs = sum(1 for L in lengths if L > t)
        flat_idx += [t * B + b for b in range(bs)]
    pred = pred_full[np.asarray(flat_idx, np.int32)]
    return pred, (h_n, c_n)


# ----------------------------------------------------------------------------
# Pure-JAX reference (correctness check)
# ----------------------------------------------------------------------------
def _lstm_layer_ref(x, lengths, w_ih_t, w_hh_t, b):
    T, B, _ = x.shape
    H = w_hh_t.shape[0]
    h = jnp.zeros((B, H), jnp.float32)
    c = jnp.zeros((B, H), jnp.float32)
    ys = []
    for t in range(T):
        gates = x[t] @ w_ih_t + h @ w_hh_t + b
        i = jax.nn.sigmoid(gates[:, :H])
        f = jax.nn.sigmoid(gates[:, H:2 * H])
        g = jnp.tanh(gates[:, 2 * H:3 * H])
        o = jax.nn.sigmoid(gates[:, 3 * H:])
        c_new = f * c + i * g
        h_new = o * jnp.tanh(c_new)
        m = (lengths > t)[:, None]
        h = jnp.where(m, h_new, h)
        c = jnp.where(m, c_new, c)
        ys.append(h)
    return jnp.stack(ys), h, c


def net_forward_ref(params, img_feats, captions, lengths):
    emb = jnp.take(params["embedding"], captions, axis=0)
    img = img_feats @ params["fc_w_t"] + params["fc_b"]
    x = jnp.concatenate([img[None], emb], axis=0)
    lengths_arr = jnp.asarray(lengths, jnp.int32)
    y1, h1, c1 = _lstm_layer_ref(x, lengths_arr,
                                 params["w_ih_t_0"], params["w_hh_t_0"], params["b_0"])
    y2, h2, c2 = _lstm_layer_ref(y1, lengths_arr,
                                 params["w_ih_t_1"], params["w_hh_t_1"], params["b_1"])
    T = x.shape[0]
    t_idx, b_idx = [], []
    for t in range(T):
        bs = sum(1 for L in lengths if L > t)
        t_idx += [t] * bs
        b_idx += list(range(bs))
    packed = y2[jnp.asarray(t_idx), jnp.asarray(b_idx)]
    pred = packed @ params["cls_w_t"] + params["cls_b"]
    return pred, (jnp.stack([h1, h2]), jnp.stack([c1, c2]))


if __name__ == "__main__":
    VOCAB = 128          # len(word2ix) in the original module (synthetic here)
    B = 4
    T_CAP = 7            # caption timesteps; total sequence length = T_CAP + 1
    lengths = (8, 7, 5, 3)   # sorted descending, as pack_padded_sequence requires

    key = jax.random.PRNGKey(0)
    k_par, k_img, k_cap = jax.random.split(key, 3)
    params = init_params(k_par, VOCAB)
    kparams = prepare_kernel_params(params)

    img_feats = jax.random.normal(k_img, (B, IMG_FEAT_DIM), jnp.float32)
    captions = jax.random.randint(k_cap, (T_CAP, B), 0, VOCAB, jnp.int32)

    pred, (h_n, c_n) = net_forward(kparams, img_feats, captions, lengths)
    jax.block_until_ready((pred, h_n, c_n))

    # sanity-check against pure-JAX f32 reference (kernel uses bf16 weights)
    pred_r, (h_r, c_r) = net_forward_ref(params, img_feats, captions, lengths)
    np.testing.assert_allclose(np.asarray(pred), np.asarray(pred_r), rtol=2e-2, atol=2e-2)
    np.testing.assert_allclose(np.asarray(h_n), np.asarray(h_r), rtol=2e-2, atol=2e-2)
    np.testing.assert_allclose(np.asarray(c_n), np.asarray(c_r), rtol=2e-2, atol=2e-2)

    assert pred.shape == (sum(lengths), VOCAB)
    assert h_n.shape == (NUM_LAYERS, B, HIDDEN_SIZE)
    assert c_n.shape == (NUM_LAYERS, B, HIDDEN_SIZE)
    print("KERNEL_OK")
</pallas_src>

<mosaic_0001>
module attributes {stable_mosaic.version = 11 : i64} {
  func.func @_net_kernel(%arg0: i32, %arg1: memref<36x128xf32, #tpu.memory_space<vmem>>, %arg2: memref<4x2048xf32, #tpu.memory_space<vmem>>, %arg3: memref<28x64xf32, #tpu.memory_space<vmem>>, %arg4: memref<2048x64xbf16, #tpu.memory_space<vmem>>, %arg5: memref<1x64xf32, #tpu.memory_space<vmem>>, %arg6: memref<64x512xbf16, #tpu.memory_space<vmem>>, %arg7: memref<1x512xf32, #tpu.memory_space<vmem>>, %arg8: memref<128x512xbf16, #tpu.memory_space<vmem>>, %arg9: memref<128x128xbf16, #tpu.memory_space<vmem>>, %arg10: memref<1x128xf32, #tpu.memory_space<vmem>>, %arg11: memref<32x128xf32, #tpu.memory_space<vmem>>, %arg12: memref<2x4x64xf32, #tpu.memory_space<vmem>>, %arg13: memref<2x4x64xf32, #tpu.memory_space<vmem>>, %arg14: memref<32x64xf32, #tpu.memory_space<vmem>>, %arg15: memref<32x512xf32, #tpu.memory_space<vmem>>, %arg16: memref<32x128xf32, #tpu.memory_space<vmem>>) attributes {dimension_semantics = [#tpu.dimension_semantics<arbitrary>], iteration_bounds = array<i64: 1>, scalar_prefetch = 0 : i64, scratch_operands = 3 : i64, tpu.core_type = #tpu.core_type<tc>, window_params = [{pipeline_mode = #tpu.pipeline_mode<synchronous>, transform_indices = @transform_0, window_bounds = array<i64: 36, 128>}, {pipeline_mode = #tpu.pipeline_mode<synchronous>, transform_indices = @transform_1, window_bounds = array<i64: 4, 2048>}, {pipeline_mode = #tpu.pipeline_mode<synchronous>, transform_indices = @transform_2, window_bounds = array<i64: 28, 64>}, {pipeline_mode = #tpu.pipeline_mode<synchronous>, transform_indices = @transform_3, window_bounds = array<i64: 2048, 64>}, {pipeline_mode = #tpu.pipeline_mode<synchronous>, transform_indices = @transform_4, window_bounds = array<i64: 1, 64>}, {pipeline_mode = #tpu.pipeline_mode<synchronous>, transform_indices = @transform_5, window_bounds = array<i64: 64, 512>}, {pipeline_mode = #tpu.pipeline_mode<synchronous>, transform_indices = @transform_6, window_bounds = array<i64: 1, 512>}, {pipeline_mode = #tpu.pipeline_mode<synchronous>, transform_indices = @transform_7, window_bounds = array<i64: 128, 512>}, {pipeline_mode = #tpu.pipeline_mode<synchronous>, transform_indices = @transform_8, window_bounds = array<i64: 128, 128>}, {pipeline_mode = #tpu.pipeline_mode<synchronous>, transform_indices = @transform_9, window_bounds = array<i64: 1, 128>}, {pipeline_mode = #tpu.pipeline_mode<synchronous>, transform_indices = @transform_10, window_bounds = array<i64: 32, 128>}, {pipeline_mode = #tpu.pipeline_mode<synchronous>, transform_indices = @transform_11, window_bounds = array<i64: 2, 4, 64>}, {pipeline_mode = #tpu.pipeline_mode<synchronous>, transform_indices = @transform_12, window_bounds = array<i64: 2, 4, 64>}]} {
    %c0 = arith.constant 0 : index
    %c0_0 = arith.constant 0 : index
    %0 = vector.load %arg2[%c0, %c0_0] : memref<4x2048xf32, #tpu.memory_space<vmem>>, vector<4x2048xf32>
    %1 = arith.truncf %0 : vector<4x2048xf32> to vector<4x2048xbf16>
    %c0_1 = arith.constant 0 : index
    %c0_2 = arith.constant 0 : index
    %2 = vector.load %arg4[%c0_1, %c0_2] : memref<2048x64xbf16, #tpu.memory_space<vmem>>, vector<2048x64xbf16>
    %cst = arith.constant dense<0.000000e+00> : vector<4x64xf32>
    %3 = tpu.matmul %1, %2, %cst {dimension_numbers = #tpu.dot_dimension_numbers<[1], [0], [0], [1], [0, 0, 1, 1], [], []>} : vector<4x2048xbf16>, vector<2048x64xbf16>, vector<4x64xf32> -> vector<4x64xf32>
    %c0_3 = arith.constant 0 : index
    %c0_4 = arith.constant 0 : index
    %4 = vector.load %arg5[%c0_3, %c0_4] : memref<1x64xf32, #tpu.memory_space<vmem>>, vector<1x64xf32>
    %5 = vector.broadcast %4 : vector<1x64xf32> to vector<4x64xf32>
    %6 = arith.addf %3, %5 : vector<4x64xf32>
    %c0_5 = arith.constant 0 : index
    %c0_6 = arith.constant 0 : index
    %7 = vector.load %arg14[%c0_5, %c0_6] : memref<32x64xf32, #tpu.memory_space<vmem>>, vector<4x64xf32>
    tpu.vector_store %arg14[%c0_5, %c0_6], %6 {strides = array<i32>} : memref<32x64xf32, #tpu.memory_space<vmem>>, vector<4x64xf32>,
    %c0_7 = arith.constant 0 : index
    %c0_8 = arith.constant 0 : index
    %8 = vector.load %arg3[%c0_7, %c0_8] : memref<28x64xf32, #tpu.memory_space<vmem>>, vector<28x64xf32>
    %c4 = arith.constant 4 : index
    %c0_9 = arith.constant 0 : index
    %9 = vector.load %arg14[%c4, %c0_9] : memref<32x64xf32, #tpu.memory_space<vmem>>, vector<28x64xf32>
    tpu.vector_store %arg14[%c4, %c0_9], %8 {strides = array<i32>} : memref<32x64xf32, #tpu.memory_space<vmem>>, vector<28x64xf32>,
    %c0_10 = arith.constant 0 : index
    %c0_11 = arith.constant 0 : index
    %10 = vector.load %arg14[%c0_10, %c0_11] : memref<32x64xf32, #tpu.memory_space<vmem>>, vector<32x64xf32>
    %11 = arith.truncf %10 : vector<32x64xf32> to vector<32x64xbf16>
    %c0_12 = arith.constant 0 : index
    %c0_13 = arith.constant 0 : index
    %12 = vector.load %arg6[%c0_12, %c0_13] : memref<64x512xbf16, #tpu.memory_space<vmem>>, vector<64x512xbf16>
    %cst_14 = arith.constant dense<0.000000e+00> : vector<32x512xf32>
    %13 = tpu.matmul %11, %12, %cst_14 {dimension_numbers = #tpu.dot_dimension_numbers<[1], [0], [0], [1], [0, 0, 1, 1], [], []>} : vector<32x64xbf16>, vector<64x512xbf16>, vector<32x512xf32> -> vector<32x512xf32>
    %c0_15 = arith.constant 0 : index
    %c0_16 = arith.constant 0 : index
    %14 = vector.load %arg7[%c0_15, %c0_16] : memref<1x512xf32, #tpu.memory_space<vmem>>, vector<1x512xf32>
    %15 = vector.broadcast %14 : vector<1x512xf32> to vector<32x512xf32>
    %16 = arith.addf %13, %15 : vector<32x512xf32>
    %c0_17 = arith.constant 0 : index
    %c0_18 = arith.constant 0 : index
    %17 = vector.load %arg15[%c0_17, %c0_18] : memref<32x512xf32, #tpu.memory_space<vmem>>, vector<32x512xf32>
    tpu.vector_store %arg15[%c0_17, %c0_18], %16 {strides = array<i32>} : memref<32x512xf32, #tpu.memory_space<vmem>>, vector<32x512xf32>,
    %cst_19 = arith.constant 0.000000e+00 : f32
    %18 = vector.broadcast %cst_19 : f32 to vector<4x128xf32>
    %cst_20 = arith.constant 0.000000e+00 : f32
    %19 = vector.broadcast %cst_20 : f32 to vector<4x128xf32>
    %c0_21 = arith.constant 0 : index
    %c0_22 = arith.constant 0 : index
    %20 = vector.load %arg15[%c0_21, %c0_22] : memref<32x512xf32, #tpu.memory_space<vmem>>, vector<4x512xf32>
    %21 = arith.truncf %18 : vector<4x128xf32> to vector<4x128xbf16>
    %c0_23 = arith.constant 0 : index
    %c0_24 = arith.constant 0 : index
    %22 = vector.load %arg8[%c0_23, %c0_24] : memref<128x512xbf16, #tpu.memory_space<vmem>>, vector<128x512xbf16>
    %cst_25 = arith.constant dense<0.000000e+00> : vector<4x512xf32>
    %23 = tpu.matmul %21, %22, %cst_25 {dimension_numbers = #tpu.dot_dimension_numbers<[1], [0], [0], [1], [0, 0, 1, 1], [], []>} : vector<4x128xbf16>, vector<128x512xbf16>, vector<4x512xf32> -> vector<4x512xf32>
    %24 = arith.addf %20, %23 : vector<4x512xf32>
    %25 = vector.extract_strided_slice %24 {offsets = [0, 0], sizes = [4, 384], strides = [1, 1]} : vector<4x512xf32> to vector<4x384xf32>
    %26 = arith.negf %25 : vector<4x384xf32>
    %27 = math.exp %26 : vector<4x384xf32>
    %cst_26 = arith.constant 1.000000e+00 : f32
    %28 = vector.broadcast %cst_26 : f32 to vector<4x384xf32>
    %29 = arith.addf %28, %27 : vector<4x384xf32>
    %30 = arith.divf %28, %29 : vector<4x384xf32>
    %31 = vector.extract_strided_slice %24 {offsets = [0, 384], sizes = [4, 128], strides = [1, 1]} : vector<4x512xf32> to vector<4x128xf32>
    %32 = math.tanh %31 : vector<4x128xf32>
    %33 = vector.extract_strided_slice %30 {offsets = [0, 0], sizes = [4, 128], strides = [1, 1]} : vector<4x384xf32> to vector<4x128xf32>
    %34 = vector.extract_strided_slice %30 {offsets = [0, 128], sizes = [4, 128], strides = [1, 1]} : vector<4x384xf32> to vector<4x128xf32>
    %35 = vector.extract_strided_slice %30 {offsets = [0, 256], sizes = [4, 128], strides = [1, 1]} : vector<4x384xf32> to vector<4x128xf32>
    %36 = arith.mulf %34, %19 : vector<4x128xf32>
    %37 = arith.mulf %33, %32 : vector<4x128xf32>
    %38 = arith.addf %36, %37 : vector<4x128xf32>
    %39 = math.tanh %38 : vector<4x128xf32>
    %40 = arith.mulf %35, %39 : vector<4x128xf32>
    %c0_27 = arith.constant 0 : index
    %c0_28 = arith.constant 0 : index
    %41 = vector.load %arg1[%c0_27, %c0_28] : memref<36x128xf32, #tpu.memory_space<vmem>>, vector<4x128xf32>
    %cst_29 = arith.constant 5.000000e-01 : f32
    %42 = vector.broadcast %cst_29 : f32 to vector<4x128xf32>
    %43 = arith.cmpf ogt, %41, %42 : vector<4x128xf32>
    %44 = arith.select %43, %40, %18 : vector<4x128xi1>, vector<4x128xf32>
    %45 = arith.select %43, %38, %19 : vector<4x128xi1>, vector<4x128xf32>
    %c4_30 = arith.constant 4 : index
    %c0_31 = arith.constant 0 : index
    %46 = vector.load %arg15[%c4_30, %c0_31] : memref<32x512xf32, #tpu.memory_space<vmem>>, vector<4x512xf32>
    %47 = arith.truncf %44 : vector<4x128xf32> to vector<4x128xbf16>
    %c0_32 = arith.constant 0 : index
    %c0_33 = arith.constant 0 : index
    %48 = vector.load %arg8[%c0_32, %c0_33] : memref<128x512xbf16, #tpu.memory_space<vmem>>, vector<128x512xbf16>
    %cst_34 = arith.constant dense<0.000000e+00> : vector<4x512xf32>
    %49 = tpu.matmul %47, %48, %cst_34 {dimension_numbers = #tpu.dot_dimension_numbers<[1], [0], [0], [1], [0, 0, 1, 1], [], []>} : vector<4x128xbf16>, vector<128x512xbf16>, vector<4x512xf32> -> vector<4x512xf32>
    %50 = arith.addf %46, %49 : vector<4x512xf32>
    %51 = vector.extract_strided_slice %50 {offsets = [0, 0], sizes = [4, 384], strides = [1, 1]} : vector<4x512xf32> to vector<4x384xf32>
    %52 = arith.negf %51 : vector<4x384xf32>
    %53 = math.exp %52 : vector<4x384xf32>
    %cst_35 = arith.constant 1.000000e+00 : f32
    %54 = vector.broadcast %cst_35 : f32 to vector<4x384xf32>
    %55 = arith.addf %54, %53 : vector<4x384xf32>
    %56 = arith.divf %54, %55 : vector<4x384xf32>
    %57 = vector.extract_strided_slice %50 {offsets = [0, 384], sizes = [4, 128], strides = [1, 1]} : vector<4x512xf32> to vector<4x128xf32>
    %58 = math.tanh %57 : vector<4x128xf32>
    %59 = vector.extract_strided_slice %56 {offsets = [0, 0], sizes = [4, 128], strides = [1, 1]} : vector<4x384xf32> to vector<4x128xf32>
    %60 = vector.extract_strided_slice %56 {offsets = [0, 128], sizes = [4, 128], strides = [1, 1]} : vector<4x384xf32> to vector<4x128xf32>
    %61 = vector.extract_strided_slice %56 {offsets = [0, 256], sizes = [4, 128], strides = [1, 1]} : vector<4x384xf32> to vector<4x128xf32>
    %62 = arith.mulf %60, %45 : vector<4x128xf32>
    %63 = arith.mulf %59, %58 : vector<4x128xf32>
    %64 = arith.addf %62, %63 : vector<4x128xf32>
    %65 = math.tanh %64 : vector<4x128xf32>
    %66 = arith.mulf %61, %65 : vector<4x128xf32>
    %c4_36 = arith.constant 4 : index
    %c0_37 = arith.constant 0 : index
    %67 = vector.load %arg1[%c4_36, %c0_37] : memref<36x128xf32, #tpu.memory_space<vmem>>, vector<4x128xf32>
    %cst_38 = arith.constant 5.000000e-01 : f32
    %68 = vector.broadcast %cst_38 : f32 to vector<4x128xf32>
    %69 = arith.cmpf ogt, %67, %68 : vector<4x128xf32>
    %70 = arith.select %69, %66, %44 : vector<4x128xi1>, vector<4x128xf32>
    %71 = arith.select %69, %64, %45 : vector<4x128xi1>, vector<4x128xf32>
    %c0_39 = arith.constant 0 : index
    %c0_40 = arith.constant 0 : index
    %72 = vector.load %arg16[%c0_39, %c0_40] : memref<32x128xf32, #tpu.memory_space<vmem>>, vector<4x128xf32>
    tpu.vector_store %arg16[%c0_39, %c0_40], %70 {strides = array<i32>} : memref<32x128xf32, #tpu.memory_space<vmem>>, vector<4x128xf32>,
    %c8 = arith.constant 8 : index
    %c0_41 = arith.constant 0 : index
    %73 = vector.load %arg15[%c8, %c0_41] : memref<32x512xf32, #tpu.memory_space<vmem>>, vector<4x512xf32>
    %74 = arith.truncf %70 : vector<4x128xf32> to vector<4x128xbf16>
    %c0_42 = arith.constant 0 : index
    %c0_43 = arith.constant 0 : index
    %75 = vector.load %arg8[%c0_42, %c0_43] : memref<128x512xbf16, #tpu.memory_space<vmem>>, vector<128x512xbf16>
    %cst_44 = arith.constant dense<0.000000e+00> : vector<4x512xf32>
    %76 = tpu.matmul %74, %75, %cst_44 {dimension_numbers = #tpu.dot_dimension_numbers<[1], [0], [0], [1], [0, 0, 1, 1], [], []>} : vector<4x128xbf16>, vector<128x512xbf16>, vector<4x512xf32> -> vector<4x512xf32>
    %77 = arith.addf %73, %76 : vector<4x512xf32>
    %78 = vector.extract_strided_slice %77 {offsets = [0, 0], sizes = [4, 384], strides = [1, 1]} : vector<4x512xf32> to vector<4x384xf32>
    %79 = arith.negf %78 : vector<4x384xf32>
    %80 = math.exp %79 : vector<4x384xf32>
    %cst_45 = arith.constant 1.000000e+00 : f32
    %81 = vector.broadcast %cst_45 : f32 to vector<4x384xf32>
    %82 = arith.addf %81, %80 : vector<4x384xf32>
    %83 = arith.divf %81, %82 : vector<4x384xf32>
    %84 = vector.extract_strided_slice %77 {offsets = [0, 384], sizes = [4, 128], strides = [1, 1]} : vector<4x512xf32> to vector<4x128xf32>
    %85 = math.tanh %84 : vector<4x128xf32>
    %86 = vector.extract_strided_slice %83 {offsets = [0, 0], sizes = [4, 128], strides = [1, 1]} : vector<4x384xf32> to vector<4x128xf32>
    %87 = vector.extract_strided_slice %83 {offsets = [0, 128], sizes = [4, 128], strides = [1, 1]} : vector<4x384xf32> to vector<4x128xf32>
    %88 = vector.extract_strided_slice %83 {offsets = [0, 256], sizes = [4, 128], strides = [1, 1]} : vector<4x384xf32> to vector<4x128xf32>
    %89 = arith.mulf %87, %71 : vector<4x128xf32>
    %90 = arith.mulf %86, %85 : vector<4x128xf32>
    %91 = arith.addf %89, %90 : vector<4x128xf32>
    %92 = math.tanh %91 : vector<4x128xf32>
    %93 = arith.mulf %88, %92 : vector<4x128xf32>
    %c8_46 = arith.constant 8 : index
    %c0_47 = arith.constant 0 : index
    %94 = vector.load %arg1[%c8_46, %c0_47] : memref<36x128xf32, #tpu.memory_space<vmem>>, vector<4x128xf32>
    %cst_48 = arith.constant 5.000000e-01 : f32
    %95 = vector.broadcast %cst_48 : f32 to vector<4x128xf32>
    %96 = arith.cmpf ogt, %94, %95 : vector<4x128xf32>
    %97 = arith.select %96, %93, %70 : vector<4x128xi1>, vector<4x128xf32>
    %98 = arith.select %96, %91, %71 : vector<4x128xi1>, vector<4x128xf32>
    %c4_49 = arith.constant 4 : index
    %c0_50 = arith.constant 0 : index
    %99 = vector.load %arg16[%c4_49, %c0_50] : memref<32x128xf32, #tpu.memory_space<vmem>>, vector<4x128xf32>
    tpu.vector_store %arg16[%c4_49, %c0_50], %97 {strides = array<i32>} : memref<32x128xf32, #tpu.memory_space<vmem>>, vector<4x128xf32>,
    %c12 = arith.constant 12 : index
    %c0_51 = arith.constant 0 : index
    %100 = vector.load %arg15[%c12, %c0_51] : memref<32x512xf32, #tpu.memory_space<vmem>>, vector<4x512xf32>
    %101 = arith.truncf %97 : vector<4x128xf32> to vector<4x128xbf16>
    %c0_52 = arith.constant 0 : index
    %c0_53 = arith.constant 0 : index
    %102 = vector.load %arg8[%c0_52, %c0_53] : memref<128x512xbf16, #tpu.memory_space<vmem>>, vector<128x512xbf16>
    %cst_54 = arith.constant dense<0.000000e+00> : vector<4x512xf32>
    %103 = tpu.matmul %101, %102, %cst_54 {dimension_numbers = #tpu.dot_dimension_numbers<[1], [0], [0], [1], [0, 0, 1, 1], [], []>} : vector<4x128xbf16>, vector<128x512xbf16>, vector<4x512xf32> -> vector<4x512xf32>
    %104 = arith.addf %100, %103 : vector<4x512xf32>
    %105 = vector.extract_strided_slice %104 {offsets = [0, 0], sizes = [4, 384], strides = [1, 1]} : vector<4x512xf32> to vector<4x384xf32>
    %106 = arith.negf %105 : vector<4x384xf32>
    %107 = math.exp %106 : vector<4x384xf32>
    %cst_55 = arith.constant 1.000000e+00 : f32
    %108 = vector.broadcast %cst_55 : f32 to vector<4x384xf32>
    %109 = arith.addf %108, %107 : vector<4x384xf32>
    %110 = arith.divf %108, %109 : vector<4x384xf32>
    %111 = vector.extract_strided_slice %104 {offsets = [0, 384], sizes = [4, 128], strides = [1, 1]} : vector<4x512xf32> to vector<4x128xf32>
    %112 = math.tanh %111 : vector<4x128xf32>
    %113 = vector.extract_strided_slice %110 {offsets = [0, 0], sizes = [4, 128], strides = [1, 1]} : vector<4x384xf32> to vector<4x128xf32>
    %114 = vector.extract_strided_slice %110 {offsets = [0, 128], sizes = [4, 128], strides = [1, 1]} : vector<4x384xf32> to vector<4x128xf32>
    %115 = vector.extract_strided_slice %110 {offsets = [0, 256], sizes = [4, 128], strides = [1, 1]} : vector<4x384xf32> to vector<4x128xf32>
    %116 = arith.mulf %114, %98 : vector<4x128xf32>
    %117 = arith.mulf %113, %112 : vector<4x128xf32>
    %118 = arith.addf %116, %117 : vector<4x128xf32>
    %119 = math.tanh %118 : vector<4x128xf32>
    %120 = arith.mulf %115, %119 : vector<4x128xf32>
    %c12_56 = arith.constant 12 : index
    %c0_57 = arith.constant 0 : index
    %121 = vector.load %arg1[%c12_56, %c0_57] : memref<36x128xf32, #tpu.memory_space<vmem>>, vector<4x128xf32>
    %cst_58 = arith.constant 5.000000e-01 : f32
    %122 = vector.broadcast %cst_58 : f32 to vector<4x128xf32>
    %123 = arith.cmpf ogt, %121, %122 : vector<4x128xf32>
    %124 = arith.select %123, %120, %97 : vector<4x128xi1>, vector<4x128xf32>
    %125 = arith.select %123, %118, %98 : vector<4x128xi1>, vector<4x128xf32>
    %c8_59 = arith.constant 8 : index
    %c0_60 = arith.constant 0 : index
    %126 = vector.load %arg16[%c8_59, %c0_60] : memref<32x128xf32, #tpu.memory_space<vmem>>, vector<4x128xf32>
    tpu.vector_store %arg16[%c8_59, %c0_60], %124 {strides = array<i32>} : memref<32x128xf32, #tpu.memory_space<vmem>>, vector<4x128xf32>,
    %c16 = arith.constant 16 : index
    %c0_61 = arith.constant 0 : index
    %127 = vector.load %arg15[%c16, %c0_61] : memref<32x512xf32, #tpu.memory_space<vmem>>, vector<4x512xf32>
    %128 = arith.truncf %124 : vector<4x128xf32> to vector<4x128xbf16>
    %c0_62 = arith.constant 0 : index
    %c0_63 = arith.constant 0 : index
    %129 = vector.load %arg8[%c0_62, %c0_63] : memref<128x512xbf16, #tpu.memory_space<vmem>>, vector<128x512xbf16>
    %cst_64 = arith.constant dense<0.000000e+00> : vector<4x512xf32>
    %130 = tpu.matmul %128, %129, %cst_64 {dimension_numbers = #tpu.dot_dimension_numbers<[1], [0], [0], [1], [0, 0, 1, 1], [], []>} : vector<4x128xbf16>, vector<128x512xbf16>, vector<4x512xf32> -> vector<4x512xf32>
    %131 = arith.addf %127, %130 : vector<4x512xf32>
    %132 = vector.extract_strided_slice %131 {offsets = [0, 0], sizes = [4, 384], strides = [1, 1]} : vector<4x512xf32> to vector<4x384xf32>
    %133 = arith.negf %132 : vector<4x384xf32>
    %134 = math.exp %133 : vector<4x384xf32>
    %cst_65 = arith.constant 1.000000e+00 : f32
    %135 = vector.broadcast %cst_65 : f32 to vector<4x384xf32>
    %136 = arith.addf %135, %134 : vector<4x384xf32>
    %137 = arith.divf %135, %136 : vector<4x384xf32>
    %138 = vector.extract_strided_slice %131 {offsets = [0, 384], sizes = [4, 128], strides = [1, 1]} : vector<4x512xf32> to vector<4x128xf32>
    %139 = math.tanh %138 : vector<4x128xf32>
    %140 = vector.extract_strided_slice %137 {offsets = [0, 0], sizes = [4, 128], strides = [1, 1]} : vector<4x384xf32> to vector<4x128xf32>
    %141 = vector.extract_strided_slice %137 {offsets = [0, 128], sizes = [4, 128], strides = [1, 1]} : vector<4x384xf32> to vector<4x128xf32>
    %142 = vector.extract_strided_slice %137 {offsets = [0, 256], sizes = [4, 128], strides = [1, 1]} : vector<4x384xf32> to vector<4x128xf32>
    %143 = arith.mulf %141, %125 : vector<4x128xf32>
    %144 = arith.mulf %140, %139 : vector<4x128xf32>
    %145 = arith.addf %143, %144 : vector<4x128xf32>
    %146 = math.tanh %145 : vector<4x128xf32>
    %147 = arith.mulf %142, %146 : vector<4x128xf32>
    %c16_66 = arith.constant 16 : index
    %c0_67 = arith.constant 0 : index
    %148 = vector.load %arg1[%c16_66, %c0_67] : memref<36x128xf32, #tpu.memory_space<vmem>>, vector<4x128xf32>
    %cst_68 = arith.constant 5.000000e-01 : f32
    %149 = vector.broadcast %cst_68 : f32 to vector<4x128xf32>
    %150 = arith.cmpf ogt, %148, %149 : vector<4x128xf32>
    %151 = arith.select %150, %147, %124 : vector<4x128xi1>, vector<4x128xf32>
    %152 = arith.select %150, %145, %125 : vector<4x128xi1>, vector<4x128xf32>
    %c12_69 = arith.constant 12 : index
    %c0_70 = arith.constant 0 : index
    %153 = vector.load %arg16[%c12_69, %c0_70] : memref<32x128xf32, #tpu.memory_space<vmem>>, vector<4x128xf32>
    tpu.vector_store %arg16[%c12_69, %c0_70], %151 {strides = array<i32>} : memref<32x128xf32, #tpu.memory_space<vmem>>, vector<4x128xf32>,
    %c20 = arith.constant 20 : index
    %c0_71 = arith.constant 0 : index
    %154 = vector.load %arg15[%c20, %c0_71] : memref<32x512xf32, #tpu.memory_space<vmem>>, vector<4x512xf32>
    %155 = arith.truncf %151 : vector<4x128xf32> to vector<4x128xbf16>
    %c0_72 = arith.constant 0 : index
    %c0_73 = arith.constant 0 : index
    %156 = vector.load %arg8[%c0_72, %c0_73] : memref<128x512xbf16, #tpu.memory_space<vmem>>, vector<128x512xbf16>
    %cst_74 = arith.constant dense<0.000000e+00> : vector<4x512xf32>
    %157 = tpu.matmul %155, %156, %cst_74 {dimension_numbers = #tpu.dot_dimension_numbers<[1], [0], [0], [1], [0, 0, 1, 1], [], []>} : vector<4x128xbf16>, vector<128x512xbf16>, vector<4x512xf32> -> vector<4x512xf32>
    %158 = arith.addf %154, %157 : vector<4x512xf32>
    %159 = vector.extract_strided_slice %158 {offsets = [0, 0], sizes = [4, 384], strides = [1, 1]} : vector<4x512xf32> to vector<4x384xf32>
    %160 = arith.negf %159 : vector<4x384xf32>
    %161 = math.exp %160 : vector<4x384xf32>
    %cst_75 = arith.constant 1.000000e+00 : f32
    %162 = vector.broadcast %cst_75 : f32 to vector<4x384xf32>
    %163 = arith.addf %162, %161 : vector<4x384xf32>
    %164 = arith.divf %162, %163 : vector<4x384xf32>
    %165 = vector.extract_strided_slice %158 {offsets = [0, 384], sizes = [4, 128], strides = [1, 1]} : vector<4x512xf32> to vector<4x128xf32>
    %166 = math.tanh %165 : vector<4x128xf32>
    %167 = vector.extract_strided_slice %164 {offsets = [0, 0], sizes = [4, 128], strides = [1, 1]} : vector<4x384xf32> to vector<4x128xf32>
    %168 = vector.extract_strided_slice %164 {offsets = [0, 128], sizes = [4, 128], strides = [1, 1]} : vector<4x384xf32> to vector<4x128xf32>
    %169 = vector.extract_strided_slice %164 {offsets = [0, 256], sizes = [4, 128], strides = [1, 1]} : vector<4x384xf32> to vector<4x128xf32>
    %170 = arith.mulf %168, %152 : vector<4x128xf32>
    %171 = arith.mulf %167, %166 : vector<4x128xf32>
    %172 = arith.addf %170, %171 : vector<4x128xf32>
    %173 = math.tanh %172 : vector<4x128xf32>
    %174 = arith.mulf %169, %173 : vector<4x128xf32>
    %c20_76 = arith.constant 20 : index
    %c0_77 = arith.constant 0 : index
    %175 = vector.load %arg1[%c20_76, %c0_77] : memref<36x128xf32, #tpu.memory_space<vmem>>, vector<4x128xf32>
    %cst_78 = arith.constant 5.000000e-01 : f32
    %176 = vector.broadcast %cst_78 : f32 to vector<4x128xf32>
    %177 = arith.cmpf ogt, %175, %176 : vector<4x128xf32>
    %178 = arith.select %177, %174, %151 : vector<4x128xi1>, vector<4x128xf32>
    %179 = arith.select %177, %172, %152 : vector<4x128xi1>, vector<4x128xf32>
    %c16_79 = arith.constant 16 : index
    %c0_80 = arith.constant 0 : index
    %180 = vector.load %arg16[%c16_79, %c0_80] : memref<32x128xf32, #tpu.memory_space<vmem>>, vector<4x128xf32>
    tpu.vector_store %arg16[%c16_79, %c0_80], %178 {strides = array<i32>} : memref<32x128xf32, #tpu.memory_space<vmem>>, vector<4x128xf32>,
    %c24 = arith.constant 24 : index
    %c0_81 = arith.constant 0 : index
    %181 = vector.load %arg15[%c24, %c0_81] : memref<32x512xf32, #tpu.memory_space<vmem>>, vector<4x512xf32>
    %182 = arith.truncf %178 : vector<4x128xf32> to vector<4x128xbf16>
    %c0_82 = arith.constant 0 : index
    %c0_83 = arith.constant 0 : index
    %183 = vector.load %arg8[%c0_82, %c0_83] : memref<128x512xbf16, #tpu.memory_space<vmem>>, vector<128x512xbf16>
    %cst_84 = arith.constant dense<0.000000e+00> : vector<4x512xf32>
    %184 = tpu.matmul %182, %183, %cst_84 {dimension_numbers = #tpu.dot_dimension_numbers<[1], [0], [0], [1], [0, 0, 1, 1], [], []>} : vector<4x128xbf16>, vector<128x512xbf16>, vector<4x512xf32> -> vector<4x512xf32>
    %185 = arith.addf %181, %184 : vector<4x512xf32>
    %186 = vector.extract_strided_slice %185 {offsets = [0, 0], sizes = [4, 384], strides = [1, 1]} : vector<4x512xf32> to vector<4x384xf32>
    %187 = arith.negf %186 : vector<4x384xf32>
    %188 = math.exp %187 : vector<4x384xf32>
    %cst_85 = arith.constant 1.000000e+00 : f32
    %189 = vector.broadcast %cst_85 : f32 to vector<4x384xf32>
    %190 = arith.addf %189, %188 : vector<4x384xf32>
    %191 = arith.divf %189, %190 : vector<4x384xf32>
    %192 = vector.extract_strided_slice %185 {offsets = [0, 384], sizes = [4, 128], strides = [1, 1]} : vector<4x512xf32> to vector<4x128xf32>
    %193 = math.tanh %192 : vector<4x128xf32>
    %194 = vector.extract_strided_slice %191 {offsets = [0, 0], sizes = [4, 128], strides = [1, 1]} : vector<4x384xf32> to vector<4x128xf32>
    %195 = vector.extract_strided_slice %191 {offsets = [0, 128], sizes = [4, 128], strides = [1, 1]} : vector<4x384xf32> to vector<4x128xf32>
    %196 = vector.extract_strided_slice %191 {offsets = [0, 256], sizes = [4, 128], strides = [1, 1]} : vector<4x384xf32> to vector<4x128xf32>
    %197 = arith.mulf %195, %179 : vector<4x128xf32>
    %198 = arith.mulf %194, %193 : vector<4x128xf32>
    %199 = arith.addf %197, %198 : vector<4x128xf32>
    %200 = math.tanh %199 : vector<4x128xf32>
    %201 = arith.mulf %196, %200 : vector<4x128xf32>
    %c24_86 = arith.constant 24 : index
    %c0_87 = arith.constant 0 : index
    %202 = vector.load %arg1[%c24_86, %c0_87] : memref<36x128xf32, #tpu.memory_space<vmem>>, vector<4x128xf32>
    %cst_88 = arith.constant 5.000000e-01 : f32
    %203 = vector.broadcast %cst_88 : f32 to vector<4x128xf32>
    %204 = arith.cmpf ogt, %202, %203 : vector<4x128xf32>
    %205 = arith.select %204, %201, %178 : vector<4x128xi1>, vector<4x128xf32>
    %206 = arith.select %204, %199, %179 : vector<4x128xi1>, vector<4x128xf32>
    %c20_89 = arith.constant 20 : index
    %c0_90 = arith.constant 0 : index
    %207 = vector.load %arg16[%c20_89, %c0_90] : memref<32x128xf32, #tpu.memory_space<vmem>>, vector<4x128xf32>
    tpu.vector_store %arg16[%c20_89, %c0_90], %205 {strides = array<i32>} : memref<32x128xf32, #tpu.memory_space<vmem>>, vector<4x128xf32>,
    %c28 = arith.constant 28 : index
    %c0_91 = arith.constant 0 : index
    %208 = vector.load %arg15[%c28, %c0_91] : memref<32x512xf32, #tpu.memory_space<vmem>>, vector<4x512xf32>
    %209 = arith.truncf %205 : vector<4x128xf32> to vector<4x128xbf16>
    %c0_92 = arith.constant 0 : index
    %c0_93 = arith.constant 0 : index
    %210 = vector.load %arg8[%c0_92, %c0_93] : memref<128x512xbf16, #tpu.memory_space<vmem>>, vector<128x512xbf16>
    %cst_94 = arith.constant dense<0.000000e+00> : vector<4x512xf32>
    %211 = tpu.matmul %209, %210, %cst_94 {dimension_numbers = #tpu.dot_dimension_numbers<[1], [0], [0], [1], [0, 0, 1, 1], [], []>} : vector<4x128xbf16>, vector<128x512xbf16>, vector<4x512xf32> -> vector<4x512xf32>
    %212 = arith.addf %208, %211 : vector<4x512xf32>
    %213 = vector.extract_strided_slice %212 {offsets = [0, 0], sizes = [4, 384], strides = [1, 1]} : vector<4x512xf32> to vector<4x384xf32>
    %214 = arith.negf %213 : vector<4x384xf32>
    %215 = math.exp %214 : vector<4x384xf32>
    %cst_95 = arith.constant 1.000000e+00 : f32
    %216 = vector.broadcast %cst_95 : f32 to vector<4x384xf32>
    %217 = arith.addf %216, %215 : vector<4x384xf32>
    %218 = arith.divf %216, %217 : vector<4x384xf32>
    %219 = vector.extract_strided_slice %212 {offsets = [0, 384], sizes = [4, 128], strides = [1, 1]} : vector<4x512xf32> to vector<4x128xf32>
    %220 = math.tanh %219 : vector<4x128xf32>
    %221 = vector.extract_strided_slice %218 {offsets = [0, 0], sizes = [4, 128], strides = [1, 1]} : vector<4x384xf32> to vector<4x128xf32>
    %222 = vector.extract_strided_slice %218 {offsets = [0, 128], sizes = [4, 128], strides = [1, 1]} : vector<4x384xf32> to vector<4x128xf32>
    %223 = vector.extract_strided_slice %218 {offsets = [0, 256], sizes = [4, 128], strides = [1, 1]} : vector<4x384xf32> to vector<4x128xf32>
    %224 = arith.mulf %222, %206 : vector<4x128xf32>
    %225 = arith.mulf %221, %220 : vector<4x128xf32>
    %226 = arith.addf %224, %225 : vector<4x128xf32>
    %227 = math.tanh %226 : vector<4x128xf32>
    %228 = arith.mulf %223, %227 : vector<4x128xf32>
    %c28_96 = arith.constant 28 : index
    %c0_97 = arith.constant 0 : index
    %229 = vector.load %arg1[%c28_96, %c0_97] : memref<36x128xf32, #tpu.memory_space<vmem>>, vector<4x128xf32>
    %cst_98 = arith.constant 5.000000e-01 : f32
    %230 = vector.broadcast %cst_98 : f32 to vector<4x128xf32>
    %231 = arith.cmpf ogt, %229, %230 : vector<4x128xf32>
    %232 = arith.select %231, %228, %205 : vector<4x128xi1>, vector<4x128xf32>
    %233 = arith.select %231, %226, %206 : vector<4x128xi1>, vector<4x128xf32>
    %c24_99 = arith.constant 24 : index
    %c0_100 = arith.constant 0 : index
    %234 = vector.load %arg16[%c24_99, %c0_100] : memref<32x128xf32, #tpu.memory_space<vmem>>, vector<4x128xf32>
    tpu.vector_store %arg16[%c24_99, %c0_100], %232 {strides = array<i32>} : memref<32x128xf32, #tpu.memory_space<vmem>>, vector<4x128xf32>,
    %c28_101 = arith.constant 28 : index
    %c0_102 = arith.constant 0 : index
    %235 = vector.load %arg15[%c28_101, %c0_102] : memref<32x512xf32, #tpu.memory_space<vmem>>, vector<4x512xf32>
    %236 = arith.truncf %232 : vector<4x128xf32> to vector<4x128xbf16>
    %c0_103 = arith.constant 0 : index
    %c0_104 = arith.constant 0 : index
    %237 = vector.load %arg8[%c0_103, %c0_104] : memref<128x512xbf16, #tpu.memory_space<vmem>>, vector<128x512xbf16>
    %cst_105 = arith.constant dense<0.000000e+00> : vector<4x512xf32>
    %238 = tpu.matmul %236, %237, %cst_105 {dimension_numbers = #tpu.dot_dimension_numbers<[1], [0], [0], [1], [0, 0, 1, 1], [], []>} : vector<4x128xbf16>, vector<128x512xbf16>, vector<4x512xf32> -> vector<4x512xf32>
    %239 = arith.addf %235, %238 : vector<4x512xf32>
    %240 = vector.extract_strided_slice %239 {offsets = [0, 0], sizes = [4, 384], strides = [1, 1]} : vector<4x512xf32> to vector<4x384xf32>
    %241 = arith.negf %240 : vector<4x384xf32>
    %242 = math.exp %241 : vector<4x384xf32>
    %cst_106 = arith.constant 1.000000e+00 : f32
    %243 = vector.broadcast %cst_106 : f32 to vector<4x384xf32>
    %244 = arith.addf %243, %242 : vector<4x384xf32>
    %245 = arith.divf %243, %244 : vector<4x384xf32>
    %246 = vector.extract_strided_slice %239 {offsets = [0, 384], sizes = [4, 128], strides = [1, 1]} : vector<4x512xf32> to vector<4x128xf32>
    %247 = math.tanh %246 : vector<4x128xf32>
    %248 = vector.extract_strided_slice %245 {offsets = [0, 0], sizes = [4, 128], strides = [1, 1]} : vector<4x384xf32> to vector<4x128xf32>
    %249 = vector.extract_strided_slice %245 {offsets = [0, 128], sizes = [4, 128], strides = [1, 1]} : vector<4x384xf32> to vector<4x128xf32>
    %250 = vector.extract_strided_slice %245 {offsets = [0, 256], sizes = [4, 128], strides = [1, 1]} : vector<4x384xf32> to vector<4x128xf32>
    %251 = arith.mulf %249, %233 : vector<4x128xf32>
    %252 = arith.mulf %248, %247 : vector<4x128xf32>
    %253 = arith.addf %251, %252 : vector<4x128xf32>
    %254 = math.tanh %253 : vector<4x128xf32>
    %255 = arith.mulf %250, %254 : vector<4x128xf32>
    %c32 = arith.constant 32 : index
    %c0_107 = arith.constant 0 : index
    %256 = vector.load %arg1[%c32, %c0_107] : memref<36x128xf32, #tpu.memory_space<vmem>>, vector<4x128xf32>
    %cst_108 = arith.constant 5.000000e-01 : f32
    %257 = vector.broadcast %cst_108 : f32 to vector<4x128xf32>
    %258 = arith.cmpf ogt, %256, %257 : vector<4x128xf32>
    %259 = arith.select %258, %255, %232 : vector<4x128xi1>, vector<4x128xf32>
    %260 = arith.select %258, %253, %233 : vector<4x128xi1>, vector<4x128xf32>
    %c28_109 = arith.constant 28 : index
    %c0_110 = arith.constant 0 : index
    %261 = vector.load %arg16[%c28_109, %c0_110] : memref<32x128xf32, #tpu.memory_space<vmem>>, vector<4x128xf32>
    tpu.vector_store %arg16[%c28_109, %c0_110], %259 {strides = array<i32>} : memref<32x128xf32, #tpu.memory_space<vmem>>, vector<4x128xf32>,
    %c0_111 = arith.constant 0 : index
    %c0_112 = arith.constant 0 : index
    %262 = vector.load %arg16[%c0_111, %c0_112] : memref<32x128xf32, #tpu.memory_space<vmem>>, vector<32x128xf32>
    %263 = arith.truncf %262 : vector<32x128xf32> to vector<32x128xbf16>
    %c0_113 = arith.constant 0 : index
    %c0_114 = arith.constant 0 : index
    %264 = vector.load %arg9[%c0_113, %c0_114] : memref<128x128xbf16, #tpu.memory_space<vmem>>, vector<128x128xbf16>
    %cst_115 = arith.constant dense<0.000000e+00> : vector<32x128xf32>
    %265 = tpu.matmul %263, %264, %cst_115 {dimension_numbers = #tpu.dot_dimension_numbers<[1], [0], [0], [1], [0, 0, 1, 1], [], []>} : vector<32x128xbf16>, vector<128x128xbf16>, vector<32x128xf32> -> vector<32x128xf32>
    %c0_116 = arith.constant 0 : index
    %c0_117 = arith.constant 0 : index
    %266 = vector.load %arg10[%c0_116, %c0_117] : memref<1x128xf32, #tpu.memory_space<vmem>>, vector<1x128xf32>
    %267 = vector.broadcast %266 : vector<1x128xf32> to vector<32x128xf32>
    %268 = arith.addf %265, %267 : vector<32x128xf32>
    %c0_118 = arith.constant 0 : index
    %c0_119 = arith.constant 0 : index
    %269 = vector.load %arg11[%c0_118, %c0_119] : memref<32x128xf32, #tpu.memory_space<vmem>>, vector<32x128xf32>
    tpu.vector_store %arg11[%c0_118, %c0_119], %268 {strides = array<i32>} : memref<32x128xf32, #tpu.memory_space<vmem>>, vector<32x128xf32>,
    %270 = vector.extract_strided_slice %259 {offsets = [0, 0], sizes = [4, 64], strides = [1, 1]} : vector<4x128xf32> to vector<4x64xf32>
    %c0_120 = arith.constant 0 : index
    %c0_121 = arith.constant 0 : index
    %c0_122 = arith.constant 0 : index
    %271 = vector.load %arg12[%c0_120, %c0_121, %c0_122] : memref<2x4x64xf32, #tpu.memory_space<vmem>>, vector<1x4x64xf32>
    %272 = vector.shape_cast %271 : vector<1x4x64xf32> to vector<4x64xf32>
    %273 = vector.shape_cast %270 : vector<4x64xf32> to vector<1x4x64xf32>
    tpu.vector_store %arg12[%c0_120, %c0_121, %c0_122], %273 {strides = array<i32>} : memref<2x4x64xf32, #tpu.memory_space<vmem>>, vector<1x4x64xf32>,
    %274 = vector.extract_strided_slice %259 {offsets = [0, 64], sizes = [4, 64], strides = [1, 1]} : vector<4x128xf32> to vector<4x64xf32>
    %c1 = arith.constant 1 : index
    %c0_123 = arith.constant 0 : index
    %c0_124 = arith.constant 0 : index
    %275 = vector.load %arg12[%c1, %c0_123, %c0_124] : memref<2x4x64xf32, #tpu.memory_space<vmem>>, vector<1x4x64xf32>
    %276 = vector.shape_cast %275 : vector<1x4x64xf32> to vector<4x64xf32>
    %277 = vector.shape_cast %274 : vector<4x64xf32> to vector<1x4x64xf32>
    tpu.vector_store %arg12[%c1, %c0_123, %c0_124], %277 {strides = array<i32>} : memref<2x4x64xf32, #tpu.memory_space<vmem>>, vector<1x4x64xf32>,
    %278 = vector.extract_strided_slice %260 {offsets = [0, 0], sizes = [4, 64], strides = [1, 1]} : vector<4x128xf32> to vector<4x64xf32>
    %c0_125 = arith.constant 0 : index
    %c0_126 = arith.constant 0 : index
    %c0_127 = arith.constant 0 : index
    %279 = vector.load %arg13[%c0_125, %c0_126, %c0_127] : memref<2x4x64xf32, #tpu.memory_space<vmem>>, vector<1x4x64xf32>
    %280 = vector.shape_cast %279 : vector<1x4x64xf32> to vector<4x64xf32>
    %281 = vector.shape_cast %278 : vector<4x64xf32> to vector<1x4x64xf32>
    tpu.vector_store %arg13[%c0_125, %c0_126, %c0_127], %281 {strides = array<i32>} : memref<2x4x64xf32, #tpu.memory_space<vmem>>, vector<1x4x64xf32>,
    %282 = vector.extract_strided_slice %260 {offsets = [0, 64], sizes = [4, 64], strides = [1, 1]} : vector<4x128xf32> to vector<4x64xf32>
    %c1_128 = arith.constant 1 : index
    %c0_129 = arith.constant 0 : index
    %c0_130 = arith.constant 0 : index
    %283 = vector.load %arg13[%c1_128, %c0_129, %c0_130] : memref<2x4x64xf32, #tpu.memory_space<vmem>>, vector<1x4x64xf32>
    %284 = vector.shape_cast %283 : vector<1x4x64xf32> to vector<4x64xf32>
    %285 = vector.shape_cast %282 : vector<4x64xf32> to vector<1x4x64xf32>
    tpu.vector_store %arg13[%c1_128, %c0_129, %c0_130], %285 {strides = array<i32>} : memref<2x4x64xf32, #tpu.memory_space<vmem>>, vector<1x4x64xf32>,
    return
  }
  func.func @transform_0(%arg0: i32) -> (i32, i32) {
    %c0_i32 = arith.constant 0 : i32
    %c0_i32_0 = arith.constant 0 : i32
    %c0_i32_1 = arith.constant 0 : i32
    return %c0_i32, %c0_i32_0 : i32, i32
  }
  func.func @transform_1(%arg0: i32) -> (i32, i32) {
    %c0_i32 = arith.constant 0 : i32
    %c0_i32_0 = arith.constant 0 : i32
    %c0_i32_1 = arith.constant 0 : i32
    return %c0_i32, %c0_i32_0 : i32, i32
  }
  func.func @transform_2(%arg0: i32) -> (i32, i32) {
    %c0_i32 = arith.constant 0 : i32
    %c0_i32_0 = arith.constant 0 : i32
    %c0_i32_1 = arith.constant 0 : i32
    return %c0_i32, %c0_i32_0 : i32, i32
  }
  func.func @transform_3(%arg0: i32) -> (i32, i32) {
    %c0_i32 = arith.constant 0 : i32
    %c0_i32_0 = arith.constant 0 : i32
    %c0_i32_1 = arith.constant 0 : i32
    return %c0_i32, %c0_i32_0 : i32, i32
  }
  func.func @transform_4(%arg0: i32) -> (i32, i32) {
    %c0_i32 = arith.constant 0 : i32
    %c0_i32_0 = arith.constant 0 : i32
    %c0_i32_1 = arith.constant 0 : i32
    return %c0_i32, %c0_i32_0 : i32, i32
  }
  func.func @transform_5(%arg0: i32) -> (i32, i32) {
    %c0_i32 = arith.constant 0 : i32
    %c0_i32_0 = arith.constant 0 : i32
    %c0_i32_1 = arith.constant 0 : i32
    return %c0_i32, %c0_i32_0 : i32, i32
  }
  func.func @transform_6(%arg0: i32) -> (i32, i32) {
    %c0_i32 = arith.constant 0 : i32
    %c0_i32_0 = arith.constant 0 : i32
    %c0_i32_1 = arith.constant 0 : i32
    return %c0_i32, %c0_i32_0 : i32, i32
  }
  func.func @transform_7(%arg0: i32) -> (i32, i32) {
    %c0_i32 = arith.constant 0 : i32
    %c0_i32_0 = arith.constant 0 : i32
    %c0_i32_1 = arith.constant 0 : i32
    return %c0_i32, %c0_i32_0 : i32, i32
  }
  func.func @transform_8(%arg0: i32) -> (i32, i32) {
    %c0_i32 = arith.constant 0 : i32
    %c0_i32_0 = arith.constant 0 : i32
    %c0_i32_1 = arith.constant 0 : i32
    return %c0_i32, %c0_i32_0 : i32, i32
  }
  func.func @transform_9(%arg0: i32) -> (i32, i32) {
    %c0_i32 = arith.constant 0 : i32
    %c0_i32_0 = arith.constant 0 : i32
    %c0_i32_1 = arith.constant 0 : i32
    return %c0_i32, %c0_i32_0 : i32, i32
  }
  func.func @transform_10(%arg0: i32) -> (i32, i32) {
    %c0_i32 = arith.constant 0 : i32
    %c0_i32_0 = arith.constant 0 : i32
    %c0_i32_1 = arith.constant 0 : i32
    return %c0_i32, %c0_i32_0 : i32, i32
  }
  func.func @transform_11(%arg0: i32) -> (i32, i32, i32) {
    %c0_i32 = arith.constant 0 : i32
    %c0_i32_0 = arith.constant 0 : i32
    %c0_i32_1 = arith.constant 0 : i32
    %c0_i32_2 = arith.constant 0 : i32
    return %c0_i32, %c0_i32_0, %c0_i32_1 : i32, i32, i32
  }
  func.func @transform_12(%arg0: i32) -> (i32, i32, i32) {
    %c0_i32 = arith.constant 0 : i32
    %c0_i32_0 = arith.constant 0 : i32
    %c0_i32_1 = arith.constant 0 : i32
    %c0_i32_2 = arith.constant 0 : i32
    return %c0_i32, %c0_i32_0, %c0_i32_1 : i32, i32, i32
  }
}

</mosaic_0001>

<llo_original>
// kernel: _net_forward_core.1
$region0: #{_net_forward_core.1}
  #allocation0 [shape = 'u32[]', space=smem, size = 0x4, offset = 0x4, fixed_abs, tag = 'smem constant byte address 0x4 - core index']
  #allocation1 [shape = 'u32[72,128]{1,0:T(1,128)}', space=vmem, size = 0x9000, scoped, tag = 'internal scratch']
  #allocation2 [shape = 'f32[32,64]{1,0:T(8,128)}', space=vmem, size = 0x4000, scoped, tag = 'scratch operand']
  #allocation3 [shape = 'f32[32,512]{1,0:T(8,128)}', space=vmem, size = 0x10000, scoped, tag = 'scratch operand']
  #allocation4 [shape = 'f32[32,128]{1,0:T(8,128)}', space=vmem, size = 0x4000, scoped, tag = 'scratch operand']
  %s0 = inlined_call_operand.vmem [shape: f32[36,128], index: 0, kind: input, shape index: {}]
  %s1 = inlined_call_operand.vmem [shape: f32[4,2048], index: 1, kind: input, shape index: {}]
  %s2 = inlined_call_operand.vmem [shape: f32[28,64], index: 2, kind: input, shape index: {}]
  %s3 = inlined_call_operand.vmem [shape: bf16[2048,64], index: 3, kind: input, shape index: {}]
  %s4 = inlined_call_operand.vmem [shape: f32[1,64], index: 4, kind: input, shape index: {}]
  %s5 = inlined_call_operand.vmem [shape: bf16[64,512], index: 5, kind: input, shape index: {}]
  %s6 = inlined_call_operand.vmem [shape: f32[1,512], index: 6, kind: input, shape index: {}]
  %s7 = inlined_call_operand.vmem [shape: bf16[128,512], index: 7, kind: input, shape index: {}]
  %s8 = inlined_call_operand.vmem [shape: bf16[128,128], index: 8, kind: input, shape index: {}]
  %s9 = inlined_call_operand.vmem [shape: f32[1,128], index: 9, kind: input, shape index: {}]
  %s10 = inlined_call_operand.hbm [shape: f32[32,128], index: 10, kind: output, shape index: {0}]
  %s11 = inlined_call_operand.hbm [shape: f32[2,4,64], index: 11, kind: output, shape index: {1}]
  %s12 = inlined_call_operand.hbm [shape: f32[2,4,64], index: 12, kind: output, shape index: {2}]
  %13 = xla_tuple %s10, %s11, %s12
  %s14 = sld [smem:[#allocation0]]
  $region66: #{_net_forward_core.1} parent=0
    _
  %s16 = ssub.s32 1, %s14
  %s17 = scalar_select 0, %s16, %s14
  $region1: #{_net_forward_core.1} parent=0
    #allocation5 [shape = 'u8[16384]{0}', space=vmem, size = 0x4000, scoped, tag = 'output window, operand 0, single buffered']
    #allocation6 [shape = 's32[1]{0}', space=sflag, size = 0x4, scoped, tag = 'scoped memory for _net_forward_core.1']
    #allocation7 [shape = 'u8[4096]{0}', space=vmem, size = 0x1000, scoped, tag = 'output window, operand 1, single buffered']
    #allocation8 [shape = 's32[1]{0}', space=sflag, size = 0x4, scoped, tag = 'scoped memory for _net_forward_core.1']
    #allocation9 [shape = 'u8[4096]{0}', space=vmem, size = 0x1000, scoped, tag = 'output window, operand 2, single buffered']
    %18 = vsyncpa [#allocation6], 0
    %19 = vsyncpa [#allocation8], 0
    // Predicated region
    $region2: #{_net_forward_core.1} parent=1 // pred_check
      _
    $region3: #{_net_forward_core.1} parent=1 // pred_check_branch
      %21 = sbr.rel (0) target = $region5
    $region4: #{_net_forward_core.1} parent=1 // pred_region
      _
    $region5: #{_net_forward_core.1} parent=1 // pred_fallthru
      _
    // Predicated region
    $region6: #{_net_forward_core.1} parent=1 // pred_check
      _
    $region7: #{_net_forward_core.1} parent=1 // pred_check_branch
      %23 = sbr.rel (0) target = $region9
    $region8: #{_net_forward_core.1} parent=1 // pred_region
      _
    $region9: #{_net_forward_core.1} parent=1 // pred_fallthru
      _
    // Predicated region
    $region10: #{_net_forward_core.1} parent=1 // pred_check
      _
    $region11: #{_net_forward_core.1} parent=1 // pred_check_branch
      %25 = sbr.rel (0) target = $region13
    $region12: #{_net_forward_core.1} parent=1 // pred_region
      _
    $region13: #{_net_forward_core.1} parent=1 // pred_fallthru
      _
    // Predicated region
    $region14: #{_net_forward_core.1} parent=1 // pred_check
      _
    $region15: #{_net_forward_core.1} parent=1 // pred_check_branch
      %27 = sbr.rel (0) target = $region17
    $region16: #{_net_forward_core.1} parent=1 // pred_region
      _
    $region17: #{_net_forward_core.1} parent=1 // pred_fallthru
      _
    // Predicated region
    $region18: #{_net_forward_core.1} parent=1 // pred_check
      _
    $region19: #{_net_forward_core.1} parent=1 // pred_check_branch
      %29 = sbr.rel (0) target = $region21
    $region20: #{_net_forward_core.1} parent=1 // pred_region
      _
    $region21: #{_net_forward_core.1} parent=1 // pred_fallthru
      _
    // Predicated region
    $region22: #{_net_forward_core.1} parent=1 // pred_check
      _
    $region23: #{_net_forward_core.1} parent=1 // pred_check_branch
      %31 = sbr.rel (0) target = $region25
    $region24: #{_net_forward_core.1} parent=1 // pred_region
      _
    $region25: #{_net_forward_core.1} parent=1 // pred_fallthru
      _
    // Predicated region
    $region26: #{_net_forward_core.1} parent=1 // pred_check
      _
    $region27: #{_net_forward_core.1} parent=1 // pred_check_branch
      %33 = sbr.rel (0) target = $region29
    $region28: #{_net_forward_core.1} parent=1 // pred_region
      _
    $region29: #{_net_forward_core.1} parent=1 // pred_fallthru
      _
    // Predicated region
    $region30: #{_net_forward_core.1} parent=1 // pred_check
      _
    $region31: #{_net_forward_core.1} parent=1 // pred_check_branch
      %35 = sbr.rel (0) target = $region33
    $region32: #{_net_forward_core.1} parent=1 // pred_region
      _
    $region33: #{_net_forward_core.1} parent=1 // pred_fallthru
      _
    // Predicated region
    $region34: #{_net_forward_core.1} parent=1 // pred_check
      _
    $region35: #{_net_forward_core.1} parent=1 // pred_check_branch
      %37 = sbr.rel (0) target = $region37
    $region36: #{_net_forward_core.1} parent=1 // pred_region
      _
    $region37: #{_net_forward_core.1} parent=1 // pred_fallthru
      _
    // Predicated region
    $region38: #{_net_forward_core.1} parent=1 // pred_check
      _
    $region39: #{_net_forward_core.1} parent=1 // pred_check_branch
      %39 = sbr.rel (0) target = $region41
    $region40: #{_net_forward_core.1} parent=1 // pred_region
      _
    $region41: #{_net_forward_core.1} parent=1 // pred_fallthru
      _
    %v41 = vld [vmem:[%s1] sm:$0xff]
    %v42 = vld [vmem:[%s1 + $0x8] sm:$0xff]
    %v43 = vld [vmem:[%s1 + $0x10] sm:$0xff]
    %v44 = vld [vmem:[%s1 + $0x18] sm:$0xff]
    %v45 = vld [vmem:[%s1 + $0x20] sm:$0xff]
    %v46 = vld [vmem:[%s1 + $0x28] sm:$0xff]
    %v47 = vld [vmem:[%s1 + $0x30] sm:$0xff]
    %v48 = vld [vmem:[%s1 + $0x38] sm:$0xff]
    %57 = vst [vmem:[#allocation1] ss:$2 sm:$0xff] %v41
    %s58 = scalar_lea.vmem [#allocation1], 16
    %59 = vst [vmem:[%s58] ss:$2 sm:$0xff] %v42
    %s60 = scalar_lea.vmem [#allocation1], 32
    %61 = vst [vmem:[%s60] ss:$2 sm:$0xff] %v43
    %s62 = scalar_lea.vmem [#allocation1], 48
    %63 = vst [vmem:[%s62] ss:$2 sm:$0xff] %v44
    %v64 = vld.sshfl [vmem:[#allocation1] sm:$0xff pattern:$0x75316420]
    %v65 = vld.sshfl [vmem:[#allocation1 + $0x8] sm:$0xff pattern:$0x75316420]
    %v66 = vld.sshfl [vmem:[#allocation1 + $0x10] sm:$0xff pattern:$0x75316420]
    %v67 = vld.sshfl [vmem:[#allocation1 + $0x18] sm:$0xff pattern:$0x75316420]
    %v68 = vld.sshfl [vmem:[#allocation1 + $0x20] sm:$0xff pattern:$0x75316420]
    %v69 = vld.sshfl [vmem:[#allocation1 + $0x28] sm:$0xff pattern:$0x75316420]
    %v70 = vld.sshfl [vmem:[#allocation1 + $0x30] sm:$0xff pattern:$0x75316420]
    %v71 = vld.sshfl [vmem:[#allocation1 + $0x38] sm:$0xff pattern:$0x75316420]
    %72 = vst [vmem:[#allocation1] ss:$2 sm:$0xff] %v45
    %73 = vst [vmem:[%s58] ss:$2 sm:$0xff] %v46
    %74 = vst [vmem:[%s60] ss:$2 sm:$0xff] %v47
    %75 = vst [vmem:[%s62] ss:$2 sm:$0xff] %v48
    %v76 = vld.sshfl [vmem:[#allocation1] sm:$0xff pattern:$0x75316420]
    %v77 = vld.sshfl [vmem:[#allocation1 + $0x8] sm:$0xff pattern:$0x75316420]
    %v78 = vld.sshfl [vmem:[#allocation1 + $0x10] sm:$0xff pattern:$0x75316420]
    %v79 = vld.sshfl [vmem:[#allocation1 + $0x18] sm:$0xff pattern:$0x75316420]
    %v80 = vld.sshfl [vmem:[#allocation1 + $0x20] sm:$0xff pattern:$0x75316420]
    %v81 = vld.sshfl [vmem:[#allocation1 + $0x28] sm:$0xff pattern:$0x75316420]
    %v82 = vld.sshfl [vmem:[#allocation1 + $0x30] sm:$0xff pattern:$0x75316420]
    %v83 = vld.sshfl [vmem:[#allocation1 + $0x38] sm:$0xff pattern:$0x75316420]
    %v100 = vpack.c.bf16 %v64, %v64
    %v101 = vpack.c.bf16 %v65, %v65
    %v102 = vpack.c.bf16 %v66, %v66
    %v103 = vpack.c.bf16 %v67, %v67
    %v104 = vpack.c.bf16 %v68, %v68
    %v105 = vpack.c.bf16 %v69, %v69
    %v106 = vpack.c.bf16 %v70, %v70
    %v107 = vpack.c.bf16 %v71, %v71
    %v108 = vpack.c.bf16 %v76, %v76
    %v109 = vpack.c.bf16 %v77, %v77
    %v110 = vpack.c.bf16 %v78, %v78
    %v111 = vpack.c.bf16 %v79, %v79
    %v112 = vpack.c.bf16 %v80, %v80
    %v113 = vpack.c.bf16 %v81, %v81
    %v114 = vpack.c.bf16 %v82, %v82
    %v115 = vpack.c.bf16 %v83, %v83
    %v116 = vld [vmem:[%s3] sm:$0xf]
    %v117 = vld [vmem:[%s3 + $0x4] sm:$0xf]
    %v118 = vld [vmem:[%s3 + $0x8] sm:$0xf]
    %v119 = vld [vmem:[%s3 + $0xc] sm:$0xf]
    %v120 = vld [vmem:[%s3 + $0x10] sm:$0xf]
    %v121 = vld [vmem:[%s3 + $0x14] sm:$0xf]
    %v122 = vld [vmem:[%s3 + $0x18] sm:$0xf]
    %v123 = vld [vmem:[%s3 + $0x1c] sm:$0xf]
    %v124 = vld [vmem:[%s3 + $0x20] sm:$0xf]
    %v125 = vld [vmem:[%s3 + $0x24] sm:$0xf]
    %v126 = vld [vmem:[%s3 + $0x28] sm:$0xf]
    %v127 = vld [vmem:[%s3 + $0x2c] sm:$0xf]
    %v128 = vld [vmem:[%s3 + $0x30] sm:$0xf]
    %v129 = vld [vmem:[%s3 + $0x34] sm:$0xf]
    %v130 = vld [vmem:[%s3 + $0x38] sm:$0xf]
    %v131 = vld [vmem:[%s3 + $0x3c] sm:$0xf]
    %v132 = vld [vmem:[%s3 + $0x40] sm:$0xf]
    %v133 = vld [vmem:[%s3 + $0x44] sm:$0xf]
    %v134 = vld [vmem:[%s3 + $0x48] sm:$0xf]
    %v135 = vld [vmem:[%s3 + $0x4c] sm:$0xf]
    %v136 = vld [vmem:[%s3 + $0x50] sm:$0xf]
    %v137 = vld [vmem:[%s3 + $0x54] sm:$0xf]
    %v138 = vld [vmem:[%s3 + $0x58] sm:$0xf]
    %v139 = vld [vmem:[%s3 + $0x5c] sm:$0xf]
    %v140 = vld [vmem:[%s3 + $0x60] sm:$0xf]
    %v141 = vld [vmem:[%s3 + $0x64] sm:$0xf]
    %v142 = vld [vmem:[%s3 + $0x68] sm:$0xf]
    %v143 = vld [vmem:[%s3 + $0x6c] sm:$0xf]
    %v144 = vld [vmem:[%s3 + $0x70] sm:$0xf]
    %v145 = vld [vmem:[%s3 + $0x74] sm:$0xf]
    %v146 = vld [vmem:[%s3 + $0x78] sm:$0xf]
    %v147 = vld [vmem:[%s3 + $0x7c] sm:$0xf]
    %v148 = vld [vmem:[%s3 + $0x80] sm:$0xf]
    %v149 = vld [vmem:[%s3 + $0x84] sm:$0xf]
    %v150 = vld [vmem:[%s3 + $0x88] sm:$0xf]
    %v151 = vld [vmem:[%s3 + $0x8c] sm:$0xf]
    %v152 = vld [vmem:[%s3 + $0x90] sm:$0xf]
    %v153 = vld [vmem:[%s3 + $0x94] sm:$0xf]
    %v154 = vld [vmem:[%s3 + $0x98] sm:$0xf]
    %v155 = vld [vmem:[%s3 + $0x9c] sm:$0xf]
    %v156 = vld [vmem:[%s3 + $0xa0] sm:$0xf]
    %v157 = vld [vmem:[%s3 + $0xa4] sm:$0xf]
    %v158 = vld [vmem:[%s3 + $0xa8] sm:$0xf]
    %v159 = vld [vmem:[%s3 + $0xac] sm:$0xf]
    %v160 = vld [vmem:[%s3 + $0xb0] sm:$0xf]
    %v161 = vld [vmem:[%s3 + $0xb4] sm:$0xf]
    %v162 = vld [vmem:[%s3 + $0xb8] sm:$0xf]
    %v163 = vld [vmem:[%s3 + $0xbc] sm:$0xf]
    %v164 = vld [vmem:[%s3 + $0xc0] sm:$0xf]
    %v165 = vld [vmem:[%s3 + $0xc4] sm:$0xf]
    %v166 = vld [vmem:[%s3 + $0xc8] sm:$0xf]
    %v167 = vld [vmem:[%s3 + $0xcc] sm:$0xf]
    %v168 = vld [vmem:[%s3 + $0xd0] sm:$0xf]
    %v169 = vld [vmem:[%s3 + $0xd4] sm:$0xf]
    %v170 = vld [vmem:[%s3 + $0xd8] sm:$0xf]
    %v171 = vld [vmem:[%s3 + $0xdc] sm:$0xf]
    %v172 = vld [vmem:[%s3 + $0xe0] sm:$0xf]
    %v173 = vld [vmem:[%s3 + $0xe4] sm:$0xf]
    %v174 = vld [vmem:[%s3 + $0xe8] sm:$0xf]
    %v175 = vld [vmem:[%s3 + $0xec] sm:$0xf]
    %v176 = vld [vmem:[%s3 + $0xf0] sm:$0xf]
    %v177 = vld [vmem:[%s3 + $0xf4] sm:$0xf]
    %v178 = vld [vmem:[%s3 + $0xf8] sm:$0xf]
    %v179 = vld [vmem:[%s3 + $0xfc] sm:$0xf]
    %v180 = vld [vmem:[%s3 + $0x100] sm:$0xf]
    %v181 = vld [vmem:[%s3 + $0x104] sm:$0xf]
    %v182 = vld [vmem:[%s3 + $0x108] sm:$0xf]
    %v183 = vld [vmem:[%s3 + $0x10c] sm:$0xf]
    %v184 = vld [vmem:[%s3 + $0x110] sm:$0xf]
    %v185 = vld [vmem:[%s3 + $0x114] sm:$0xf]
    %v186 = vld [vmem:[%s3 + $0x118] sm:$0xf]
    %v187 = vld [vmem:[%s3 + $0x11c] sm:$0xf]
    %v188 = vld [vmem:[%s3 + $0x120] sm:$0xf]
    %v189 = vld [vmem:[%s3 + $0x124] sm:$0xf]
    %v190 = vld [vmem:[%s3 + $0x128] sm:$0xf]
    %v191 = vld [vmem:[%s3 + $0x12c] sm:$0xf]
    %v192 = vld [vmem:[%s3 + $0x130] sm:$0xf]
    %v193 = vld [vmem:[%s3 + $0x134] sm:$0xf]
    %v194 = vld [vmem:[%s3 + $0x138] sm:$0xf]
    %v195 = vld [vmem:[%s3 + $0x13c] sm:$0xf]
    %v196 = vld [vmem:[%s3 + $0x140] sm:$0xf]
    %v197 = vld [vmem:[%s3 + $0x144] sm:$0xf]
    %v198 = vld [vmem:[%s3 + $0x148] sm:$0xf]
    %v199 = vld [vmem:[%s3 + $0x14c] sm:$0xf]
    %v200 = vld [vmem:[%s3 + $0x150] sm:$0xf]
    %v201 = vld [vmem:[%s3 + $0x154] sm:$0xf]
    %v202 = vld [vmem:[%s3 + $0x158] sm:$0xf]
    %v203 = vld [vmem:[%s3 + $0x15c] sm:$0xf]
    %v204 = vld [vmem:[%s3 + $0x160] sm:$0xf]
    %v205 = vld [vmem:[%s3 + $0x164] sm:$0xf]
    %v206 = vld [vmem:[%s3 + $0x168] sm:$0xf]
    %v207 = vld [vmem:[%s3 + $0x16c] sm:$0xf]
    %v208 = vld [vmem:[%s3 + $0x170] sm:$0xf]
    %v209 = vld [vmem:[%s3 + $0x174] sm:$0xf]
    %v210 = vld [vmem:[%s3 + $0x178] sm:$0xf]
    %v211 = vld [vmem:[%s3 + $0x17c] sm:$0xf]
    %v212 = vld [vmem:[%s3 + $0x180] sm:$0xf]
    %v213 = vld [vmem:[%s3 + $0x184] sm:$0xf]
    %v214 = vld [vmem:[%s3 + $0x188] sm:$0xf]
    %v215 = vld [vmem:[%s3 + $0x18c] sm:$0xf]
    %v216 = vld [vmem:[%s3 + $0x190] sm:$0xf]
    %v217 = vld [vmem:[%s3 + $0x194] sm:$0xf]
    %v218 = vld [vmem:[%s3 + $0x198] sm:$0xf]
    %v219 = vld [vmem:[%s3 + $0x19c] sm:$0xf]
    %v220 = vld [vmem:[%s3 + $0x1a0] sm:$0xf]
    %v221 = vld [vmem:[%s3 + $0x1a4] sm:$0xf]
    %v222 = vld [vmem:[%s3 + $0x1a8] sm:$0xf]
    %v223 = vld [vmem:[%s3 + $0x1ac] sm:$0xf]
    %v224 = vld [vmem:[%s3 + $0x1b0] sm:$0xf]
    %v225 = vld [vmem:[%s3 + $0x1b4] sm:$0xf]
    %v226 = vld [vmem:[%s3 + $0x1b8] sm:$0xf]
    %v227 = vld [vmem:[%s3 + $0x1bc] sm:$0xf]
    %v228 = vld [vmem:[%s3 + $0x1c0] sm:$0xf]
    %v229 = vld [vmem:[%s3 + $0x1c4] sm:$0xf]
    %v230 = vld [vmem:[%s3 + $0x1c8] sm:$0xf]
    %v231 = vld [vmem:[%s3 + $0x1cc] sm:$0xf]
    %v232 = vld [vmem:[%s3 + $0x1d0] sm:$0xf]
    %v233 = vld [vmem:[%s3 + $0x1d4] sm:$0xf]
    %v234 = vld [vmem:[%s3 + $0x1d8] sm:$0xf]
    %v235 = vld [vmem:[%s3 + $0x1dc] sm:$0xf]
    %v236 = vld [vmem:[%s3 + $0x1e0] sm:$0xf]
    %v237 = vld [vmem:[%s3 + $0x1e4] sm:$0xf]
    %v238 = vld [vmem:[%s3 + $0x1e8] sm:$0xf]
    %v239 = vld [vmem:[%s3 + $0x1ec] sm:$0xf]
    %v240 = vld [vmem:[%s3 + $0x1f0] sm:$0xf]
    %v241 = vld [vmem:[%s3 + $0x1f4] sm:$0xf]
    %v242 = vld [vmem:[%s3 + $0x1f8] sm:$0xf]
    %v243 = vld [vmem:[%s3 + $0x1fc] sm:$0xf]
    %v244 = vld [vmem:[%s3 + $0x200] sm:$0xf]
    %v245 = vld [vmem:[%s3 + $0x204] sm:$0xf]
    %v246 = vld [vmem:[%s3 + $0x208] sm:$0xf]
    %v247 = vld [vmem:[%s3 + $0x20c] sm:$0xf]
    %v248 = vld [vmem:[%s3 + $0x210] sm:$0xf]
    %v249 = vld [vmem:[%s3 + $0x214] sm:$0xf]
    %v250 = vld [vmem:[%s3 + $0x218] sm:$0xf]
    %v251 = vld [vmem:[%s3 + $0x21c] sm:$0xf]
    %v252 = vld [vmem:[%s3 + $0x220] sm:$0xf]
    %v253 = vld [vmem:[%s3 + $0x224] sm:$0xf]
    %v254 = vld [vmem:[%s3 + $0x228] sm:$0xf]
    %v255 = vld [vmem:[%s3 + $0x22c] sm:$0xf]
    %v256 = vld [vmem:[%s3 + $0x230] sm:$0xf]
    %v257 = vld [vmem:[%s3 + $0x234] sm:$0xf]
    %v258 = vld [vmem:[%s3 + $0x238] sm:$0xf]
    %v259 = vld [vmem:[%s3 + $0x23c] sm:$0xf]
    %v260 = vld [vmem:[%s3 + $0x240] sm:$0xf]
    %v261 = vld [vmem:[%s3 + $0x244] sm:$0xf]
    %v262 = vld [vmem:[%s3 + $0x248] sm:$0xf]
    %v263 = vld [vmem:[%s3 + $0x24c] sm:$0xf]
    %v264 = vld [vmem:[%s3 + $0x250] sm:$0xf]
    %v265 = vld [vmem:[%s3 + $0x254] sm:$0xf]
    %v266 = vld [vmem:[%s3 + $0x258] sm:$0xf]
    %v267 = vld [vmem:[%s3 + $0x25c] sm:$0xf]
    %v268 = vld [vmem:[%s3 + $0x260] sm:$0xf]
    %v269 = vld [vmem:[%s3 + $0x264] sm:$0xf]
    %v270 = vld [vmem:[%s3 + $0x268] sm:$0xf]
    %v271 = vld [vmem:[%s3 + $0x26c] sm:$0xf]
    %v272 = vld [vmem:[%s3 + $0x270] sm:$0xf]
    %v273 = vld [vmem:[%s3 + $0x274] sm:$0xf]
    %v274 = vld [vmem:[%s3 + $0x278] sm:$0xf]
    %v275 = vld [vmem:[%s3 + $0x27c] sm:$0xf]
    %v276 = vld [vmem:[%s3 + $0x280] sm:$0xf]
    %v277 = vld [vmem:[%s3 + $0x284] sm:$0xf]
    %v278 = vld [vmem:[%s3 + $0x288] sm:$0xf]
    %v279 = vld [vmem:[%s3 + $0x28c] sm:$0xf]
    %v280 = vld [vmem:[%s3 + $0x290] sm:$0xf]
    %v281 = vld [vmem:[%s3 + $0x294] sm:$0xf]
    %v282 = vld [vmem:[%s3 + $0x298] sm:$0xf]
    %v283 = vld [vmem:[%s3 + $0x29c] sm:$0xf]
    %v284 = vld [vmem:[%s3 + $0x2a0] sm:$0xf]
    %v285 = vld [vmem:[%s3 + $0x2a4] sm:$0xf]
    %v286 = vld [vmem:[%s3 + $0x2a8] sm:$0xf]
    %v287 = vld [vmem:[%s3 + $0x2ac] sm:$0xf]
    %v288 = vld [vmem:[%s3 + $0x2b0] sm:$0xf]
    %v289 = vld [vmem:[%s3 + $0x2b4] sm:$0xf]
    %v290 = vld [vmem:[%s3 + $0x2b8] sm:$0xf]
    %v291 = vld [vmem:[%s3 + $0x2bc] sm:$0xf]
    %v292 = vld [vmem:[%s3 + $0x2c0] sm:$0xf]
    %v293 = vld [vmem:[%s3 + $0x2c4] sm:$0xf]
    %v294 = vld [vmem:[%s3 + $0x2c8] sm:$0xf]
    %v295 = vld [vmem:[%s3 + $0x2cc] sm:$0xf]
    %v296 = vld [vmem:[%s3 + $0x2d0] sm:$0xf]
    %v297 = vld [vmem:[%s3 + $0x2d4] sm:$0xf]
    %v298 = vld [vmem:[%s3 + $0x2d8] sm:$0xf]
    %v299 = vld [vmem:[%s3 + $0x2dc] sm:$0xf]
    %v300 = vld [vmem:[%s3 + $0x2e0] sm:$0xf]
    %v301 = vld [vmem:[%s3 + $0x2e4] sm:$0xf]
    %v302 = vld [vmem:[%s3 + $0x2e8] sm:$0xf]
    %v303 = vld [vmem:[%s3 + $0x2ec] sm:$0xf]
    %v304 = vld [vmem:[%s3 + $0x2f0] sm:$0xf]
    %v305 = vld [vmem:[%s3 + $0x2f4] sm:$0xf]
    %v306 = vld [vmem:[%s3 + $0x2f8] sm:$0xf]
    %v307 = vld [vmem:[%s3 + $0x2fc] sm:$0xf]
    %v308 = vld [vmem:[%s3 + $0x300] sm:$0xf]
    %v309 = vld [vmem:[%s3 + $0x304] sm:$0xf]
    %v310 = vld [vmem:[%s3 + $0x308] sm:$0xf]
    %v311 = vld [vmem:[%s3 + $0x30c] sm:$0xf]
    %v312 = vld [vmem:[%s3 + $0x310] sm:$0xf]
    %v313 = vld [vmem:[%s3 + $0x314] sm:$0xf]
    %v314 = vld [vmem:[%s3 + $0x318] sm:$0xf]
    %v315 = vld [vmem:[%s3 + $0x31c] sm:$0xf]
    %v316 = vld [vmem:[%s3 + $0x320] sm:$0xf]
    %v317 = vld [vmem:[%s3 + $0x324] sm:$0xf]
    %v318 = vld [vmem:[%s3 + $0x328] sm:$0xf]
    %v319 = vld [vmem:[%s3 + $0x32c] sm:$0xf]
    %v320 = vld [vmem:[%s3 + $0x330] sm:$0xf]
    %v321 = vld [vmem:[%s3 + $0x334] sm:$0xf]
    %v322 = vld [vmem:[%s3 + $0x338] sm:$0xf]
    %v323 = vld [vmem:[%s3 + $0x33c] sm:$0xf]
    %v324 = vld [vmem:[%s3 + $0x340] sm:$0xf]
    %v325 = vld [vmem:[%s3 + $0x344] sm:$0xf]
    %v326 = vld [vmem:[%s3 + $0x348] sm:$0xf]
    %v327 = vld [vmem:[%s3 + $0x34c] sm:$0xf]
    %v328 = vld [vmem:[%s3 + $0x350] sm:$0xf]
    %v329 = vld [vmem:[%s3 + $0x354] sm:$0xf]
    %v330 = vld [vmem:[%s3 + $0x358] sm:$0xf]
    %v331 = vld [vmem:[%s3 + $0x35c] sm:$0xf]
    %v332 = vld [vmem:[%s3 + $0x360] sm:$0xf]
    %v333 = vld [vmem:[%s3 + $0x364] sm:$0xf]
    %v334 = vld [vmem:[%s3 + $0x368] sm:$0xf]
    %v335 = vld [vmem:[%s3 + $0x36c] sm:$0xf]
    %v336 = vld [vmem:[%s3 + $0x370] sm:$0xf]
    %v337 = vld [vmem:[%s3 + $0x374] sm:$0xf]
    %v338 = vld [vmem:[%s3 + $0x378] sm:$0xf]
    %v339 = vld [vmem:[%s3 + $0x37c] sm:$0xf]
    %v340 = vld [vmem:[%s3 + $0x380] sm:$0xf]
    %v341 = vld [vmem:[%s3 + $0x384] sm:$0xf]
    %v342 = vld [vmem:[%s3 + $0x388] sm:$0xf]
    %v343 = vld [vmem:[%s3 + $0x38c] sm:$0xf]
    %v344 = vld [vmem:[%s3 + $0x390] sm:$0xf]
    %v345 = vld [vmem:[%s3 + $0x394] sm:$0xf]
    %v346 = vld [vmem:[%s3 + $0x398] sm:$0xf]
    %v347 = vld [vmem:[%s3 + $0x39c] sm:$0xf]
    %v348 = vld [vmem:[%s3 + $0x3a0] sm:$0xf]
    %v349 = vld [vmem:[%s3 + $0x3a4] sm:$0xf]
    %v350 = vld [vmem:[%s3 + $0x3a8] sm:$0xf]
    %v351 = vld [vmem:[%s3 + $0x3ac] sm:$0xf]
    %v352 = vld [vmem:[%s3 + $0x3b0] sm:$0xf]
    %v353 = vld [vmem:[%s3 + $0x3b4] sm:$0xf]
    %v354 = vld [vmem:[%s3 + $0x3b8] sm:$0xf]
    %v355 = vld [vmem:[%s3 + $0x3bc] sm:$0xf]
    %v356 = vld [vmem:[%s3 + $0x3c0] sm:$0xf]
    %v357 = vld [vmem:[%s3 + $0x3c4] sm:$0xf]
    %v358 = vld [vmem:[%s3 + $0x3c8] sm:$0xf]
    %v359 = vld [vmem:[%s3 + $0x3cc] sm:$0xf]
    %v360 = vld [vmem:[%s3 + $0x3d0] sm:$0xf]
    %v361 = vld [vmem:[%s3 + $0x3d4] sm:$0xf]
    %v362 = vld [vmem:[%s3 + $0x3d8] sm:$0xf]
    %v363 = vld [vmem:[%s3 + $0x3dc] sm:$0xf]
    %v364 = vld [vmem:[%s3 + $0x3e0] sm:$0xf]
    %v365 = vld [vmem:[%s3 + $0x3e4] sm:$0xf]
    %v366 = vld [vmem:[%s3 + $0x3e8] sm:$0xf]
    %v367 = vld [vmem:[%s3 + $0x3ec] sm:$0xf]
    %v368 = vld [vmem:[%s3 + $0x3f0] sm:$0xf]
    %v369 = vld [vmem:[%s3 + $0x3f4] sm:$0xf]
    %v370 = vld [vmem:[%s3 + $0x3f8] sm:$0xf]
    %v371 = vld [vmem:[%s3 + $0x3fc] sm:$0xf]
    %v372 = vld [vmem:[%s4] sm:$0x1]
    %v374 = vperm.slane %v372, 0
    %v632 = vunpack.c.l.b16 %v116
    %v633 = vunpack.c.l.b16 %v117
    %v634 = vunpack.c.l.b16 %v118
    %v635 = vunpack.c.l.b16 %v119
    %v636 = vunpack.c.l.b16 %v120
    %v637 = vunpack.c.l.b16 %v121
    %v638 = vunpack.c.l.b16 %v122
    %v639 = vunpack.c.l.b16 %v123
    %v640 = vunpack.c.l.b16 %v124
    %v641 = vunpack.c.l.b16 %v125
    %v642 = vunpack.c.l.b16 %v126
    %v643 = vunpack.c.l.b16 %v127
    %v644 = vunpack.c.l.b16 %v128
    %v645 = vunpack.c.l.b16 %v129
    %v646 = vunpack.c.l.b16 %v130
    %v647 = vunpack.c.l.b16 %v131
    %v648 = vunpack.c.l.b16 %v132
    %v649 = vunpack.c.l.b16 %v133
    %v650 = vunpack.c.l.b16 %v134
    %v651 = vunpack.c.l.b16 %v135
    %v652 = vunpack.c.l.b16 %v136
    %v653 = vunpack.c.l.b16 %v137
    %v654 = vunpack.c.l.b16 %v138
    %v655 = vunpack.c.l.b16 %v139
    %v656 = vunpack.c.l.b16 %v140
    %v657 = vunpack.c.l.b16 %v141
    %v658 = vunpack.c.l.b16 %v142
    %v659 = vunpack.c.l.b16 %v143
    %v660 = vunpack.c.l.b16 %v144
    %v661 = vunpack.c.l.b16 %v145
    %v662 = vunpack.c.l.b16 %v146
    %v663 = vunpack.c.l.b16 %v147
    %v664 = vunpack.c.l.b16 %v148
    %v665 = vunpack.c.l.b16 %v149
    %v666 = vunpack.c.l.b16 %v150
    %v667 = vunpack.c.l.b16 %v151
    %v668 = vunpack.c.l.b16 %v152
    %v669 = vunpack.c.l.b16 %v153
    %v670 = vunpack.c.l.b16 %v154
    %v671 = vunpack.c.l.b16 %v155
    %v672 = vunpack.c.l.b16 %v156
    %v673 = vunpack.c.l.b16 %v157
    %v674 = vunpack.c.l.b16 %v158
    %v675 = vunpack.c.l.b16 %v159
    %v676 = vunpack.c.l.b16 %v160
    %v677 = vunpack.c.l.b16 %v161
    %v678 = vunpack.c.l.b16 %v162
    %v679 = vunpack.c.l.b16 %v163
    %v680 = vunpack.c.l.b16 %v164
    %v681 = vunpack.c.l.b16 %v165
    %v682 = vunpack.c.l.b16 %v166
    %v683 = vunpack.c.l.b16 %v167
    %v684 = vunpack.c.l.b16 %v168
    %v685 = vunpack.c.l.b16 %v169
    %v686 = vunpack.c.l.b16 %v170
    %v687 = vunpack.c.l.b16 %v171
    %v688 = vunpack.c.l.b16 %v172
    %v689 = vunpack.c.l.b16 %v173
    %v690 = vunpack.c.l.b16 %v174
    %v691 = vunpack.c.l.b16 %v175
    %v692 = vunpack.c.l.b16 %v176
    %v693 = vunpack.c.l.b16 %v177
    %v694 = vunpack.c.l.b16 %v178
    %v695 = vunpack.c.l.b16 %v179
    %v696 = vunpack.c.l.b16 %v180
    %v697 = vunpack.c.l.b16 %v181
    %v698 = vunpack.c.l.b16 %v182
    %v699 = vunpack.c.l.b16 %v183
    %v700 = vunpack.c.l.b16 %v184
    %v701 = vunpack.c.l.b16 %v185
    %v702 = vunpack.c.l.b16 %v186
    %v703 = vunpack.c.l.b16 %v187
    %v704 = vunpack.c.l.b16 %v188
    %v705 = vunpack.c.l.b16 %v189
    %v706 = vunpack.c.l.b16 %v190
    %v707 = vunpack.c.l.b16 %v191
    %v708 = vunpack.c.l.b16 %v192
    %v709 = vunpack.c.l.b16 %v193
    %v710 = vunpack.c.l.b16 %v194
    %v711 = vunpack.c.l.b16 %v195
    %v712 = vunpack.c.l.b16 %v196
    %v713 = vunpack.c.l.b16 %v197
    %v714 = vunpack.c.l.b16 %v198
    %v715 = vunpack.c.l.b16 %v199
    %v716 = vunpack.c.l.b16 %v200
    %v717 = vunpack.c.l.b16 %v201
    %v718 = vunpack.c.l.b16 %v202
    %v719 = vunpack.c.l.b16 %v203
    %v720 = vunpack.c.l.b16 %v204
    %v721 = vunpack.c.l.b16 %v205
    %v722 = vunpack.c.l.b16 %v206
    %v723 = vunpack.c.l.b16 %v207
    %v724 = vunpack.c.l.b16 %v208
    %v725 = vunpack.c.l.b16 %v209
    %v726 = vunpack.c.l.b16 %v210
    %v727 = vunpack.c.l.b16 %v211
    %v728 = vunpack.c.l.b16 %v212
    %v729 = vunpack.c.l.b16 %v213
    %v730 = vunpack.c.l.b16 %v214
    %v731 = vunpack.c.l.b16 %v215
    %v732 = vunpack.c.l.b16 %v216
    %v733 = vunpack.c.l.b16 %v217
    %v734 = vunpack.c.l.b16 %v218
    %v735 = vunpack.c.l.b16 %v219
    %v736 = vunpack.c.l.b16 %v220
    %v737 = vunpack.c.l.b16 %v221
    %v738 = vunpack.c.l.b16 %v222
    %v739 = vunpack.c.l.b16 %v223
    %v740 = vunpack.c.l.b16 %v224
    %v741 = vunpack.c.l.b16 %v225
    %v742 = vunpack.c.l.b16 %v226
    %v743 = vunpack.c.l.b16 %v227
    %v744 = vunpack.c.l.b16 %v228
    %v745 = vunpack.c.l.b16 %v229
    %v746 = vunpack.c.l.b16 %v230
    %v747 = vunpack.c.l.b16 %v231
    %v748 = vunpack.c.l.b16 %v232
    %v749 = vunpack.c.l.b16 %v233
    %v750 = vunpack.c.l.b16 %v234
    %v751 = vunpack.c.l.b16 %v235
    %v752 = vunpack.c.l.b16 %v236
    %v753 = vunpack.c.l.b16 %v237
    %v754 = vunpack.c.l.b16 %v238
    %v755 = vunpack.c.l.b16 %v239
    %v756 = vunpack.c.l.b16 %v240
    %v757 = vunpack.c.l.b16 %v241
    %v758 = vunpack.c.l.b16 %v242
    %v759 = vunpack.c.l.b16 %v243
    %v760 = vunpack.c.l.b16 %v244
    %v761 = vunpack.c.l.b16 %v245
    %v762 = vunpack.c.l.b16 %v246
    %v763 = vunpack.c.l.b16 %v247
    %v764 = vunpack.c.l.b16 %v248
    %v765 = vunpack.c.l.b16 %v249
    %v766 = vunpack.c.l.b16 %v250
    %v767 = vunpack.c.l.b16 %v251
    %v768 = vunpack.c.l.b16 %v252
    %v769 = vunpack.c.l.b16 %v253
    %v770 = vunpack.c.l.b16 %v254
    %v771 = vunpack.c.l.b16 %v255
    %v772 = vunpack.c.l.b16 %v256
    %v773 = vunpack.c.l.b16 %v257
    %v774 = vunpack.c.l.b16 %v258
    %v775 = vunpack.c.l.b16 %v259
    %v776 = vunpack.c.l.b16 %v260
    %v777 = vunpack.c.l.b16 %v261
    %v778 = vunpack.c.l.b16 %v262
    %v779 = vunpack.c.l.b16 %v263
    %v780 = vunpack.c.l.b16 %v264
    %v781 = vunpack.c.l.b16 %v265
    %v782 = vunpack.c.l.b16 %v266
    %v783 = vunpack.c.l.b16 %v267
    %v784 = vunpack.c.l.b16 %v268
    %v785 = vunpack.c.l.b16 %v269
    %v786 = vunpack.c.l.b16 %v270
    %v787 = vunpack.c.l.b16 %v271
    %v788 = vunpack.c.l.b16 %v272
    %v789 = vunpack.c.l.b16 %v273
    %v790 = vunpack.c.l.b16 %v274
    %v791 = vunpack.c.l.b16 %v275
    %v792 = vunpack.c.l.b16 %v276
    %v793 = vunpack.c.l.b16 %v277
    %v794 = vunpack.c.l.b16 %v278
    %v795 = vunpack.c.l.b16 %v279
    %v796 = vunpack.c.l.b16 %v280
    %v797 = vunpack.c.l.b16 %v281
    %v798 = vunpack.c.l.b16 %v282
    %v799 = vunpack.c.l.b16 %v283
    %v800 = vunpack.c.l.b16 %v284
    %v801 = vunpack.c.l.b16 %v285
    %v802 = vunpack.c.l.b16 %v286
    %v803 = vunpack.c.l.b16 %v287
    %v804 = vunpack.c.l.b16 %v288
    %v805 = vunpack.c.l.b16 %v289
    %v806 = vunpack.c.l.b16 %v290
    %v807 = vunpack.c.l.b16 %v291
    %v808 = vunpack.c.l.b16 %v292
    %v809 = vunpack.c.l.b16 %v293
    %v810 = vunpack.c.l.b16 %v294
    %v811 = vunpack.c.l.b16 %v295
    %v812 = vunpack.c.l.b16 %v296
    %v813 = vunpack.c.l.b16 %v297
    %v814 = vunpack.c.l.b16 %v298
    %v815 = vunpack.c.l.b16 %v299
    %v816 = vunpack.c.l.b16 %v300
    %v817 = vunpack.c.l.b16 %v301
    %v818 = vunpack.c.l.b16 %v302
    %v819 = vunpack.c.l.b16 %v303
    %v820 = vunpack.c.l.b16 %v304
    %v821 = vunpack.c.l.b16 %v305
    %v822 = vunpack.c.l.b16 %v306
    %v823 = vunpack.c.l.b16 %v307
    %v824 = vunpack.c.l.b16 %v308
    %v825 = vunpack.c.l.b16 %v309
    %v826 = vunpack.c.l.b16 %v310
    %v827 = vunpack.c.l.b16 %v311
    %v828 = vunpack.c.l.b16 %v312
    %v829 = vunpack.c.l.b16 %v313
    %v830 = vunpack.c.l.b16 %v314
    %v831 = vunpack.c.l.b16 %v315
    %v832 = vunpack.c.l.b16 %v316
    %v833 = vunpack.c.l.b16 %v317
    %v834 = vunpack.c.l.b16 %v318
    %v835 = vunpack.c.l.b16 %v319
    %v836 = vunpack.c.l.b16 %v320
    %v837 = vunpack.c.l.b16 %v321
    %v838 = vunpack.c.l.b16 %v322
    %v839 = vunpack.c.l.b16 %v323
    %v840 = vunpack.c.l.b16 %v324
    %v841 = vunpack.c.l.b16 %v325
    %v842 = vunpack.c.l.b16 %v326
    %v843 = vunpack.c.l.b16 %v327
    %v844 = vunpack.c.l.b16 %v328
    %v845 = vunpack.c.l.b16 %v329
    %v846 = vunpack.c.l.b16 %v330
    %v847 = vunpack.c.l.b16 %v331
    %v848 = vunpack.c.l.b16 %v332
    %v849 = vunpack.c.l.b16 %v333
    %v850 = vunpack.c.l.b16 %v334
    %v851 = vunpack.c.l.b16 %v335
    %v852 = vunpack.c.l.b16 %v336
    %v853 = vunpack.c.l.b16 %v337
    %v854 = vunpack.c.l.b16 %v338
    %v855 = vunpack.c.l.b16 %v339
    %v856 = vunpack.c.l.b16 %v340
    %v857 = vunpack.c.l.b16 %v341
    %v858 = vunpack.c.l.b16 %v342
    %v859 = vunpack.c.l.b16 %v343
    %v860 = vunpack.c.l.b16 %v344
    %v861 = vunpack.c.l.b16 %v345
    %v862 = vunpack.c.l.b16 %v346
    %v863 = vunpack.c.l.b16 %v347
    %v864 = vunpack.c.l.b16 %v348
    %v865 = vunpack.c.l.b16 %v349
    %v866 = vunpack.c.l.b16 %v350
    %v867 = vunpack.c.l.b16 %v351
    %v868 = vunpack.c.l.b16 %v352
    %v869 = vunpack.c.l.b16 %v353
    %v870 = vunpack.c.l.b16 %v354
    %v871 = vunpack.c.l.b16 %v355
    %v872 = vunpack.c.l.b16 %v356
    %v873 = vunpack.c.l.b16 %v357
    %v874 = vunpack.c.l.b16 %v358
    %v875 = vunpack.c.l.b16 %v359
    %v876 = vunpack.c.l.b16 %v360
    %v877 = vunpack.c.l.b16 %v361
    %v878 = vunpack.c.l.b16 %v362
    %v879 = vunpack.c.l.b16 %v363
    %v880 = vunpack.c.l.b16 %v364
    %v881 = vunpack.c.l.b16 %v365
    %v882 = vunpack.c.l.b16 %v366
    %v883 = vunpack.c.l.b16 %v367
    %v884 = vunpack.c.l.b16 %v368
    %v885 = vunpack.c.l.b16 %v369
    %v886 = vunpack.c.l.b16 %v370
    %v887 = vunpack.c.l.b16 %v371
    %v888 = vpack.c.b16 %v633, %v632
    %v889 = vpack.c.b16 %v635, %v634
    %v890 = vpack.c.b16 %v637, %v636
    %v891 = vpack.c.b16 %v639, %v638
    %v892 = vpack.c.b16 %v641, %v640
    %v893 = vpack.c.b16 %v643, %v642
    %v894 = vpack.c.b16 %v645, %v644
    %v895 = vpack.c.b16 %v647, %v646
    %v896 = vpack.c.b16 %v649, %v648
    %v897 = vpack.c.b16 %v651, %v650
    %v898 = vpack.c.b16 %v653, %v652
    %v899 = vpack.c.b16 %v655, %v654
    %v900 = vpack.c.b16 %v657, %v656
    %v901 = vpack.c.b16 %v659, %v658
    %v902 = vpack.c.b16 %v661, %v660
    %v903 = vpack.c.b16 %v663, %v662
    %v904 = vpack.c.b16 %v665, %v664
    %v905 = vpack.c.b16 %v667, %v666
    %v906 = vpack.c.b16 %v669, %v668
    %v907 = vpack.c.b16 %v671, %v670
    %v908 = vpack.c.b16 %v673, %v672
    %v909 = vpack.c.b16 %v675, %v674
    %v910 = vpack.c.b16 %v677, %v676
    %v911 = vpack.c.b16 %v679, %v678
    %v912 = vpack.c.b16 %v681, %v680
    %v913 = vpack.c.b16 %v683, %v682
    %v914 = vpack.c.b16 %v685, %v684
    %v915 = vpack.c.b16 %v687, %v686
    %v916 = vpack.c.b16 %v689, %v688
    %v917 = vpack.c.b16 %v691, %v690
    %v918 = vpack.c.b16 %v693, %v692
    %v919 = vpack.c.b16 %v695, %v694
    %v920 = vpack.c.b16 %v697, %v696
    %v921 = vpack.c.b16 %v699, %v698
    %v922 = vpack.c.b16 %v701, %v700
    %v923 = vpack.c.b16 %v703, %v702
    %v924 = vpack.c.b16 %v705, %v704
    %v925 = vpack.c.b16 %v707, %v706
    %v926 = vpack.c.b16 %v709, %v708
    %v927 = vpack.c.b16 %v711, %v710
    %v928 = vpack.c.b16 %v713, %v712
    %v929 = vpack.c.b16 %v715, %v714
    %v930 = vpack.c.b16 %v717, %v716
    %v931 = vpack.c.b16 %v719, %v718
    %v932 = vpack.c.b16 %v721, %v720
    %v933 = vpack.c.b16 %v723, %v722
    %v934 = vpack.c.b16 %v725, %v724
    %v935 = vpack.c.b16 %v727, %v726
    %v936 = vpack.c.b16 %v729, %v728
    %v937 = vpack.c.b16 %v731, %v730
    %v938 = vpack.c.b16 %v733, %v732
    %v939 = vpack.c.b16 %v735, %v734
    %v940 = vpack.c.b16 %v737, %v736
    %v941 = vpack.c.b16 %v739, %v738
    %v942 = vpack.c.b16 %v741, %v740
    %v943 = vpack.c.b16 %v743, %v742
    %v944 = vpack.c.b16 %v745, %v744
    %v945 = vpack.c.b16 %v747, %v746
    %v946 = vpack.c.b16 %v749, %v748
    %v947 = vpack.c.b16 %v751, %v750
    %v948 = vpack.c.b16 %v753, %v752
    %v949 = vpack.c.b16 %v755, %v754
    %v950 = vpack.c.b16 %v757, %v756
    %v951 = vpack.c.b16 %v759, %v758
    %v952 = vpack.c.b16 %v761, %v760
    %v953 = vpack.c.b16 %v763, %v762
    %v954 = vpack.c.b16 %v765, %v764
    %v955 = vpack.c.b16 %v767, %v766
    %v956 = vpack.c.b16 %v769, %v768
    %v957 = vpack.c.b16 %v771, %v770
    %v958 = vpack.c.b16 %v773, %v772
    %v959 = vpack.c.b16 %v775, %v774
    %v960 = vpack.c.b16 %v777, %v776
    %v961 = vpack.c.b16 %v779, %v778
    %v962 = vpack.c.b16 %v781, %v780
    %v963 = vpack.c.b16 %v783, %v782
    %v964 = vpack.c.b16 %v785, %v784
    %v965 = vpack.c.b16 %v787, %v786
    %v966 = vpack.c.b16 %v789, %v788
    %v967 = vpack.c.b16 %v791, %v790
    %v968 = vpack.c.b16 %v793, %v792
    %v969 = vpack.c.b16 %v795, %v794
    %v970 = vpack.c.b16 %v797, %v796
    %v971 = vpack.c.b16 %v799, %v798
    %v972 = vpack.c.b16 %v801, %v800
    %v973 = vpack.c.b16 %v803, %v802
    %v974 = vpack.c.b16 %v805, %v804
    %v975 = vpack.c.b16 %v807, %v806
    %v976 = vpack.c.b16 %v809, %v808
    %v977 = vpack.c.b16 %v811, %v810
    %v978 = vpack.c.b16 %v813, %v812
    %v979 = vpack.c.b16 %v815, %v814
    %v980 = vpack.c.b16 %v817, %v816
    %v981 = vpack.c.b16 %v819, %v818
    %v982 = vpack.c.b16 %v821, %v820
    %v983 = vpack.c.b16 %v823, %v822
    %v984 = vpack.c.b16 %v825, %v824
    %v985 = vpack.c.b16 %v827, %v826
    %v986 = vpack.c.b16 %v829, %v828
    %v987 = vpack.c.b16 %v831, %v830
    %v988 = vpack.c.b16 %v833, %v832
    %v989 = vpack.c.b16 %v835, %v834
    %v990 = vpack.c.b16 %v837, %v836
    %v991 = vpack.c.b16 %v839, %v838
    %v992 = vpack.c.b16 %v841, %v840
    %v993 = vpack.c.b16 %v843, %v842
    %v994 = vpack.c.b16 %v845, %v844
    %v995 = vpack.c.b16 %v847, %v846
    %v996 = vpack.c.b16 %v849, %v848
    %v997 = vpack.c.b16 %v851, %v850
    %v998 = vpack.c.b16 %v853, %v852
    %v999 = vpack.c.b16 %v855, %v854
    %v1000 = vpack.c.b16 %v857, %v856
    %v1001 = vpack.c.b16 %v859, %v858
    %v1002 = vpack.c.b16 %v861, %v860
    %v1003 = vpack.c.b16 %v863, %v862
    %v1004 = vpack.c.b16 %v865, %v864
    %v1005 = vpack.c.b16 %v867, %v866
    %v1006 = vpack.c.b16 %v869, %v868
    %v1007 = vpack.c.b16 %v871, %v870
    %v1008 = vpack.c.b16 %v873, %v872
    %v1009 = vpack.c.b16 %v875, %v874
    %v1010 = vpack.c.b16 %v877, %v876
    %v1011 = vpack.c.b16 %v879, %v878
    %v1012 = vpack.c.b16 %v881, %v880
    %v1013 = vpack.c.b16 %v883, %v882
    %v1014 = vpack.c.b16 %v885, %v884
    %v1015 = vpack.c.b16 %v887, %v886
    %1144 = vmatpush.bf16.msra.mxu0 %v895
    %1145 = vmatpush.bf16.msra.mxu0 %v894
    %1146 = vmatpush.bf16.msra.mxu0 %v893
    %1147 = vmatpush.bf16.msra.mxu0 %v892
    %1148 = vmatpush.bf16.msra.mxu0 %v891
    %1149 = vmatpush.bf16.msra.mxu0 %v890
    %1150 = vmatpush.bf16.msra.mxu0 %v889
    %1151 = vmatpush.bf16.msra.mxu0 %v888
    %1152 = vmatmul.bf16.gmra.mxu0 %v100
    %v1153 = vpop.f32.mrf.mxu0
    %v1154 = vadd.f32 %v374, %v1153
    %v1155 = vpop.f32.mrf.mxu0
    %1156 = vdwg.mxu0
    %1157 = vmatpush.bf16.msra.mxu0 %v903
    %1158 = vmatpush.bf16.msra.mxu0 %v902
    %1159 = vmatpush.bf16.msra.mxu0 %v901
    %1160 = vmatpush.bf16.msra.mxu0 %v900
    %1161 = vmatpush.bf16.msra.mxu0 %v899
    %1162 = vmatpush.bf16.msra.mxu0 %v898
    %1163 = vmatpush.bf16.msra.mxu0 %v897
    %1164 = vmatpush.bf16.msra.mxu0 %v896
    %1165 = vmatmul.bf16.gmra.mxu0 %v101
    %v1166 = vpop.f32.mrf.mxu0
    %v1167 = vadd.f32 %v1154, %v1166
    %v1168 = vpop.f32.mrf.mxu0
    %1169 = vdwg.mxu0
    %1170 = vmatpush.bf16.msra.mxu0 %v911
    %1171 = vmatpush.bf16.msra.mxu0 %v910
    %1172 = vmatpush.bf16.msra.mxu0 %v909
    %1173 = vmatpush.bf16.msra.mxu0 %v908
    %1174 = vmatpush.bf16.msra.mxu0 %v907
    %1175 = vmatpush.bf16.msra.mxu0 %v906
    %1176 = vmatpush.bf16.msra.mxu0 %v905
    %1177 = vmatpush.bf16.msra.mxu0 %v904
    %1178 = vmatmul.bf16.gmra.mxu0 %v102
    %v1179 = vpop.f32.mrf.mxu0
    %v1180 = vadd.f32 %v1167, %v1179
    %v1181 = vpop.f32.mrf.mxu0
    %1182 = vdwg.mxu0
    %1183 = vmatpush.bf16.msra.mxu0 %v919
    %1184 = vmatpush.bf16.msra.mxu0 %v918
    %1185 = vmatpush.bf16.msra.mxu0 %v917
    %1186 = vmatpush.bf16.msra.mxu0 %v916
    %1187 = vmatpush.bf16.msra.mxu0 %v915
    %1188 = vmatpush.bf16.msra.mxu0 %v914
    %1189 = vmatpush.bf16.msra.mxu0 %v913
    %1190 = vmatpush.bf16.msra.mxu0 %v912
    %1191 = vmatmul.bf16.gmra.mxu0 %v103
    %v1192 = vpop.f32.mrf.mxu0
    %v1193 = vadd.f32 %v1180, %v1192
    %v1194 = vpop.f32.mrf.mxu0
    %1195 = vdwg.mxu0
    %1196 = vmatpush.bf16.msra.mxu0 %v927
    %1197 = vmatpush.bf16.msra.mxu0 %v926
    %1198 = vmatpush.bf16.msra.mxu0 %v925
    %1199 = vmatpush.bf16.msra.mxu0 %v924
    %1200 = vmatpush.bf16.msra.mxu0 %v923
    %1201 = vmatpush.bf16.msra.mxu0 %v922
    %1202 = vmatpush.bf16.msra.mxu0 %v921
    %1203 = vmatpush.bf16.msra.mxu0 %v920
    %1204 = vmatmul.bf16.gmra.mxu0 %v104
    %v1205 = vpop.f32.mrf.mxu0
    %v1206 = vadd.f32 %v1193, %v1205
    %v1207 = vpop.f32.mrf.mxu0
    %1208 = vdwg.mxu0
    %1209 = vmatpush.bf16.msra.mxu0 %v935
    %1210 = vmatpush.bf16.msra.mxu0 %v934
    %1211 = vmatpush.bf16.msra.mxu0 %v933
    %1212 = vmatpush.bf16.msra.mxu0 %v932
    %1213 = vmatpush.bf16.msra.mxu0 %v931
    %1214 = vmatpush.bf16.msra.mxu0 %v930
    %1215 = vmatpush.bf16.msra.mxu0 %v929
    %1216 = vmatpush.bf16.msra.mxu0 %v928
    %1217 = vmatmul.bf16.gmra.mxu0 %v105
    %v1218 = vpop.f32.mrf.mxu0
    %v1219 = vadd.f32 %v1206, %v1218
    %v1220 = vpop.f32.mrf.mxu0
    %1221 = vdwg.mxu0
    %1222 = vmatpush.bf16.msra.mxu0 %v943
    %1223 = vmatpush.bf16.msra.mxu0 %v942
    %1224 = vmatpush.bf16.msra.mxu0 %v941
    %1225 = vmatpush.bf16.msra.mxu0 %v940
    %1226 = vmatpush.bf16.msra.mxu0 %v939
    %1227 = vmatpush.bf16.msra.mxu0 %v938
    %1228 = vmatpush.bf16.msra.mxu0 %v937
    %1229 = vmatpush.bf16.msra.mxu0 %v936
    %1230 = vmatmul.bf16.gmra.mxu0 %v106
    %v1231 = vpop.f32.mrf.mxu0
    %v1232 = vadd.f32 %v1219, %v1231
    %v1233 = vpop.f32.mrf.mxu0
    %1234 = vdwg.mxu0
    %1235 = vmatpush.bf16.msra.mxu0 %v951
    %1236 = vmatpush.bf16.msra.mxu0 %v950
    %1237 = vmatpush.bf16.msra.mxu0 %v949
    %1238 = vmatpush.bf16.msra.mxu0 %v948
    %1239 = vmatpush.bf16.msra.mxu0 %v947
    %1240 = vmatpush.bf16.msra.mxu0 %v946
    %1241 = vmatpush.bf16.msra.mxu0 %v945
    %1242 = vmatpush.bf16.msra.mxu0 %v944
    %1243 = vmatmul.bf16.gmra.mxu0 %v107
    %v1244 = vpop.f32.mrf.mxu0
    %v1245 = vadd.f32 %v1232, %v1244
    %v1246 = vpop.f32.mrf.mxu0
    %1247 = vdwg.mxu0
    %1248 = vmatpush.bf16.msra.mxu0 %v959
    %1249 = vmatpush.bf16.msra.mxu0 %v958
    %1250 = vmatpush.bf16.msra.mxu0 %v957
    %1251 = vmatpush.bf16.msra.mxu0 %v956
    %1252 = vmatpush.bf16.msra.mxu0 %v955
    %1253 = vmatpush.bf16.msra.mxu0 %v954
    %1254 = vmatpush.bf16.msra.mxu0 %v953
    %1255 = vmatpush.bf16.msra.mxu0 %v952
    %1256 = vmatmul.bf16.gmra.mxu0 %v108
    %v1257 = vpop.f32.mrf.mxu0
    %v1258 = vadd.f32 %v1245, %v1257
    %v1259 = vpop.f32.mrf.mxu0
    %1260 = vdwg.mxu0
    %1261 = vmatpush.bf16.msra.mxu0 %v967
    %1262 = vmatpush.bf16.msra.mxu0 %v966
    %1263 = vmatpush.bf16.msra.mxu0 %v965
    %1264 = vmatpush.bf16.msra.mxu0 %v964
    %1265 = vmatpush.bf16.msra.mxu0 %v963
    %1266 = vmatpush.bf16.msra.mxu0 %v962
    %1267 = vmatpush.bf16.msra.mxu0 %v961
    %1268 = vmatpush.bf16.msra.mxu0 %v960
    %1269 = vmatmul.bf16.gmra.mxu0 %v109
    %v1270 = vpop.f32.mrf.mxu0
    %v1271 = vadd.f32 %v1258, %v1270
    %v1272 = vpop.f32.mrf.mxu0
    %1273 = vdwg.mxu0
    %1274 = vmatpush.bf16.msra.mxu0 %v975
    %1275 = vmatpush.bf16.msra.mxu0 %v974
    %1276 = vmatpush.bf16.msra.mxu0 %v973
    %1277 = vmatpush.bf16.msra.mxu0 %v972
    %1278 = vmatpush.bf16.msra.mxu0 %v971
    %1279 = vmatpush.bf16.msra.mxu0 %v970
    %1280 = vmatpush.bf16.msra.mxu0 %v969
    %1281 = vmatpush.bf16.msra.mxu0 %v968
    %1282 = vmatmul.bf16.gmra.mxu0 %v110
    %v1283 = vpop.f32.mrf.mxu0
    %v1284 = vadd.f32 %v1271, %v1283
    %v1285 = vpop.f32.mrf.mxu0
    %1286 = vdwg.mxu0
    %1287 = vmatpush.bf16.msra.mxu0 %v983
    %1288 = vmatpush.bf16.msra.mxu0 %v982
    %1289 = vmatpush.bf16.msra.mxu0 %v981
    %1290 = vmatpush.bf16.msra.mxu0 %v980
    %1291 = vmatpush.bf16.msra.mxu0 %v979
    %1292 = vmatpush.bf16.msra.mxu0 %v978
    %1293 = vmatpush.bf16.msra.mxu0 %v977
    %1294 = vmatpush.bf16.msra.mxu0 %v976
    %1295 = vmatmul.bf16.gmra.mxu0 %v111
    %v1296 = vpop.f32.mrf.mxu0
    %v1297 = vadd.f32 %v1284, %v1296
    %v1298 = vpop.f32.mrf.mxu0
    %1299 = vdwg.mxu0
    %1300 = vmatpush.bf16.msra.mxu0 %v991
    %1301 = vmatpush.bf16.msra.mxu0 %v990
    %1302 = vmatpush.bf16.msra.mxu0 %v989
    %1303 = vmatpush.bf16.msra.mxu0 %v988
    %1304 = vmatpush.bf16.msra.mxu0 %v987
    %1305 = vmatpush.bf16.msra.mxu0 %v986
    %1306 = vmatpush.bf16.msra.mxu0 %v985
    %1307 = vmatpush.bf16.msra.mxu0 %v984
    %1308 = vmatmul.bf16.gmra.mxu0 %v112
    %v1309 = vpop.f32.mrf.mxu0
    %v1310 = vadd.f32 %v1297, %v1309
    %v1311 = vpop.f32.mrf.mxu0
    %1312 = vdwg.mxu0
    %1313 = vmatpush.bf16.msra.mxu0 %v999
    %1314 = vmatpush.bf16.msra.mxu0 %v998
    %1315 = vmatpush.bf16.msra.mxu0 %v997
    %1316 = vmatpush.bf16.msra.mxu0 %v996
    %1317 = vmatpush.bf16.msra.mxu0 %v995
    %1318 = vmatpush.bf16.msra.mxu0 %v994
    %1319 = vmatpush.bf16.msra.mxu0 %v993
    %1320 = vmatpush.bf16.msra.mxu0 %v992
    %1321 = vmatmul.bf16.gmra.mxu0 %v113
    %v1322 = vpop.f32.mrf.mxu0
    %v1323 = vadd.f32 %v1310, %v1322
    %v1324 = vpop.f32.mrf.mxu0
    %1325 = vdwg.mxu0
    %1326 = vmatpush.bf16.msra.mxu0 %v1007
    %1327 = vmatpush.bf16.msra.mxu0 %v1006
    %1328 = vmatpush.bf16.msra.mxu0 %v1005
    %1329 = vmatpush.bf16.msra.mxu0 %v1004
    %1330 = vmatpush.bf16.msra.mxu0 %v1003
    %1331 = vmatpush.bf16.msra.mxu0 %v1002
    %1332 = vmatpush.bf16.msra.mxu0 %v1001
    %1333 = vmatpush.bf16.msra.mxu0 %v1000
    %1334 = vmatmul.bf16.gmra.mxu0 %v114
    %v1335 = vpop.f32.mrf.mxu0
    %v1336 = vadd.f32 %v1323, %v1335
    %v1337 = vpop.f32.mrf.mxu0
    %1338 = vdwg.mxu0
    %1339 = vmatpush.bf16.msra.mxu0 %v1015
    %1340 = vmatpush.bf16.msra.mxu0 %v1014
    %1341 = vmatpush.bf16.msra.mxu0 %v1013
    %1342 = vmatpush.bf16.msra.mxu0 %v1012
    %1343 = vmatpush.bf16.msra.mxu0 %v1011
    %1344 = vmatpush.bf16.msra.mxu0 %v1010
    %1345 = vmatpush.bf16.msra.mxu0 %v1009
    %1346 = vmatpush.bf16.msra.mxu0 %v1008
    %1347 = vmatmul.bf16.gmra.mxu0 %v115
    %v1348 = vpop.f32.mrf.mxu0
    %v1349 = vadd.f32 %v1336, %v1348
    %v1350 = vpop.f32.mrf.mxu0
    %1351 = vdwg.mxu0
    %vm1352 = vcmask 519168
    %1353 = vst.msk [vmem:[#allocation2] sm:$0xf] %vm1352, %v1349
    %v1354 = vld [vmem:[%s2] sm:$0xff]
    %v1355 = vld [vmem:[%s2 + $0x8] sm:$0xff]
    %v1356 = vld [vmem:[%s2 + $0x10] sm:$0xff]
    %v1357 = vld [vmem:[%s2 + $0x18] sm:$0xf]
    %vm1358 = vcmask 523264
    %1359 = vst.msk [vmem:[#allocation2 + $0x4] sm:$0xff] %vm1358, %v1354
    %1360 = vst.msk [vmem:[#allocation2 + $0xc] sm:$0xff] %vm1358, %v1355
    %1361 = vst.msk [vmem:[#allocation2 + $0x14] sm:$0xff] %vm1358, %v1356
    %1362 = vst.msk [vmem:[#allocation2 + $0x1c] sm:$0xf] %vm1352, %v1357
    %v1363 = vld [vmem:[#allocation2] sm:$0xff]
    %v1364 = vld [vmem:[#allocation2 + $0x8] sm:$0xff]
    %v1365 = vld [vmem:[#allocation2 + $0x10] sm:$0xff]
    %v1366 = vld [vmem:[#allocation2 + $0x18] sm:$0xff]
    %v1367 = vpack.c.bf16 %v1364, %v1363
    %v1368 = vpack.c.bf16 %v1366, %v1365
    %v1369 = vld [vmem:[%s5] sm:$0xff]
    %v1370 = vld [vmem:[%s5 + $0x8] sm:$0xff]
    %v1371 = vld [vmem:[%s5 + $0x10] sm:$0xff]
    %v1372 = vld [vmem:[%s5 + $0x18] sm:$0xff]
    %v1373 = vld [vmem:[%s5 + $0x20] sm:$0xff]
    %v1374 = vld [vmem:[%s5 + $0x28] sm:$0xff]
    %v1375 = vld [vmem:[%s5 + $0x30] sm:$0xff]
    %v1376 = vld [vmem:[%s5 + $0x38] sm:$0xff]
    %v1377 = vld [vmem:[%s5 + $0x40] sm:$0xff]
    %v1378 = vld [vmem:[%s5 + $0x48] sm:$0xff]
    %v1379 = vld [vmem:[%s5 + $0x50] sm:$0xff]
    %v1380 = vld [vmem:[%s5 + $0x58] sm:$0xff]
    %v1381 = vld [vmem:[%s5 + $0x60] sm:$0xff]
    %v1382 = vld [vmem:[%s5 + $0x68] sm:$0xff]
    %v1383 = vld [vmem:[%s5 + $0x70] sm:$0xff]
    %v1384 = vld [vmem:[%s5 + $0x78] sm:$0xff]
    %v1385 = vld [vmem:[%s6] sm:$0xf]
    %v1387 = vperm.slane %v1385, 0
    %v1388 = vperm.slane %v1385, 1
    %v1389 = vperm.slane %v1385, 2
    %v1390 = vperm.slane %v1385, 3
    %v1411 = vunpack.c.l.b16 %v1369
    %v1412 = vunpack.c.h.b16 %v1369
    %v1413 = vunpack.c.l.b16 %v1370
    %v1414 = vunpack.c.h.b16 %v1370
    %v1415 = vunpack.c.l.b16 %v1371
    %v1416 = vunpack.c.h.b16 %v1371
    %v1417 = vunpack.c.l.b16 %v1372
    %v1418 = vunpack.c.h.b16 %v1372
    %v1419 = vunpack.c.l.b16 %v1373
    %v1420 = vunpack.c.h.b16 %v1373
    %v1421 = vunpack.c.l.b16 %v1374
    %v1422 = vunpack.c.h.b16 %v1374
    %v1423 = vunpack.c.l.b16 %v1375
    %v1424 = vunpack.c.h.b16 %v1375
    %v1425 = vunpack.c.l.b16 %v1376
    %v1426 = vunpack.c.h.b16 %v1376
    %v1427 = vunpack.c.l.b16 %v1377
    %v1428 = vunpack.c.h.b16 %v1377
    %v1429 = vunpack.c.l.b16 %v1378
    %v1430 = vunpack.c.h.b16 %v1378
    %v1431 = vunpack.c.l.b16 %v1379
    %v1432 = vunpack.c.h.b16 %v1379
    %v1433 = vunpack.c.l.b16 %v1380
    %v1434 = vunpack.c.h.b16 %v1380
    %v1435 = vunpack.c.l.b16 %v1381
    %v1436 = vunpack.c.h.b16 %v1381
    %v1437 = vunpack.c.l.b16 %v1382
    %v1438 = vunpack.c.h.b16 %v1382
    %v1439 = vunpack.c.l.b16 %v1383
    %v1440 = vunpack.c.h.b16 %v1383
    %v1441 = vunpack.c.l.b16 %v1384
    %v1442 = vunpack.c.h.b16 %v1384
    %v1443 = vpack.c.b16 %v1415, %v1411
    %v1444 = vpack.c.b16 %v1416, %v1412
    %v1445 = vpack.c.b16 %v1417, %v1413
    %v1446 = vpack.c.b16 %v1418, %v1414
    %v1447 = vpack.c.b16 %v1423, %v1419
    %v1448 = vpack.c.b16 %v1424, %v1420
    %v1449 = vpack.c.b16 %v1425, %v1421
    %v1450 = vpack.c.b16 %v1426, %v1422
    %v1451 = vpack.c.b16 %v1431, %v1427
    %v1452 = vpack.c.b16 %v1432, %v1428
    %v1453 = vpack.c.b16 %v1433, %v1429
    %v1454 = vpack.c.b16 %v1434, %v1430
    %v1455 = vpack.c.b16 %v1439, %v1435
    %v1456 = vpack.c.b16 %v1440, %v1436
    %v1457 = vpack.c.b16 %v1441, %v1437
    %v1458 = vpack.c.b16 %v1442, %v1438
    %v1476 = vsel %vm1358, %v1367, 0
    %v1479 = vsel %vm1358, %v1368, 0
    %1481 = vmatpush.bf16.msra.mxu0 0
    %1482 = vmatpush.bf16.msra.mxu0 0
    %1483 = vmatpush.bf16.msra.mxu0 0
    %1484 = vmatpush.bf16.msra.mxu0 0
    %1485 = vmatpush.bf16.msra.mxu0 %v1455
    %1486 = vmatpush.bf16.msra.mxu0 %v1451
    %1487 = vmatpush.bf16.msra.mxu0 %v1447
    %1488 = vmatpush.bf16.msra.mxu0 %v1443
    %1489 = vmatmul.bf16.gmra.mxu0 %v1476
    %v1490 = vpop.f32.mrf.mxu0
    %v1491 = vadd.f32 %v1387, %v1490
    %v1492 = vpop.f32.mrf.mxu0
    %v1493 = vadd.f32 %v1387, %v1492
    %1494 = vmatmul.bf16.gmra.mxu0 %v1479
    %v1495 = vpop.f32.mrf.mxu0
    %v1496 = vadd.f32 %v1387, %v1495
    %v1497 = vpop.f32.mrf.mxu0
    %v1498 = vadd.f32 %v1387, %v1497
    %1499 = vdwg.mxu0
    %1500 = vmatpush.bf16.msra.mxu0 0
    %1501 = vmatpush.bf16.msra.mxu0 0
    %1502 = vmatpush.bf16.msra.mxu0 0
    %1503 = vmatpush.bf16.msra.mxu0 0
    %1504 = vmatpush.bf16.msra.mxu0 %v1456
    %1505 = vmatpush.bf16.msra.mxu0 %v1452
    %1506 = vmatpush.bf16.msra.mxu0 %v1448
    %1507 = vmatpush.bf16.msra.mxu0 %v1444
    %1508 = vmatmul.bf16.gmra.mxu0 %v1476
    %v1509 = vpop.f32.mrf.mxu0
    %v1510 = vadd.f32 %v1388, %v1509
    %v1511 = vpop.f32.mrf.mxu0
    %v1512 = vadd.f32 %v1388, %v1511
    %1513 = vmatmul.bf16.gmra.mxu0 %v1479
    %v1514 = vpop.f32.mrf.mxu0
    %v1515 = vadd.f32 %v1388, %v1514
    %v1516 = vpop.f32.mrf.mxu0
    %v1517 = vadd.f32 %v1388, %v1516
    %1518 = vdwg.mxu0
    %1519 = vmatpush.bf16.msra.mxu0 0
    %1520 = vmatpush.bf16.msra.mxu0 0
    %1521 = vmatpush.bf16.msra.mxu0 0
    %1522 = vmatpush.bf16.msra.mxu0 0
    %1523 = vmatpush.bf16.msra.mxu0 %v1457
    %1524 = vmatpush.bf16.msra.mxu0 %v1453
    %1525 = vmatpush.bf16.msra.mxu0 %v1449
    %1526 = vmatpush.bf16.msra.mxu0 %v1445
    %1527 = vmatmul.bf16.gmra.mxu0 %v1476
    %v1528 = vpop.f32.mrf.mxu0
    %v1529 = vadd.f32 %v1389, %v1528
    %v1530 = vpop.f32.mrf.mxu0
    %v1531 = vadd.f32 %v1389, %v1530
    %1532 = vmatmul.bf16.gmra.mxu0 %v1479
    %v1533 = vpop.f32.mrf.mxu0
    %v1534 = vadd.f32 %v1389, %v1533
    %v1535 = vpop.f32.mrf.mxu0
    %v1536 = vadd.f32 %v1389, %v1535
    %1537 = vdwg.mxu0
    %1538 = vmatpush.bf16.msra.mxu0 0
    %1539 = vmatpush.bf16.msra.mxu0 0
    %1540 = vmatpush.bf16.msra.mxu0 0
    %1541 = vmatpush.bf16.msra.mxu0 0
    %1542 = vmatpush.bf16.msra.mxu0 %v1458
    %1543 = vmatpush.bf16.msra.mxu0 %v1454
    %1544 = vmatpush.bf16.msra.mxu0 %v1450
    %1545 = vmatpush.bf16.msra.mxu0 %v1446
    %1546 = vmatmul.bf16.gmra.mxu0 %v1476
    %v1547 = vpop.f32.mrf.mxu0
    %v1548 = vadd.f32 %v1390, %v1547
    %v1549 = vpop.f32.mrf.mxu0
    %v1550 = vadd.f32 %v1390, %v1549
    %1551 = vmatmul.bf16.gmra.mxu0 %v1479
    %v1552 = vpop.f32.mrf.mxu0
    %v1553 = vadd.f32 %v1390, %v1552
    %v1554 = vpop.f32.mrf.mxu0
    %v1555 = vadd.f32 %v1390, %v1554
    %1556 = vdwg.mxu0
    %1557 = vst [vmem:[#allocation3] sm:$0xff] %v1491
    %1558 = vst [vmem:[#allocation3 + $0x8] sm:$0xff] %v1510
    %1559 = vst [vmem:[#allocation3 + $0x10] sm:$0xff] %v1529
    %1560 = vst [vmem:[#allocation3 + $0x18] sm:$0xff] %v1548
    %1561 = vst [vmem:[#allocation3 + $0x20] sm:$0xff] %v1493
    %1562 = vst [vmem:[#allocation3 + $0x28] sm:$0xff] %v1512
    %1563 = vst [vmem:[#allocation3 + $0x30] sm:$0xff] %v1531
    %1564 = vst [vmem:[#allocation3 + $0x38] sm:$0xff] %v1550
    %1565 = vst [vmem:[#allocation3 + $0x40] sm:$0xff] %v1496
    %1566 = vst [vmem:[#allocation3 + $0x48] sm:$0xff] %v1515
    %1567 = vst [vmem:[#allocation3 + $0x50] sm:$0xff] %v1534
    %1568 = vst [vmem:[#allocation3 + $0x58] sm:$0xff] %v1553
    %1569 = vst [vmem:[#allocation3 + $0x60] sm:$0xff] %v1498
    %1570 = vst [vmem:[#allocation3 + $0x68] sm:$0xff] %v1517
    %1571 = vst [vmem:[#allocation3 + $0x70] sm:$0xff] %v1536
    %1572 = vst [vmem:[#allocation3 + $0x78] sm:$0xff] %v1555
    %v1573 = vld [vmem:[#allocation3] sm:$0xf]
    %v1574 = vld [vmem:[#allocation3 + $0x8] sm:$0xf]
    %v1575 = vld [vmem:[#allocation3 + $0x10] sm:$0xf]
    %v1576 = vld [vmem:[#allocation3 + $0x18] sm:$0xf]
    %v1577 = vld [vmem:[%s7] sm:$0xff]
    %v1578 = vld [vmem:[%s7 + $0x8] sm:$0xff]
    %v1579 = vld [vmem:[%s7 + $0x10] sm:$0xff]
    %v1580 = vld [vmem:[%s7 + $0x18] sm:$0xff]
    %v1581 = vld [vmem:[%s7 + $0x20] sm:$0xff]
    %v1582 = vld [vmem:[%s7 + $0x28] sm:$0xff]
    %v1583 = vld [vmem:[%s7 + $0x30] sm:$0xff]
    %v1584 = vld [vmem:[%s7 + $0x38] sm:$0xff]
    %v1585 = vld [vmem:[%s7 + $0x40] sm:$0xff]
    %v1586 = vld [vmem:[%s7 + $0x48] sm:$0xff]
    %v1587 = vld [vmem:[%s7 + $0x50] sm:$0xff]
    %v1588 = vld [vmem:[%s7 + $0x58] sm:$0xff]
    %v1589 = vld [vmem:[%s7 + $0x60] sm:$0xff]
    %v1590 = vld [vmem:[%s7 + $0x68] sm:$0xff]
    %v1591 = vld [vmem:[%s7 + $0x70] sm:$0xff]
    %v1592 = vld [vmem:[%s7 + $0x78] sm:$0xff]
    %v1593 = vld [vmem:[%s7 + $0x80] sm:$0xff]
    %v1594 = vld [vmem:[%s7 + $0x88] sm:$0xff]
    %v1595 = vld [vmem:[%s7 + $0x90] sm:$0xff]
    %v1596 = vld [vmem:[%s7 + $0x98] sm:$0xff]
    %v1597 = vld [vmem:[%s7 + $0xa0] sm:$0xff]
    %v1598 = vld [vmem:[%s7 + $0xa8] sm:$0xff]
    %v1599 = vld [vmem:[%s7 + $0xb0] sm:$0xff]
    %v1600 = vld [vmem:[%s7 + $0xb8] sm:$0xff]
    %v1601 = vld [vmem:[%s7 + $0xc0] sm:$0xff]
    %v1602 = vld [vmem:[%s7 + $0xc8] sm:$0xff]
    %v1603 = vld [vmem:[%s7 + $0xd0] sm:$0xff]
    %v1604 = vld [vmem:[%s7 + $0xd8] sm:$0xff]
    %v1605 = vld [vmem:[%s7 + $0xe0] sm:$0xff]
    %v1606 = vld [vmem:[%s7 + $0xe8] sm:$0xff]
    %v1607 = vld [vmem:[%s7 + $0xf0] sm:$0xff]
    %v1608 = vld [vmem:[%s7 + $0xf8] sm:$0xff]
    %v1641 = vunpack.c.l.b16 %v1577
    %v1642 = vunpack.c.h.b16 %v1577
    %v1643 = vunpack.c.l.b16 %v1578
    %v1644 = vunpack.c.h.b16 %v1578
    %v1645 = vunpack.c.l.b16 %v1579
    %v1646 = vunpack.c.h.b16 %v1579
    %v1647 = vunpack.c.l.b16 %v1580
    %v1648 = vunpack.c.h.b16 %v1580
    %v1649 = vunpack.c.l.b16 %v1581
    %v1650 = vunpack.c.h.b16 %v1581
    %v1651 = vunpack.c.l.b16 %v1582
    %v1652 = vunpack.c.h.b16 %v1582
    %v1653 = vunpack.c.l.b16 %v1583
    %v1654 = vunpack.c.h.b16 %v1583
    %v1655 = vunpack.c.l.b16 %v1584
    %v1656 = vunpack.c.h.b16 %v1584
    %v1657 = vunpack.c.l.b16 %v1585
    %v1658 = vunpack.c.h.b16 %v1585
    %v1659 = vunpack.c.l.b16 %v1586
    %v1660 = vunpack.c.h.b16 %v1586
    %v1661 = vunpack.c.l.b16 %v1587
    %v1662 = vunpack.c.h.b16 %v1587
    %v1663 = vunpack.c.l.b16 %v1588
    %v1664 = vunpack.c.h.b16 %v1588
    %v1665 = vunpack.c.l.b16 %v1589
    %v1666 = vunpack.c.h.b16 %v1589
    %v1667 = vunpack.c.l.b16 %v1590
    %v1668 = vunpack.c.h.b16 %v1590
    %v1669 = vunpack.c.l.b16 %v1591
    %v1670 = vunpack.c.h.b16 %v1591
    %v1671 = vunpack.c.l.b16 %v1592
    %v1672 = vunpack.c.h.b16 %v1592
    %v1673 = vunpack.c.l.b16 %v1593
    %v1674 = vunpack.c.h.b16 %v1593
    %v1675 = vunpack.c.l.b16 %v1594
    %v1676 = vunpack.c.h.b16 %v1594
    %v1677 = vunpack.c.l.b16 %v1595
    %v1678 = vunpack.c.h.b16 %v1595
    %v1679 = vunpack.c.l.b16 %v1596
    %v1680 = vunpack.c.h.b16 %v1596
    %v1681 = vunpack.c.l.b16 %v1597
    %v1682 = vunpack.c.h.b16 %v1597
    %v1683 = vunpack.c.l.b16 %v1598
    %v1684 = vunpack.c.h.b16 %v1598
    %v1685 = vunpack.c.l.b16 %v1599
    %v1686 = vunpack.c.h.b16 %v1599
    %v1687 = vunpack.c.l.b16 %v1600
    %v1688 = vunpack.c.h.b16 %v1600
    %v1689 = vunpack.c.l.b16 %v1601
    %v1690 = vunpack.c.h.b16 %v1601
    %v1691 = vunpack.c.l.b16 %v1602
    %v1692 = vunpack.c.h.b16 %v1602
    %v1693 = vunpack.c.l.b16 %v1603
    %v1694 = vunpack.c.h.b16 %v1603
    %v1695 = vunpack.c.l.b16 %v1604
    %v1696 = vunpack.c.h.b16 %v1604
    %v1697 = vunpack.c.l.b16 %v1605
    %v1698 = vunpack.c.h.b16 %v1605
    %v1699 = vunpack.c.l.b16 %v1606
    %v1700 = vunpack.c.h.b16 %v1606
    %v1701 = vunpack.c.l.b16 %v1607
    %v1702 = vunpack.c.h.b16 %v1607
    %v1703 = vunpack.c.l.b16 %v1608
    %v1704 = vunpack.c.h.b16 %v1608
    %v1705 = vpack.c.b16 %v1645, %v1641
    %v1706 = vpack.c.b16 %v1646, %v1642
    %v1707 = vpack.c.b16 %v1647, %v1643
    %v1708 = vpack.c.b16 %v1648, %v1644
    %v1709 = vpack.c.b16 %v1653, %v1649
    %v1710 = vpack.c.b16 %v1654, %v1650
    %v1711 = vpack.c.b16 %v1655, %v1651
    %v1712 = vpack.c.b16 %v1656, %v1652
    %v1713 = vpack.c.b16 %v1661, %v1657
    %v1714 = vpack.c.b16 %v1662, %v1658
    %v1715 = vpack.c.b16 %v1663, %v1659
    %v1716 = vpack.c.b16 %v1664, %v1660
    %v1717 = vpack.c.b16 %v1669, %v1665
    %v1718 = vpack.c.b16 %v1670, %v1666
    %v1719 = vpack.c.b16 %v1671, %v1667
    %v1720 = vpack.c.b16 %v1672, %v1668
    %v1721 = vpack.c.b16 %v1677, %v1673
    %v1722 = vpack.c.b16 %v1678, %v1674
    %v1723 = vpack.c.b16 %v1679, %v1675
    %v1724 = vpack.c.b16 %v1680, %v1676
    %v1725 = vpack.c.b16 %v1685, %v1681
    %v1726 = vpack.c.b16 %v1686, %v1682
    %v1727 = vpack.c.b16 %v1687, %v1683
    %v1728 = vpack.c.b16 %v1688, %v1684
    %v1729 = vpack.c.b16 %v1693, %v1689
    %v1730 = vpack.c.b16 %v1694, %v1690
    %v1731 = vpack.c.b16 %v1695, %v1691
    %v1732 = vpack.c.b16 %v1696, %v1692
    %v1733 = vpack.c.b16 %v1701, %v1697
    %v1734 = vpack.c.b16 %v1702, %v1698
    %v1735 = vpack.c.b16 %v1703, %v1699
    %v1736 = vpack.c.b16 %v1704, %v1700
    %1769 = vmatpush.bf16.msra.mxu0 %v1733
    %1770 = vmatpush.bf16.msra.mxu0 %v1729
    %1771 = vmatpush.bf16.msra.mxu0 %v1725
    %1772 = vmatpush.bf16.msra.mxu0 %v1721
    %1773 = vmatpush.bf16.msra.mxu0 %v1717
    %1774 = vmatpush.bf16.msra.mxu0 %v1713
    %1775 = vmatpush.bf16.msra.mxu0 %v1709
    %1776 = vmatpush.bf16.msra.mxu0 %v1705
    %1777 = vmatmul.bf16.gmra.mxu0 0
    %v1778 = vpop.f32.mrf.mxu0
    %v1779 = vadd.f32 0.0, %v1778
    %v1780 = vpop.f32.mrf.mxu0
    %1781 = vdwg.mxu0
    %1782 = vmatpush.bf16.msra.mxu0 %v1734
    %1783 = vmatpush.bf16.msra.mxu0 %v1730
    %1784 = vmatpush.bf16.msra.mxu0 %v1726
    %1785 = vmatpush.bf16.msra.mxu0 %v1722
    %1786 = vmatpush.bf16.msra.mxu0 %v1718
    %1787 = vmatpush.bf16.msra.mxu0 %v1714
    %1788 = vmatpush.bf16.msra.mxu0 %v1710
    %1789 = vmatpush.bf16.msra.mxu0 %v1706
    %1790 = vmatmul.bf16.gmra.mxu0 0
    %v1791 = vpop.f32.mrf.mxu0
    %v1792 = vadd.f32 0.0, %v1791
    %v1793 = vpop.f32.mrf.mxu0
    %1794 = vdwg.mxu0
    %1795 = vmatpush.bf16.msra.mxu0 %v1735
    %1796 = vmatpush.bf16.msra.mxu0 %v1731
    %1797 = vmatpush.bf16.msra.mxu0 %v1727
    %1798 = vmatpush.bf16.msra.mxu0 %v1723
    %1799 = vmatpush.bf16.msra.mxu0 %v1719
    %1800 = vmatpush.bf16.msra.mxu0 %v1715
    %1801 = vmatpush.bf16.msra.mxu0 %v1711
    %1802 = vmatpush.bf16.msra.mxu0 %v1707
    %1803 = vmatmul.bf16.gmra.mxu0 0
    %v1804 = vpop.f32.mrf.mxu0
    %v1805 = vadd.f32 0.0, %v1804
    %v1806 = vpop.f32.mrf.mxu0
    %1807 = vdwg.mxu0
    %1808 = vmatpush.bf16.msra.mxu0 %v1736
    %1809 = vmatpush.bf16.msra.mxu0 %v1732
    %1810 = vmatpush.bf16.msra.mxu0 %v1728
    %1811 = vmatpush.bf16.msra.mxu0 %v1724
    %1812 = vmatpush.bf16.msra.mxu0 %v1720
    %1813 = vmatpush.bf16.msra.mxu0 %v1716
    %1814 = vmatpush.bf16.msra.mxu0 %v1712
    %1815 = vmatpush.bf16.msra.mxu0 %v1708
    %1816 = vmatmul.bf16.gmra.mxu0 0
    %v1817 = vpop.f32.mrf.mxu0
    %v1818 = vadd.f32 0.0, %v1817
    %v1819 = vpop.f32.mrf.mxu0
    %1820 = vdwg.mxu0
    %v1821 = vadd.f32 %v1573, %v1779
    %v1822 = vadd.f32 %v1574, %v1792
    %v1823 = vadd.f32 %v1575, %v1805
    %v1824 = vadd.f32 %v1576, %v1818
    %v1825 = vxor.u32 %v1821, 2147483648
    %v1826 = vxor.u32 %v1822, 2147483648
    %v1827 = vxor.u32 %v1823, 2147483648
    %v1828 = vmul.f32 %v1825, 1.442695
    %v1829 = vpow.pop %v1828
    %v1830 = vmul.f32 %v1826, 1.442695
    %v1831 = vpow.pop %v1830
    %v1832 = vmul.f32 %v1827, 1.442695
    %v1833 = vpow.pop %v1832
    %v1834 = vadd.f32 %v1829, 1.0
    %v1835 = vadd.f32 %v1831, 1.0
    %v1836 = vadd.f32 %v1833, 1.0
    %v1837 = vrcp.pop %v1834
    %v1838 = vmul.f32 %v1834, %v1837
    %v1839 = vsub.f32 1.0, %v1838
    %v1840 = vmul.f32 %v1837, %v1839
    %v1841 = vadd.f32 %v1837, %v1840
    %vm1842 = vweird.f32 %v1834
    %vm1843 = vweird.f32 %v1837
    %vm1844 = vmor %vm1842, %vm1843
    %v1845 = vsel %vm1844, %v1837, %v1841
    %v1846 = vand.u32 2147483647, %v1834
    %vm1847 = vcmp.eq.f32.partialorder %v1846, 8.507059e+37
    %v1848 = vand.u32 %v1834, 2147483648
    %v1849 = vor.u32 1.1754944e-38, %v1848
    %v1850 = vsel %vm1847, %v1849, %v1845
    %v1851 = vmul.f32 1.0, %v1850
    %v1852 = vrcp.pop %v1835
    %v1853 = vmul.f32 %v1835, %v1852
    %v1854 = vsub.f32 1.0, %v1853
    %v1855 = vmul.f32 %v1852, %v1854
    %v1856 = vadd.f32 %v1852, %v1855
    %vm1857 = vweird.f32 %v1835
    %vm1858 = vweird.f32 %v1852
    %vm1859 = vmor %vm1857, %vm1858
    %v1860 = vsel %vm1859, %v1852, %v1856
    %v1861 = vand.u32 2147483647, %v1835
    %vm1862 = vcmp.eq.f32.partialorder %v1861, 8.507059e+37
    %v1863 = vand.u32 %v1835, 2147483648
    %v1864 = vor.u32 1.1754944e-38, %v1863
    %v1865 = vsel %vm1862, %v1864, %v1860
    %v1866 = vmul.f32 1.0, %v1865
    %v1867 = vrcp.pop %v1836
    %v1868 = vmul.f32 %v1836, %v1867
    %v1869 = vsub.f32 1.0, %v1868
    %v1870 = vmul.f32 %v1867, %v1869
    %v1871 = vadd.f32 %v1867, %v1870
    %vm1872 = vweird.f32 %v1836
    %vm1873 = vweird.f32 %v1867
    %vm1874 = vmor %vm1872, %vm1873
    %v1875 = vsel %vm1874, %v1867, %v1871
    %v1876 = vand.u32 2147483647, %v1836
    %vm1877 = vcmp.eq.f32.partialorder %v1876, 8.507059e+37
    %v1878 = vand.u32 %v1836, 2147483648
    %v1879 = vor.u32 1.1754944e-38, %v1878
    %v1880 = vsel %vm1877, %v1879, %v1875
    %v1881 = vmul.f32 1.0, %v1880
    %v1882 = vtanh.pop %v1824
    %v1883 = vmul.f32 %v1866, 0.0
    %v1884 = vmul.f32 %v1851, %v1882
    %v1885 = vadd.f32 %v1883, %v1884
    %v1886 = vtanh.pop %v1885
    %v1887 = vmul.f32 %v1881, %v1886
    %v1888 = vld [vmem:[%s0] sm:$0xf]
    %vm1889 = vcmp.gt.f32.partialorder %v1888, 0.5
    %v1890 = vsel %vm1889, %v1887, 0.0
    %v1891 = vsel %vm1889, %v1885, 0.0
    %v1892 = vld [vmem:[#allocation3] sm:$0xf0]
    %v1893 = vld [vmem:[#allocation3 + $0x8] sm:$0xf0]
    %v1894 = vld [vmem:[#allocation3 + $0x10] sm:$0xf0]
    %v1895 = vld [vmem:[#allocation3 + $0x18] sm:$0xf0]
    %v1896 = vpack.c.bf16 %v1890, %v1890
    %1897 = vmatpush.bf16.msra.mxu0 %v1733
    %1898 = vmatpush.bf16.msra.mxu0 %v1729
    %1899 = vmatpush.bf16.msra.mxu0 %v1725
    %1900 = vmatpush.bf16.msra.mxu0 %v1721
    %1901 = vmatpush.bf16.msra.mxu0 %v1717
    %1902 = vmatpush.bf16.msra.mxu0 %v1713
    %1903 = vmatpush.bf16.msra.mxu0 %v1709
    %1904 = vmatpush.bf16.msra.mxu0 %v1705
    %1905 = vmatmul.bf16.gmra.mxu0 %v1896
    %v1906 = vpop.f32.mrf.mxu0
    %v1907 = vadd.f32 0.0, %v1906
    %v1908 = vpop.f32.mrf.mxu0
    %1909 = vdwg.mxu0
    %1910 = vmatpush.bf16.msra.mxu0 %v1734
    %1911 = vmatpush.bf16.msra.mxu0 %v1730
    %1912 = vmatpush.bf16.msra.mxu0 %v1726
    %1913 = vmatpush.bf16.msra.mxu0 %v1722
    %1914 = vmatpush.bf16.msra.mxu0 %v1718
    %1915 = vmatpush.bf16.msra.mxu0 %v1714
    %1916 = vmatpush.bf16.msra.mxu0 %v1710
    %1917 = vmatpush.bf16.msra.mxu0 %v1706
    %1918 = vmatmul.bf16.gmra.mxu0 %v1896
    %v1919 = vpop.f32.mrf.mxu0
    %v1920 = vadd.f32 0.0, %v1919
    %v1921 = vpop.f32.mrf.mxu0
    %1922 = vdwg.mxu0
    %1923 = vmatpush.bf16.msra.mxu0 %v1735
    %1924 = vmatpush.bf16.msra.mxu0 %v1731
    %1925 = vmatpush.bf16.msra.mxu0 %v1727
    %1926 = vmatpush.bf16.msra.mxu0 %v1723
    %1927 = vmatpush.bf16.msra.mxu0 %v1719
    %1928 = vmatpush.bf16.msra.mxu0 %v1715
    %1929 = vmatpush.bf16.msra.mxu0 %v1711
    %1930 = vmatpush.bf16.msra.mxu0 %v1707
    %1931 = vmatmul.bf16.gmra.mxu0 %v1896
    %v1932 = vpop.f32.mrf.mxu0
    %v1933 = vadd.f32 0.0, %v1932
    %v1934 = vpop.f32.mrf.mxu0
    %1935 = vdwg.mxu0
    %1936 = vmatpush.bf16.msra.mxu0 %v1736
    %1937 = vmatpush.bf16.msra.mxu0 %v1732
    %1938 = vmatpush.bf16.msra.mxu0 %v1728
    %1939 = vmatpush.bf16.msra.mxu0 %v1724
    %1940 = vmatpush.bf16.msra.mxu0 %v1720
    %1941 = vmatpush.bf16.msra.mxu0 %v1716
    %1942 = vmatpush.bf16.msra.mxu0 %v1712
    %1943 = vmatpush.bf16.msra.mxu0 %v1708
    %1944 = vmatmul.bf16.gmra.mxu0 %v1896
    %v1945 = vpop.f32.mrf.mxu0
    %v1946 = vadd.f32 0.0, %v1945
    %v1947 = vpop.f32.mrf.mxu0
    %1948 = vdwg.mxu0
    %v1953 = vrot.slane %v1907, 4
    %v1954 = vrot.slane %v1920, 4
    %v1955 = vrot.slane %v1933, 4
    %v1956 = vrot.slane %v1946, 4
    %v1961 = vadd.f32 %v1892, %v1953
    %v1962 = vadd.f32 %v1893, %v1954
    %v1963 = vadd.f32 %v1894, %v1955
    %v1964 = vadd.f32 %v1895, %v1956
    %v1965 = vxor.u32 %v1961, 2147483648
    %v1966 = vxor.u32 %v1962, 2147483648
    %v1967 = vxor.u32 %v1963, 2147483648
    %v1968 = vmul.f32 %v1965, 1.442695
    %v1969 = vpow.pop %v1968
    %v1970 = vmul.f32 %v1966, 1.442695
    %v1971 = vpow.pop %v1970
    %v1972 = vmul.f32 %v1967, 1.442695
    %v1973 = vpow.pop %v1972
    %v1974 = vadd.f32 %v1969, 1.0
    %v1975 = vadd.f32 %v1971, 1.0
    %v1976 = vadd.f32 %v1973, 1.0
    %v1977 = vrcp.pop %v1974
    %v1978 = vmul.f32 %v1974, %v1977
    %v1979 = vsub.f32 1.0, %v1978
    %v1980 = vmul.f32 %v1977, %v1979
    %v1981 = vadd.f32 %v1977, %v1980
    %vm1982 = vweird.f32 %v1974
    %vm1983 = vweird.f32 %v1977
    %vm1984 = vmor %vm1982, %vm1983
    %v1985 = vsel %vm1984, %v1977, %v1981
    %v1986 = vand.u32 2147483647, %v1974
    %vm1987 = vcmp.eq.f32.partialorder %v1986, 8.507059e+37
    %v1988 = vand.u32 %v1974, 2147483648
    %v1989 = vor.u32 1.1754944e-38, %v1988
    %v1990 = vsel %vm1987, %v1989, %v1985
    %v1991 = vmul.f32 1.0, %v1990
    %v1992 = vrcp.pop %v1975
    %v1993 = vmul.f32 %v1975, %v1992
    %v1994 = vsub.f32 1.0, %v1993
    %v1995 = vmul.f32 %v1992, %v1994
    %v1996 = vadd.f32 %v1992, %v1995
    %vm1997 = vweird.f32 %v1975
    %vm1998 = vweird.f32 %v1992
    %vm1999 = vmor %vm1997, %vm1998
    %v2000 = vsel %vm1999, %v1992, %v1996
    %v2001 = vand.u32 2147483647, %v1975
    %vm2002 = vcmp.eq.f32.partialorder %v2001, 8.507059e+37
    %v2003 = vand.u32 %v1975, 2147483648
    %v2004 = vor.u32 1.1754944e-38, %v2003
    %v2005 = vsel %vm2002, %v2004, %v2000
    %v2006 = vmul.f32 1.0, %v2005
    %v2007 = vrcp.pop %v1976
    %v2008 = vmul.f32 %v1976, %v2007
    %v2009 = vsub.f32 1.0, %v2008
    %v2010 = vmul.f32 %v2007, %v2009
    %v2011 = vadd.f32 %v2007, %v2010
    %vm2012 = vweird.f32 %v1976
    %vm2013 = vweird.f32 %v2007
    %vm2014 = vmor %vm2012, %vm2013
    %v2015 = vsel %vm2014, %v2007, %v2011
    %v2016 = vand.u32 2147483647, %v1976
    %vm2017 = vcmp.eq.f32.partialorder %v2016, 8.507059e+37
    %v2018 = vand.u32 %v1976, 2147483648
    %v2019 = vor.u32 1.1754944e-38, %v2018
    %v2020 = vsel %vm2017, %v2019, %v2015
    %v2021 = vmul.f32 1.0, %v2020
    %v2022 = vtanh.pop %v1964
    %v2024 = vrot.slane %v1891, 4
    %v2026 = vmul.f32 %v2006, %v2024
    %v2027 = vmul.f32 %v1991, %v2022
    %v2028 = vadd.f32 %v2026, %v2027
    %v2029 = vtanh.pop %v2028
    %v2030 = vmul.f32 %v2021, %v2029
    %v2031 = vld [vmem:[%s0 + $0x4] sm:$0xf]
    %vm2032 = vcmp.gt.f32.partialorder %v2031, 0.5
    %v2034 = vrot.slane %v2030, 4
    %v2036 = vsel %vm2032, %v2034, %v1890
    %v2038 = vrot.slane %v2028, 4
    %v2040 = vsel %vm2032, %v2038, %v1891
    %2041 = vst [vmem:[#allocation4] sm:$0xf] %v2036
    %v2042 = vld [vmem:[#allocation3 + $0x20] sm:$0xf]
    %v2043 = vld [vmem:[#allocation3 + $0x28] sm:$0xf]
    %v2044 = vld [vmem:[#allocation3 + $0x30] sm:$0xf]
    %v2045 = vld [vmem:[#allocation3 + $0x38] sm:$0xf]
    %v2046 = vpack.c.bf16 %v2036, %v2036
    %v2047 = vld [vmem:[%s7] sm:$0xff]
    %v2048 = vld [vmem:[%s7 + $0x8] sm:$0xff]
    %v2049 = vld [vmem:[%s7 + $0x10] sm:$0xff]
    %v2050 = vld [vmem:[%s7 + $0x18] sm:$0xff]
    %v2051 = vld [vmem:[%s7 + $0x20] sm:$0xff]
    %v2052 = vld [vmem:[%s7 + $0x28] sm:$0xff]
    %v2053 = vld [vmem:[%s7 + $0x30] sm:$0xff]
    %v2054 = vld [vmem:[%s7 + $0x38] sm:$0xff]
    %v2055 = vld [vmem:[%s7 + $0x40] sm:$0xff]
    %v2056 = vld [vmem:[%s7 + $0x48] sm:$0xff]
    %v2057 = vld [vmem:[%s7 + $0x50] sm:$0xff]
    %v2058 = vld [vmem:[%s7 + $0x58] sm:$0xff]
    %v2059 = vld [vmem:[%s7 + $0x60] sm:$0xff]
    %v2060 = vld [vmem:[%s7 + $0x68] sm:$0xff]
    %v2061 = vld [vmem:[%s7 + $0x70] sm:$0xff]
    %v2062 = vld [vmem:[%s7 + $0x78] sm:$0xff]
    %v2063 = vld [vmem:[%s7 + $0x80] sm:$0xff]
    %v2064 = vld [vmem:[%s7 + $0x88] sm:$0xff]
    %v2065 = vld [vmem:[%s7 + $0x90] sm:$0xff]
    %v2066 = vld [vmem:[%s7 + $0x98] sm:$0xff]
    %v2067 = vld [vmem:[%s7 + $0xa0] sm:$0xff]
    %v2068 = vld [vmem:[%s7 + $0xa8] sm:$0xff]
    %v2069 = vld [vmem:[%s7 + $0xb0] sm:$0xff]
    %v2070 = vld [vmem:[%s7 + $0xb8] sm:$0xff]
    %v2071 = vld [vmem:[%s7 + $0xc0] sm:$0xff]
    %v2072 = vld [vmem:[%s7 + $0xc8] sm:$0xff]
    %v2073 = vld [vmem:[%s7 + $0xd0] sm:$0xff]
    %v2074 = vld [vmem:[%s7 + $0xd8] sm:$0xff]
    %v2075 = vld [vmem:[%s7 + $0xe0] sm:$0xff]
    %v2076 = vld [vmem:[%s7 + $0xe8] sm:$0xff]
    %v2077 = vld [vmem:[%s7 + $0xf0] sm:$0xff]
    %v2078 = vld [vmem:[%s7 + $0xf8] sm:$0xff]
    %v2111 = vunpack.c.l.b16 %v2047
    %v2112 = vunpack.c.h.b16 %v2047
    %v2113 = vunpack.c.l.b16 %v2048
    %v2114 = vunpack.c.h.b16 %v2048
    %v2115 = vunpack.c.l.b16 %v2049
    %v2116 = vunpack.c.h.b16 %v2049
    %v2117 = vunpack.c.l.b16 %v2050
    %v2118 = vunpack.c.h.b16 %v2050
    %v2119 = vunpack.c.l.b16 %v2051
    %v2120 = vunpack.c.h.b16 %v2051
    %v2121 = vunpack.c.l.b16 %v2052
    %v2122 = vunpack.c.h.b16 %v2052
    %v2123 = vunpack.c.l.b16 %v2053
    %v2124 = vunpack.c.h.b16 %v2053
    %v2125 = vunpack.c.l.b16 %v2054
    %v2126 = vunpack.c.h.b16 %v2054
    %v2127 = vunpack.c.l.b16 %v2055
    %v2128 = vunpack.c.h.b16 %v2055
    %v2129 = vunpack.c.l.b16 %v2056
    %v2130 = vunpack.c.h.b16 %v2056
    %v2131 = vunpack.c.l.b16 %v2057
    %v2132 = vunpack.c.h.b16 %v2057
    %v2133 = vunpack.c.l.b16 %v2058
    %v2134 = vunpack.c.h.b16 %v2058
    %v2135 = vunpack.c.l.b16 %v2059
    %v2136 = vunpack.c.h.b16 %v2059
    %v2137 = vunpack.c.l.b16 %v2060
    %v2138 = vunpack.c.h.b16 %v2060
    %v2139 = vunpack.c.l.b16 %v2061
    %v2140 = vunpack.c.h.b16 %v2061
    %v2141 = vunpack.c.l.b16 %v2062
    %v2142 = vunpack.c.h.b16 %v2062
    %v2143 = vunpack.c.l.b16 %v2063
    %v2144 = vunpack.c.h.b16 %v2063
    %v2145 = vunpack.c.l.b16 %v2064
    %v2146 = vunpack.c.h.b16 %v2064
    %v2147 = vunpack.c.l.b16 %v2065
    %v2148 = vunpack.c.h.b16 %v2065
    %v2149 = vunpack.c.l.b16 %v2066
    %v2150 = vunpack.c.h.b16 %v2066
    %v2151 = vunpack.c.l.b16 %v2067
    %v2152 = vunpack.c.h.b16 %v2067
    %v2153 = vunpack.c.l.b16 %v2068
    %v2154 = vunpack.c.h.b16 %v2068
    %v2155 = vunpack.c.l.b16 %v2069
    %v2156 = vunpack.c.h.b16 %v2069
    %v2157 = vunpack.c.l.b16 %v2070
    %v2158 = vunpack.c.h.b16 %v2070
    %v2159 = vunpack.c.l.b16 %v2071
    %v2160 = vunpack.c.h.b16 %v2071
    %v2161 = vunpack.c.l.b16 %v2072
    %v2162 = vunpack.c.h.b16 %v2072
    %v2163 = vunpack.c.l.b16 %v2073
    %v2164 = vunpack.c.h.b16 %v2073
    %v2165 = vunpack.c.l.b16 %v2074
    %v2166 = vunpack.c.h.b16 %v2074
    %v2167 = vunpack.c.l.b16 %v2075
    %v2168 = vunpack.c.h.b16 %v2075
    %v2169 = vunpack.c.l.b16 %v2076
    %v2170 = vunpack.c.h.b16 %v2076
    %v2171 = vunpack.c.l.b16 %v2077
    %v2172 = vunpack.c.h.b16 %v2077
    %v2173 = vunpack.c.l.b16 %v2078
    %v2174 = vunpack.c.h.b16 %v2078
    %v2175 = vpack.c.b16 %v2115, %v2111
    %v2176 = vpack.c.b16 %v2116, %v2112
    %v2177 = vpack.c.b16 %v2117, %v2113
    %v2178 = vpack.c.b16 %v2118, %v2114
    %v2179 = vpack.c.b16 %v2123, %v2119
    %v2180 = vpack.c.b16 %v2124, %v2120
    %v2181 = vpack.c.b16 %v2125, %v2121
    %v2182 = vpack.c.b16 %v2126, %v2122
    %v2183 = vpack.c.b16 %v2131, %v2127
    %v2184 = vpack.c.b16 %v2132, %v2128
    %v2185 = vpack.c.b16 %v2133, %v2129
    %v2186 = vpack.c.b16 %v2134, %v2130
    %v2187 = vpack.c.b16 %v2139, %v2135
    %v2188 = vpack.c.b16 %v2140, %v2136
    %v2189 = vpack.c.b16 %v2141, %v2137
    %v2190 = vpack.c.b16 %v2142, %v2138
    %v2191 = vpack.c.b16 %v2147, %v2143
    %v2192 = vpack.c.b16 %v2148, %v2144
    %v2193 = vpack.c.b16 %v2149, %v2145
    %v2194 = vpack.c.b16 %v2150, %v2146
    %v2195 = vpack.c.b16 %v2155, %v2151
    %v2196 = vpack.c.b16 %v2156, %v2152
    %v2197 = vpack.c.b16 %v2157, %v2153
    %v2198 = vpack.c.b16 %v2158, %v2154
    %v2199 = vpack.c.b16 %v2163, %v2159
    %v2200 = vpack.c.b16 %v2164, %v2160
    %v2201 = vpack.c.b16 %v2165, %v2161
    %v2202 = vpack.c.b16 %v2166, %v2162
    %v2203 = vpack.c.b16 %v2171, %v2167
    %v2204 = vpack.c.b16 %v2172, %v2168
    %v2205 = vpack.c.b16 %v2173, %v2169
    %v2206 = vpack.c.b16 %v2174, %v2170
    %2239 = vmatpush.bf16.msra.mxu0 %v2203
    %2240 = vmatpush.bf16.msra.mxu0 %v2199
    %2241 = vmatpush.bf16.msra.mxu0 %v2195
    %2242 = vmatpush.bf16.msra.mxu0 %v2191
    %2243 = vmatpush.bf16.msra.mxu0 %v2187
    %2244 = vmatpush.bf16.msra.mxu0 %v2183
    %2245 = vmatpush.bf16.msra.mxu0 %v2179
    %2246 = vmatpush.bf16.msra.mxu0 %v2175
    %2247 = vmatmul.bf16.gmra.mxu0 %v2046
    %v2248 = vpop.f32.mrf.mxu0
    %v2249 = vadd.f32 0.0, %v2248
    %v2250 = vpop.f32.mrf.mxu0
    %2251 = vdwg.mxu0
    %2252 = vmatpush.bf16.msra.mxu0 %v2204
    %2253 = vmatpush.bf16.msra.mxu0 %v2200
    %2254 = vmatpush.bf16.msra.mxu0 %v2196
    %2255 = vmatpush.bf16.msra.mxu0 %v2192
    %2256 = vmatpush.bf16.msra.mxu0 %v2188
    %2257 = vmatpush.bf16.msra.mxu0 %v2184
    %2258 = vmatpush.bf16.msra.mxu0 %v2180
    %2259 = vmatpush.bf16.msra.mxu0 %v2176
    %2260 = vmatmul.bf16.gmra.mxu0 %v2046
    %v2261 = vpop.f32.mrf.mxu0
    %v2262 = vadd.f32 0.0, %v2261
    %v2263 = vpop.f32.mrf.mxu0
    %2264 = vdwg.mxu0
    %2265 = vmatpush.bf16.msra.mxu0 %v2205
    %2266 = vmatpush.bf16.msra.mxu0 %v2201
    %2267 = vmatpush.bf16.msra.mxu0 %v2197
    %2268 = vmatpush.bf16.msra.mxu0 %v2193
    %2269 = vmatpush.bf16.msra.mxu0 %v2189
    %2270 = vmatpush.bf16.msra.mxu0 %v2185
    %2271 = vmatpush.bf16.msra.mxu0 %v2181
    %2272 = vmatpush.bf16.msra.mxu0 %v2177
    %2273 = vmatmul.bf16.gmra.mxu0 %v2046
    %v2274 = vpop.f32.mrf.mxu0
    %v2275 = vadd.f32 0.0, %v2274
    %v2276 = vpop.f32.mrf.mxu0
    %2277 = vdwg.mxu0
    %2278 = vmatpush.bf16.msra.mxu0 %v2206
    %2279 = vmatpush.bf16.msra.mxu0 %v2202
    %2280 = vmatpush.bf16.msra.mxu0 %v2198
    %2281 = vmatpush.bf16.msra.mxu0 %v2194
    %2282 = vmatpush.bf16.msra.mxu0 %v2190
    %2283 = vmatpush.bf16.msra.mxu0 %v2186
    %2284 = vmatpush.bf16.msra.mxu0 %v2182
    %2285 = vmatpush.bf16.msra.mxu0 %v2178
    %2286 = vmatmul.bf16.gmra.mxu0 %v2046
    %v2287 = vpop.f32.mrf.mxu0
    %v2288 = vadd.f32 0.0, %v2287
    %v2289 = vpop.f32.mrf.mxu0
    %2290 = vdwg.mxu0
    %v2291 = vadd.f32 %v2042, %v2249
    %v2292 = vadd.f32 %v2043, %v2262
    %v2293 = vadd.f32 %v2044, %v2275
    %v2294 = vadd.f32 %v2045, %v2288
    %v2295 = vxor.u32 %v2291, 2147483648
    %v2296 = vxor.u32 %v2292, 2147483648
    %v2297 = vxor.u32 %v2293, 2147483648
    %v2298 = vmul.f32 %v2295, 1.442695
    %v2299 = vpow.pop %v2298
    %v2300 = vmul.f32 %v2296, 1.442695
    %v2301 = vpow.pop %v2300
    %v2302 = vmul.f32 %v2297, 1.442695
    %v2303 = vpow.pop %v2302
    %v2304 = vadd.f32 %v2299, 1.0
    %v2305 = vadd.f32 %v2301, 1.0
    %v2306 = vadd.f32 %v2303, 1.0
    %v2307 = vrcp.pop %v2304
    %v2308 = vmul.f32 %v2304, %v2307
    %v2309 = vsub.f32 1.0, %v2308
    %v2310 = vmul.f32 %v2307, %v2309
    %v2311 = vadd.f32 %v2307, %v2310
    %vm2312 = vweird.f32 %v2304
    %vm2313 = vweird.f32 %v2307
    %vm2314 = vmor %vm2312, %vm2313
    %v2315 = vsel %vm2314, %v2307, %v2311
    %v2316 = vand.u32 2147483647, %v2304
    %vm2317 = vcmp.eq.f32.partialorder %v2316, 8.507059e+37
    %v2318 = vand.u32 %v2304, 2147483648
    %v2319 = vor.u32 1.1754944e-38, %v2318
    %v2320 = vsel %vm2317, %v2319, %v2315
    %v2321 = vmul.f32 1.0, %v2320
    %v2322 = vrcp.pop %v2305
    %v2323 = vmul.f32 %v2305, %v2322
    %v2324 = vsub.f32 1.0, %v2323
    %v2325 = vmul.f32 %v2322, %v2324
    %v2326 = vadd.f32 %v2322, %v2325
    %vm2327 = vweird.f32 %v2305
    %vm2328 = vweird.f32 %v2322
    %vm2329 = vmor %vm2327, %vm2328
    %v2330 = vsel %vm2329, %v2322, %v2326
    %v2331 = vand.u32 2147483647, %v2305
    %vm2332 = vcmp.eq.f32.partialorder %v2331, 8.507059e+37
    %v2333 = vand.u32 %v2305, 2147483648
    %v2334 = vor.u32 1.1754944e-38, %v2333
    %v2335 = vsel %vm2332, %v2334, %v2330
    %v2336 = vmul.f32 1.0, %v2335
    %v2337 = vrcp.pop %v2306
    %v2338 = vmul.f32 %v2306, %v2337
    %v2339 = vsub.f32 1.0, %v2338
    %v2340 = vmul.f32 %v2337, %v2339
    %v2341 = vadd.f32 %v2337, %v2340
    %vm2342 = vweird.f32 %v2306
    %vm2343 = vweird.f32 %v2337
    %vm2344 = vmor %vm2342, %vm2343
    %v2345 = vsel %vm2344, %v2337, %v2341
    %v2346 = vand.u32 2147483647, %v2306
    %vm2347 = vcmp.eq.f32.partialorder %v2346, 8.507059e+37
    %v2348 = vand.u32 %v2306, 2147483648
    %v2349 = vor.u32 1.1754944e-38, %v2348
    %v2350 = vsel %vm2347, %v2349, %v2345
    %v2351 = vmul.f32 1.0, %v2350
    %v2352 = vtanh.pop %v2294
    %v2353 = vmul.f32 %v2336, %v2040
    %v2354 = vmul.f32 %v2321, %v2352
    %v2355 = vadd.f32 %v2353, %v2354
    %v2356 = vtanh.pop %v2355
    %v2357 = vmul.f32 %v2351, %v2356
    %v2358 = vld [vmem:[%s0 + $0x8] sm:$0xf]
    %vm2359 = vcmp.gt.f32.partialorder %v2358, 0.5
    %v2360 = vsel %vm2359, %v2357, %v2036
    %v2361 = vsel %vm2359, %v2355, %v2040
    %2362 = vst [vmem:[#allocation4 + $0x4] sm:$0xf] %v2360
    %v2363 = vld [vmem:[#allocation3 + $0x20] sm:$0xf0]
    %v2364 = vld [vmem:[#allocation3 + $0x28] sm:$0xf0]
    %v2365 = vld [vmem:[#allocation3 + $0x30] sm:$0xf0]
    %v2366 = vld [vmem:[#allocation3 + $0x38] sm:$0xf0]
    %v2367 = vpack.c.bf16 %v2360, %v2360
    %v2368 = vld [vmem:[%s7] sm:$0xff]
    %v2369 = vld [vmem:[%s7 + $0x8] sm:$0xff]
    %v2370 = vld [vmem:[%s7 + $0x10] sm:$0xff]
    %v2371 = vld [vmem:[%s7 + $0x18] sm:$0xff]
    %v2372 = vld [vmem:[%s7 + $0x20] sm:$0xff]
    %v2373 = vld [vmem:[%s7 + $0x28] sm:$0xff]
    %v2374 = vld [vmem:[%s7 + $0x30] sm:$0xff]
    %v2375 = vld [vmem:[%s7 + $0x38] sm:$0xff]
    %v2376 = vld [vmem:[%s7 + $0x40] sm:$0xff]
    %v2377 = vld [vmem:[%s7 + $0x48] sm:$0xff]
    %v2378 = vld [vmem:[%s7 + $0x50] sm:$0xff]
    %v2379 = vld [vmem:[%s7 + $0x58] sm:$0xff]
    %v2380 = vld [vmem:[%s7 + $0x60] sm:$0xff]
    %v2381 = vld [vmem:[%s7 + $0x68] sm:$0xff]
    %v2382 = vld [vmem:[%s7 + $0x70] sm:$0xff]
    %v2383 = vld [vmem:[%s7 + $0x78] sm:$0xff]
    %v2384 = vld [vmem:[%s7 + $0x80] sm:$0xff]
    %v2385 = vld [vmem:[%s7 + $0x88] sm:$0xff]
    %v2386 = vld [vmem:[%s7 + $0x90] sm:$0xff]
    %v2387 = vld [vmem:[%s7 + $0x98] sm:$0xff]
    %v2388 = vld [vmem:[%s7 + $0xa0] sm:$0xff]
    %v2389 = vld [vmem:[%s7 + $0xa8] sm:$0xff]
    %v2390 = vld [vmem:[%s7 + $0xb0] sm:$0xff]
    %v2391 = vld [vmem:[%s7 + $0xb8] sm:$0xff]
    %v2392 = vld [vmem:[%s7 + $0xc0] sm:$0xff]
    %v2393 = vld [vmem:[%s7 + $0xc8] sm:$0xff]
    %v2394 = vld [vmem:[%s7 + $0xd0] sm:$0xff]
    %v2395 = vld [vmem:[%s7 + $0xd8] sm:$0xff]
    %v2396 = vld [vmem:[%s7 + $0xe0] sm:$0xff]
    %v2397 = vld [vmem:[%s7 + $0xe8] sm:$0xff]
    %v2398 = vld [vmem:[%s7 + $0xf0] sm:$0xff]
    %v2399 = vld [vmem:[%s7 + $0xf8] sm:$0xff]
    %v2432 = vunpack.c.l.b16 %v2368
    %v2433 = vunpack.c.h.b16 %v2368
    %v2434 = vunpack.c.l.b16 %v2369
    %v2435 = vunpack.c.h.b16 %v2369
    %v2436 = vunpack.c.l.b16 %v2370
    %v2437 = vunpack.c.h.b16 %v2370
    %v2438 = vunpack.c.l.b16 %v2371
    %v2439 = vunpack.c.h.b16 %v2371
    %v2440 = vunpack.c.l.b16 %v2372
    %v2441 = vunpack.c.h.b16 %v2372
    %v2442 = vunpack.c.l.b16 %v2373
    %v2443 = vunpack.c.h.b16 %v2373
    %v2444 = vunpack.c.l.b16 %v2374
    %v2445 = vunpack.c.h.b16 %v2374
    %v2446 = vunpack.c.l.b16 %v2375
    %v2447 = vunpack.c.h.b16 %v2375
    %v2448 = vunpack.c.l.b16 %v2376
    %v2449 = vunpack.c.h.b16 %v2376
    %v2450 = vunpack.c.l.b16 %v2377
    %v2451 = vunpack.c.h.b16 %v2377
    %v2452 = vunpack.c.l.b16 %v2378
    %v2453 = vunpack.c.h.b16 %v2378
    %v2454 = vunpack.c.l.b16 %v2379
    %v2455 = vunpack.c.h.b16 %v2379
    %v2456 = vunpack.c.l.b16 %v2380
    %v2457 = vunpack.c.h.b16 %v2380
    %v2458 = vunpack.c.l.b16 %v2381
    %v2459 = vunpack.c.h.b16 %v2381
    %v2460 = vunpack.c.l.b16 %v2382
    %v2461 = vunpack.c.h.b16 %v2382
    %v2462 = vunpack.c.l.b16 %v2383
    %v2463 = vunpack.c.h.b16 %v2383
    %v2464 = vunpack.c.l.b16 %v2384
    %v2465 = vunpack.c.h.b16 %v2384
    %v2466 = vunpack.c.l.b16 %v2385
    %v2467 = vunpack.c.h.b16 %v2385
    %v2468 = vunpack.c.l.b16 %v2386
    %v2469 = vunpack.c.h.b16 %v2386
    %v2470 = vunpack.c.l.b16 %v2387
    %v2471 = vunpack.c.h.b16 %v2387
    %v2472 = vunpack.c.l.b16 %v2388
    %v2473 = vunpack.c.h.b16 %v2388
    %v2474 = vunpack.c.l.b16 %v2389
    %v2475 = vunpack.c.h.b16 %v2389
    %v2476 = vunpack.c.l.b16 %v2390
    %v2477 = vunpack.c.h.b16 %v2390
    %v2478 = vunpack.c.l.b16 %v2391
    %v2479 = vunpack.c.h.b16 %v2391
    %v2480 = vunpack.c.l.b16 %v2392
    %v2481 = vunpack.c.h.b16 %v2392
    %v2482 = vunpack.c.l.b16 %v2393
    %v2483 = vunpack.c.h.b16 %v2393
    %v2484 = vunpack.c.l.b16 %v2394
    %v2485 = vunpack.c.h.b16 %v2394
    %v2486 = vunpack.c.l.b16 %v2395
    %v2487 = vunpack.c.h.b16 %v2395
    %v2488 = vunpack.c.l.b16 %v2396
    %v2489 = vunpack.c.h.b16 %v2396
    %v2490 = vunpack.c.l.b16 %v2397
    %v2491 = vunpack.c.h.b16 %v2397
    %v2492 = vunpack.c.l.b16 %v2398
    %v2493 = vunpack.c.h.b16 %v2398
    %v2494 = vunpack.c.l.b16 %v2399
    %v2495 = vunpack.c.h.b16 %v2399
    %v2496 = vpack.c.b16 %v2436, %v2432
    %v2497 = vpack.c.b16 %v2437, %v2433
    %v2498 = vpack.c.b16 %v2438, %v2434
    %v2499 = vpack.c.b16 %v2439, %v2435
    %v2500 = vpack.c.b16 %v2444, %v2440
    %v2501 = vpack.c.b16 %v2445, %v2441
    %v2502 = vpack.c.b16 %v2446, %v2442
    %v2503 = vpack.c.b16 %v2447, %v2443
    %v2504 = vpack.c.b16 %v2452, %v2448
    %v2505 = vpack.c.b16 %v2453, %v2449
    %v2506 = vpack.c.b16 %v2454, %v2450
    %v2507 = vpack.c.b16 %v2455, %v2451
    %v2508 = vpack.c.b16 %v2460, %v2456
    %v2509 = vpack.c.b16 %v2461, %v2457
    %v2510 = vpack.c.b16 %v2462, %v2458
    %v2511 = vpack.c.b16 %v2463, %v2459
    %v2512 = vpack.c.b16 %v2468, %v2464
    %v2513 = vpack.c.b16 %v2469, %v2465
    %v2514 = vpack.c.b16 %v2470, %v2466
    %v2515 = vpack.c.b16 %v2471, %v2467
    %v2516 = vpack.c.b16 %v2476, %v2472
    %v2517 = vpack.c.b16 %v2477, %v2473
    %v2518 = vpack.c.b16 %v2478, %v2474
    %v2519 = vpack.c.b16 %v2479, %v2475
    %v2520 = vpack.c.b16 %v2484, %v2480
    %v2521 = vpack.c.b16 %v2485, %v2481
    %v2522 = vpack.c.b16 %v2486, %v2482
    %v2523 = vpack.c.b16 %v2487, %v2483
    %v2524 = vpack.c.b16 %v2492, %v2488
    %v2525 = vpack.c.b16 %v2493, %v2489
    %v2526 = vpack.c.b16 %v2494, %v2490
    %v2527 = vpack.c.b16 %v2495, %v2491
    %2560 = vmatpush.bf16.msra.mxu0 %v2524
    %2561 = vmatpush.bf16.msra.mxu0 %v2520
    %2562 = vmatpush.bf16.msra.mxu0 %v2516
    %2563 = vmatpush.bf16.msra.mxu0 %v2512
    %2564 = vmatpush.bf16.msra.mxu0 %v2508
    %2565 = vmatpush.bf16.msra.mxu0 %v2504
    %2566 = vmatpush.bf16.msra.mxu0 %v2500
    %2567 = vmatpush.bf16.msra.mxu0 %v2496
    %2568 = vmatmul.bf16.gmra.mxu0 %v2367
    %v2569 = vpop.f32.mrf.mxu0
    %v2570 = vadd.f32 0.0, %v2569
    %v2571 = vpop.f32.mrf.mxu0
    %2572 = vdwg.mxu0
    %2573 = vmatpush.bf16.msra.mxu0 %v2525
    %2574 = vmatpush.bf16.msra.mxu0 %v2521
    %2575 = vmatpush.bf16.msra.mxu0 %v2517
    %2576 = vmatpush.bf16.msra.mxu0 %v2513
    %2577 = vmatpush.bf16.msra.mxu0 %v2509
    %2578 = vmatpush.bf16.msra.mxu0 %v2505
    %2579 = vmatpush.bf16.msra.mxu0 %v2501
    %2580 = vmatpush.bf16.msra.mxu0 %v2497
    %2581 = vmatmul.bf16.gmra.mxu0 %v2367
    %v2582 = vpop.f32.mrf.mxu0
    %v2583 = vadd.f32 0.0, %v2582
    %v2584 = vpop.f32.mrf.mxu0
    %2585 = vdwg.mxu0
    %2586 = vmatpush.bf16.msra.mxu0 %v2526
    %2587 = vmatpush.bf16.msra.mxu0 %v2522
    %2588 = vmatpush.bf16.msra.mxu0 %v2518
    %2589 = vmatpush.bf16.msra.mxu0 %v2514
    %2590 = vmatpush.bf16.msra.mxu0 %v2510
    %2591 = vmatpush.bf16.msra.mxu0 %v2506
    %2592 = vmatpush.bf16.msra.mxu0 %v2502
    %2593 = vmatpush.bf16.msra.mxu0 %v2498
    %2594 = vmatmul.bf16.gmra.mxu0 %v2367
    %v2595 = vpop.f32.mrf.mxu0
    %v2596 = vadd.f32 0.0, %v2595
    %v2597 = vpop.f32.mrf.mxu0
    %2598 = vdwg.mxu0
    %2599 = vmatpush.bf16.msra.mxu0 %v2527
    %2600 = vmatpush.bf16.msra.mxu0 %v2523
    %2601 = vmatpush.bf16.msra.mxu0 %v2519
    %2602 = vmatpush.bf16.msra.mxu0 %v2515
    %2603 = vmatpush.bf16.msra.mxu0 %v2511
    %2604 = vmatpush.bf16.msra.mxu0 %v2507
    %2605 = vmatpush.bf16.msra.mxu0 %v2503
    %2606 = vmatpush.bf16.msra.mxu0 %v2499
    %2607 = vmatmul.bf16.gmra.mxu0 %v2367
    %v2608 = vpop.f32.mrf.mxu0
    %v2609 = vadd.f32 0.0, %v2608
    %v2610 = vpop.f32.mrf.mxu0
    %2611 = vdwg.mxu0
    %v2616 = vrot.slane %v2570, 4
    %v2617 = vrot.slane %v2583, 4
    %v2618 = vrot.slane %v2596, 4
    %v2619 = vrot.slane %v2609, 4
    %v2624 = vadd.f32 %v2363, %v2616
    %v2625 = vadd.f32 %v2364, %v2617
    %v2626 = vadd.f32 %v2365, %v2618
    %v2627 = vadd.f32 %v2366, %v2619
    %v2628 = vxor.u32 %v2624, 2147483648
    %v2629 = vxor.u32 %v2625, 2147483648
    %v2630 = vxor.u32 %v2626, 2147483648
    %v2631 = vmul.f32 %v2628, 1.442695
    %v2632 = vpow.pop %v2631
    %v2633 = vmul.f32 %v2629, 1.442695
    %v2634 = vpow.pop %v2633
    %v2635 = vmul.f32 %v2630, 1.442695
    %v2636 = vpow.pop %v2635
    %v2637 = vadd.f32 %v2632, 1.0
    %v2638 = vadd.f32 %v2634, 1.0
    %v2639 = vadd.f32 %v2636, 1.0
    %v2640 = vrcp.pop %v2637
    %v2641 = vmul.f32 %v2637, %v2640
    %v2642 = vsub.f32 1.0, %v2641
    %v2643 = vmul.f32 %v2640, %v2642
    %v2644 = vadd.f32 %v2640, %v2643
    %vm2645 = vweird.f32 %v2637
    %vm2646 = vweird.f32 %v2640
    %vm2647 = vmor %vm2645, %vm2646
    %v2648 = vsel %vm2647, %v2640, %v2644
    %v2649 = vand.u32 2147483647, %v2637
    %vm2650 = vcmp.eq.f32.partialorder %v2649, 8.507059e+37
    %v2651 = vand.u32 %v2637, 2147483648
    %v2652 = vor.u32 1.1754944e-38, %v2651
    %v2653 = vsel %vm2650, %v2652, %v2648
    %v2654 = vmul.f32 1.0, %v2653
    %v2655 = vrcp.pop %v2638
    %v2656 = vmul.f32 %v2638, %v2655
    %v2657 = vsub.f32 1.0, %v2656
    %v2658 = vmul.f32 %v2655, %v2657
    %v2659 = vadd.f32 %v2655, %v2658
    %vm2660 = vweird.f32 %v2638
    %vm2661 = vweird.f32 %v2655
    %vm2662 = vmor %vm2660, %vm2661
    %v2663 = vsel %vm2662, %v2655, %v2659
    %v2664 = vand.u32 2147483647, %v2638
    %vm2665 = vcmp.eq.f32.partialorder %v2664, 8.507059e+37
    %v2666 = vand.u32 %v2638, 2147483648
    %v2667 = vor.u32 1.1754944e-38, %v2666
    %v2668 = vsel %vm2665, %v2667, %v2663
    %v2669 = vmul.f32 1.0, %v2668
    %v2670 = vrcp.pop %v2639
    %v2671 = vmul.f32 %v2639, %v2670
    %v2672 = vsub.f32 1.0, %v2671
    %v2673 = vmul.f32 %v2670, %v2672
    %v2674 = vadd.f32 %v2670, %v2673
    %vm2675 = vweird.f32 %v2639
    %vm2676 = vweird.f32 %v2670
    %vm2677 = vmor %vm2675, %vm2676
    %v2678 = vsel %vm2677, %v2670, %v2674
    %v2679 = vand.u32 2147483647, %v2639
    %vm2680 = vcmp.eq.f32.partialorder %v2679, 8.507059e+37
    %v2681 = vand.u32 %v2639, 2147483648
    %v2682 = vor.u32 1.1754944e-38, %v2681
    %v2683 = vsel %vm2680, %v2682, %v2678
    %v2684 = vmul.f32 1.0, %v2683
    %v2685 = vtanh.pop %v2627
    %v2687 = vrot.slane %v2361, 4
    %v2689 = vmul.f32 %v2669, %v2687
    %v2690 = vmul.f32 %v2654, %v2685
    %v2691 = vadd.f32 %v2689, %v2690
    %v2692 = vtanh.pop %v2691
    %v2693 = vmul.f32 %v2684, %v2692
    %v2694 = vld [vmem:[%s0 + $0xc] sm:$0xf]
    %vm2695 = vcmp.gt.f32.partialorder %v2694, 0.5
    %v2697 = vrot.slane %v2693, 4
    %v2699 = vsel %vm2695, %v2697, %v2360
    %v2701 = vrot.slane %v2691, 4
    %v2703 = vsel %vm2695, %v2701, %v2361
    %2704 = vst [vmem:[#allocation4 + $0x8] sm:$0xf] %v2699
    %v2705 = vld [vmem:[#allocation3 + $0x40] sm:$0xf]
    %v2706 = vld [vmem:[#allocation3 + $0x48] sm:$0xf]
    %v2707 = vld [vmem:[#allocation3 + $0x50] sm:$0xf]
    %v2708 = vld [vmem:[#allocation3 + $0x58] sm:$0xf]
    %v2709 = vpack.c.bf16 %v2699, %v2699
    %v2710 = vld [vmem:[%s7] sm:$0xff]
    %v2711 = vld [vmem:[%s7 + $0x8] sm:$0xff]
    %v2712 = vld [vmem:[%s7 + $0x10] sm:$0xff]
    %v2713 = vld [vmem:[%s7 + $0x18] sm:$0xff]
    %v2714 = vld [vmem:[%s7 + $0x20] sm:$0xff]
    %v2715 = vld [vmem:[%s7 + $0x28] sm:$0xff]
    %v2716 = vld [vmem:[%s7 + $0x30] sm:$0xff]
    %v2717 = vld [vmem:[%s7 + $0x38] sm:$0xff]
    %v2718 = vld [vmem:[%s7 + $0x40] sm:$0xff]
    %v2719 = vld [vmem:[%s7 + $0x48] sm:$0xff]
    %v2720 = vld [vmem:[%s7 + $0x50] sm:$0xff]
    %v2721 = vld [vmem:[%s7 + $0x58] sm:$0xff]
    %v2722 = vld [vmem:[%s7 + $0x60] sm:$0xff]
    %v2723 = vld [vmem:[%s7 + $0x68] sm:$0xff]
    %v2724 = vld [vmem:[%s7 + $0x70] sm:$0xff]
    %v2725 = vld [vmem:[%s7 + $0x78] sm:$0xff]
    %v2726 = vld [vmem:[%s7 + $0x80] sm:$0xff]
    %v2727 = vld [vmem:[%s7 + $0x88] sm:$0xff]
    %v2728 = vld [vmem:[%s7 + $0x90] sm:$0xff]
    %v2729 = vld [vmem:[%s7 + $0x98] sm:$0xff]
    %v2730 = vld [vmem:[%s7 + $0xa0] sm:$0xff]
    %v2731 = vld [vmem:[%s7 + $0xa8] sm:$0xff]
    %v2732 = vld [vmem:[%s7 + $0xb0] sm:$0xff]
    %v2733 = vld [vmem:[%s7 + $0xb8] sm:$0xff]
    %v2734 = vld [vmem:[%s7 + $0xc0] sm:$0xff]
    %v2735 = vld [vmem:[%s7 + $0xc8] sm:$0xff]
    %v2736 = vld [vmem:[%s7 + $0xd0] sm:$0xff]
    %v2737 = vld [vmem:[%s7 + $0xd8] sm:$0xff]
    %v2738 = vld [vmem:[%s7 + $0xe0] sm:$0xff]
    %v2739 = vld [vmem:[%s7 + $0xe8] sm:$0xff]
    %v2740 = vld [vmem:[%s7 + $0xf0] sm:$0xff]
    %v2741 = vld [vmem:[%s7 + $0xf8] sm:$0xff]
    %v2774 = vunpack.c.l.b16 %v2710
    %v2775 = vunpack.c.h.b16 %v2710
    %v2776 = vunpack.c.l.b16 %v2711
    %v2777 = vunpack.c.h.b16 %v2711
    %v2778 = vunpack.c.l.b16 %v2712
    %v2779 = vunpack.c.h.b16 %v2712
    %v2780 = vunpack.c.l.b16 %v2713
    %v2781 = vunpack.c.h.b16 %v2713
    %v2782 = vunpack.c.l.b16 %v2714
    %v2783 = vunpack.c.h.b16 %v2714
    %v2784 = vunpack.c.l.b16 %v2715
    %v2785 = vunpack.c.h.b16 %v2715
    %v2786 = vunpack.c.l.b16 %v2716
    %v2787 = vunpack.c.h.b16 %v2716
    %v2788 = vunpack.c.l.b16 %v2717
    %v2789 = vunpack.c.h.b16 %v2717
    %v2790 = vunpack.c.l.b16 %v2718
    %v2791 = vunpack.c.h.b16 %v2718
    %v2792 = vunpack.c.l.b16 %v2719
    %v2793 = vunpack.c.h.b16 %v2719
    %v2794 = vunpack.c.l.b16 %v2720
    %v2795 = vunpack.c.h.b16 %v2720
    %v2796 = vunpack.c.l.b16 %v2721
    %v2797 = vunpack.c.h.b16 %v2721
    %v2798 = vunpack.c.l.b16 %v2722
    %v2799 = vunpack.c.h.b16 %v2722
    %v2800 = vunpack.c.l.b16 %v2723
    %v2801 = vunpack.c.h.b16 %v2723
    %v2802 = vunpack.c.l.b16 %v2724
    %v2803 = vunpack.c.h.b16 %v2724
    %v2804 = vunpack.c.l.b16 %v2725
    %v2805 = vunpack.c.h.b16 %v2725
    %v2806 = vunpack.c.l.b16 %v2726
    %v2807 = vunpack.c.h.b16 %v2726
    %v2808 = vunpack.c.l.b16 %v2727
    %v2809 = vunpack.c.h.b16 %v2727
    %v2810 = vunpack.c.l.b16 %v2728
    %v2811 = vunpack.c.h.b16 %v2728
    %v2812 = vunpack.c.l.b16 %v2729
    %v2813 = vunpack.c.h.b16 %v2729
    %v2814 = vunpack.c.l.b16 %v2730
    %v2815 = vunpack.c.h.b16 %v2730
    %v2816 = vunpack.c.l.b16 %v2731
    %v2817 = vunpack.c.h.b16 %v2731
    %v2818 = vunpack.c.l.b16 %v2732
    %v2819 = vunpack.c.h.b16 %v2732
    %v2820 = vunpack.c.l.b16 %v2733
    %v2821 = vunpack.c.h.b16 %v2733
    %v2822 = vunpack.c.l.b16 %v2734
    %v2823 = vunpack.c.h.b16 %v2734
    %v2824 = vunpack.c.l.b16 %v2735
    %v2825 = vunpack.c.h.b16 %v2735
    %v2826 = vunpack.c.l.b16 %v2736
    %v2827 = vunpack.c.h.b16 %v2736
    %v2828 = vunpack.c.l.b16 %v2737
    %v2829 = vunpack.c.h.b16 %v2737
    %v2830 = vunpack.c.l.b16 %v2738
    %v2831 = vunpack.c.h.b16 %v2738
    %v2832 = vunpack.c.l.b16 %v2739
    %v2833 = vunpack.c.h.b16 %v2739
    %v2834 = vunpack.c.l.b16 %v2740
    %v2835 = vunpack.c.h.b16 %v2740
    %v2836 = vunpack.c.l.b16 %v2741
    %v2837 = vunpack.c.h.b16 %v2741
    %v2838 = vpack.c.b16 %v2778, %v2774
    %v2839 = vpack.c.b16 %v2779, %v2775
    %v2840 = vpack.c.b16 %v2780, %v2776
    %v2841 = vpack.c.b16 %v2781, %v2777
    %v2842 = vpack.c.b16 %v2786, %v2782
    %v2843 = vpack.c.b16 %v2787, %v2783
    %v2844 = vpack.c.b16 %v2788, %v2784
    %v2845 = vpack.c.b16 %v2789, %v2785
    %v2846 = vpack.c.b16 %v2794, %v2790
    %v2847 = vpack.c.b16 %v2795, %v2791
    %v2848 = vpack.c.b16 %v2796, %v2792
    %v2849 = vpack.c.b16 %v2797, %v2793
    %v2850 = vpack.c.b16 %v2802, %v2798
    %v2851 = vpack.c.b16 %v2803, %v2799
    %v2852 = vpack.c.b16 %v2804, %v2800
    %v2853 = vpack.c.b16 %v2805, %v2801
    %v2854 = vpack.c.b16 %v2810, %v2806
    %v2855 = vpack.c.b16 %v2811, %v2807
    %v2856 = vpack.c.b16 %v2812, %v2808
    %v2857 = vpack.c.b16 %v2813, %v2809
    %v2858 = vpack.c.b16 %v2818, %v2814
    %v2859 = vpack.c.b16 %v2819, %v2815
    %v2860 = vpack.c.b16 %v2820, %v2816
    %v2861 = vpack.c.b16 %v2821, %v2817
    %v2862 = vpack.c.b16 %v2826, %v2822
    %v2863 = vpack.c.b16 %v2827, %v2823
    %v2864 = vpack.c.b16 %v2828, %v2824
    %v2865 = vpack.c.b16 %v2829, %v2825
    %v2866 = vpack.c.b16 %v2834, %v2830
    %v2867 = vpack.c.b16 %v2835, %v2831
    %v2868 = vpack.c.b16 %v2836, %v2832
    %v2869 = vpack.c.b16 %v2837, %v2833
    %2902 = vmatpush.bf16.msra.mxu0 %v2866
    %2903 = vmatpush.bf16.msra.mxu0 %v2862
    %2904 = vmatpush.bf16.msra.mxu0 %v2858
    %2905 = vmatpush.bf16.msra.mxu0 %v2854
    %2906 = vmatpush.bf16.msra.mxu0 %v2850
    %2907 = vmatpush.bf16.msra.mxu0 %v2846
    %2908 = vmatpush.bf16.msra.mxu0 %v2842
    %2909 = vmatpush.bf16.msra.mxu0 %v2838
    %2910 = vmatmul.bf16.gmra.mxu0 %v2709
    %v2911 = vpop.f32.mrf.mxu0
    %v2912 = vadd.f32 0.0, %v2911
    %v2913 = vpop.f32.mrf.mxu0
    %2914 = vdwg.mxu0
    %2915 = vmatpush.bf16.msra.mxu0 %v2867
    %2916 = vmatpush.bf16.msra.mxu0 %v2863
    %2917 = vmatpush.bf16.msra.mxu0 %v2859
    %2918 = vmatpush.bf16.msra.mxu0 %v2855
    %2919 = vmatpush.bf16.msra.mxu0 %v2851
    %2920 = vmatpush.bf16.msra.mxu0 %v2847
    %2921 = vmatpush.bf16.msra.mxu0 %v2843
    %2922 = vmatpush.bf16.msra.mxu0 %v2839
    %2923 = vmatmul.bf16.gmra.mxu0 %v2709
    %v2924 = vpop.f32.mrf.mxu0
    %v2925 = vadd.f32 0.0, %v2924
    %v2926 = vpop.f32.mrf.mxu0
    %2927 = vdwg.mxu0
    %2928 = vmatpush.bf16.msra.mxu0 %v2868
    %2929 = vmatpush.bf16.msra.mxu0 %v2864
    %2930 = vmatpush.bf16.msra.mxu0 %v2860
    %2931 = vmatpush.bf16.msra.mxu0 %v2856
    %2932 = vmatpush.bf16.msra.mxu0 %v2852
    %2933 = vmatpush.bf16.msra.mxu0 %v2848
    %2934 = vmatpush.bf16.msra.mxu0 %v2844
    %2935 = vmatpush.bf16.msra.mxu0 %v2840
    %2936 = vmatmul.bf16.gmra.mxu0 %v2709
    %v2937 = vpop.f32.mrf.mxu0
    %v2938 = vadd.f32 0.0, %v2937
    %v2939 = vpop.f32.mrf.mxu0
    %2940 = vdwg.mxu0
    %2941 = vmatpush.bf16.msra.mxu0 %v2869
    %2942 = vmatpush.bf16.msra.mxu0 %v2865
    %2943 = vmatpush.bf16.msra.mxu0 %v2861
    %2944 = vmatpush.bf16.msra.mxu0 %v2857
    %2945 = vmatpush.bf16.msra.mxu0 %v2853
    %2946 = vmatpush.bf16.msra.mxu0 %v2849
    %2947 = vmatpush.bf16.msra.mxu0 %v2845
    %2948 = vmatpush.bf16.msra.mxu0 %v2841
    %2949 = vmatmul.bf16.gmra.mxu0 %v2709
    %v2950 = vpop.f32.mrf.mxu0
    %v2951 = vadd.f32 0.0, %v2950
    %v2952 = vpop.f32.mrf.mxu0
    %2953 = vdwg.mxu0
    %v2954 = vadd.f32 %v2705, %v2912
    %v2955 = vadd.f32 %v2706, %v2925
    %v2956 = vadd.f32 %v2707, %v2938
    %v2957 = vadd.f32 %v2708, %v2951
    %v2958 = vxor.u32 %v2954, 2147483648
    %v2959 = vxor.u32 %v2955, 2147483648
    %v2960 = vxor.u32 %v2956, 2147483648
    %v2961 = vmul.f32 %v2958, 1.442695
    %v2962 = vpow.pop %v2961
    %v2963 = vmul.f32 %v2959, 1.442695
    %v2964 = vpow.pop %v2963
    %v2965 = vmul.f32 %v2960, 1.442695
    %v2966 = vpow.pop %v2965
    %v2967 = vadd.f32 %v2962, 1.0
    %v2968 = vadd.f32 %v2964, 1.0
    %v2969 = vadd.f32 %v2966, 1.0
    %v2970 = vrcp.pop %v2967
    %v2971 = vmul.f32 %v2967, %v2970
    %v2972 = vsub.f32 1.0, %v2971
    %v2973 = vmul.f32 %v2970, %v2972
    %v2974 = vadd.f32 %v2970, %v2973
    %vm2975 = vweird.f32 %v2967
    %vm2976 = vweird.f32 %v2970
    %vm2977 = vmor %vm2975, %vm2976
    %v2978 = vsel %vm2977, %v2970, %v2974
    %v2979 = vand.u32 2147483647, %v2967
    %vm2980 = vcmp.eq.f32.partialorder %v2979, 8.507059e+37
    %v2981 = vand.u32 %v2967, 2147483648
    %v2982 = vor.u32 1.1754944e-38, %v2981
    %v2983 = vsel %vm2980, %v2982, %v2978
    %v2984 = vmul.f32 1.0, %v2983
    %v2985 = vrcp.pop %v2968
    %v2986 = vmul.f32 %v2968, %v2985
    %v2987 = vsub.f32 1.0, %v2986
    %v2988 = vmul.f32 %v2985, %v2987
    %v2989 = vadd.f32 %v2985, %v2988
    %vm2990 = vweird.f32 %v2968
    %vm2991 = vweird.f32 %v2985
    %vm2992 = vmor %vm2990, %vm2991
    %v2993 = vsel %vm2992, %v2985, %v2989
    %v2994 = vand.u32 2147483647, %v2968
    %vm2995 = vcmp.eq.f32.partialorder %v2994, 8.507059e+37
    %v2996 = vand.u32 %v2968, 2147483648
    %v2997 = vor.u32 1.1754944e-38, %v2996
    %v2998 = vsel %vm2995, %v2997, %v2993
    %v2999 = vmul.f32 1.0, %v2998
    %v3000 = vrcp.pop %v2969
    %v3001 = vmul.f32 %v2969, %v3000
    %v3002 = vsub.f32 1.0, %v3001
    %v3003 = vmul.f32 %v3000, %v3002
    %v3004 = vadd.f32 %v3000, %v3003
    %vm3005 = vweird.f32 %v2969
    %vm3006 = vweird.f32 %v3000
    %vm3007 = vmor %vm3005, %vm3006
    %v3008 = vsel %vm3007, %v3000, %v3004
    %v3009 = vand.u32 2147483647, %v2969
    %vm3010 = vcmp.eq.f32.partialorder %v3009, 8.507059e+37
    %v3011 = vand.u32 %v2969, 2147483648
    %v3012 = vor.u32 1.1754944e-38, %v3011
    %v3013 = vsel %vm3010, %v3012, %v3008
    %v3014 = vmul.f32 1.0, %v3013
    %v3015 = vtanh.pop %v2957
    %v3016 = vmul.f32 %v2999, %v2703
    %v3017 = vmul.f32 %v2984, %v3015
    %v3018 = vadd.f32 %v3016, %v3017
    %v3019 = vtanh.pop %v3018
    %v3020 = vmul.f32 %v3014, %v3019
    %v3021 = vld [vmem:[%s0 + $0x10] sm:$0xf]
    %vm3022 = vcmp.gt.f32.partialorder %v3021, 0.5
    %v3023 = vsel %vm3022, %v3020, %v2699
    %v3024 = vsel %vm3022, %v3018, %v2703
    %3025 = vst [vmem:[#allocation4 + $0xc] sm:$0xf] %v3023
    %v3026 = vld [vmem:[#allocation3 + $0x40] sm:$0xf0]
    %v3027 = vld [vmem:[#allocation3 + $0x48] sm:$0xf0]
    %v3028 = vld [vmem:[#allocation3 + $0x50] sm:$0xf0]
    %v3029 = vld [vmem:[#allocation3 + $0x58] sm:$0xf0]
    %v3030 = vpack.c.bf16 %v3023, %v3023
    %v3031 = vld [vmem:[%s7] sm:$0xff]
    %v3032 = vld [vmem:[%s7 + $0x8] sm:$0xff]
    %v3033 = vld [vmem:[%s7 + $0x10] sm:$0xff]
    %v3034 = vld [vmem:[%s7 + $0x18] sm:$0xff]
    %v3035 = vld [vmem:[%s7 + $0x20] sm:$0xff]
    %v3036 = vld [vmem:[%s7 + $0x28] sm:$0xff]
    %v3037 = vld [vmem:[%s7 + $0x30] sm:$0xff]
    %v3038 = vld [vmem:[%s7 + $0x38] sm:$0xff]
    %v3039 = vld [vmem:[%s7 + $0x40] sm:$0xff]
    %v3040 = vld [vmem:[%s7 + $0x48] sm:$0xff]
    %v3041 = vld [vmem:[%s7 + $0x50] sm:$0xff]
    %v3042 = vld [vmem:[%s7 + $0x58] sm:$0xff]
    %v3043 = vld [vmem:[%s7 + $0x60] sm:$0xff]
    %v3044 = vld [vmem:[%s7 + $0x68] sm:$0xff]
    %v3045 = vld [vmem:[%s7 + $0x70] sm:$0xff]
    %v3046 = vld [vmem:[%s7 + $0x78] sm:$0xff]
    %v3047 = vld [vmem:[%s7 + $0x80] sm:$0xff]
    %v3048 = vld [vmem:[%s7 + $0x88] sm:$0xff]
    %v3049 = vld [vmem:[%s7 + $0x90] sm:$0xff]
    %v3050 = vld [vmem:[%s7 + $0x98] sm:$0xff]
    %v3051 = vld [vmem:[%s7 + $0xa0] sm:$0xff]
    %v3052 = vld [vmem:[%s7 + $0xa8] sm:$0xff]
    %v3053 = vld [vmem:[%s7 + $0xb0] sm:$0xff]
    %v3054 = vld [vmem:[%s7 + $0xb8] sm:$0xff]
    %v3055 = vld [vmem:[%s7 + $0xc0] sm:$0xff]
    %v3056 = vld [vmem:[%s7 + $0xc8] sm:$0xff]
    %v3057 = vld [vmem:[%s7 + $0xd0] sm:$0xff]
    %v3058 = vld [vmem:[%s7 + $0xd8] sm:$0xff]
    %v3059 = vld [vmem:[%s7 + $0xe0] sm:$0xff]
    %v3060 = vld [vmem:[%s7 + $0xe8] sm:$0xff]
    %v3061 = vld [vmem:[%s7 + $0xf0] sm:$0xff]
    %v3062 = vld [vmem:[%s7 + $0xf8] sm:$0xff]
    %v3095 = vunpack.c.l.b16 %v3031
    %v3096 = vunpack.c.h.b16 %v3031
    %v3097 = vunpack.c.l.b16 %v3032
    %v3098 = vunpack.c.h.b16 %v3032
    %v3099 = vunpack.c.l.b16 %v3033
    %v3100 = vunpack.c.h.b16 %v3033
    %v3101 = vunpack.c.l.b16 %v3034
    %v3102 = vunpack.c.h.b16 %v3034
    %v3103 = vunpack.c.l.b16 %v3035
    %v3104 = vunpack.c.h.b16 %v3035
    %v3105 = vunpack.c.l.b16 %v3036
    %v3106 = vunpack.c.h.b16 %v3036
    %v3107 = vunpack.c.l.b16 %v3037
    %v3108 = vunpack.c.h.b16 %v3037
    %v3109 = vunpack.c.l.b16 %v3038
    %v3110 = vunpack.c.h.b16 %v3038
    %v3111 = vunpack.c.l.b16 %v3039
    %v3112 = vunpack.c.h.b16 %v3039
    %v3113 = vunpack.c.l.b16 %v3040
    %v3114 = vunpack.c.h.b16 %v3040
    %v3115 = vunpack.c.l.b16 %v3041
    %v3116 = vunpack.c.h.b16 %v3041
    %v3117 = vunpack.c.l.b16 %v3042
    %v3118 = vunpack.c.h.b16 %v3042
    %v3119 = vunpack.c.l.b16 %v3043
    %v3120 = vunpack.c.h.b16 %v3043
    %v3121 = vunpack.c.l.b16 %v3044
    %v3122 = vunpack.c.h.b16 %v3044
    %v3123 = vunpack.c.l.b16 %v3045
    %v3124 = vunpack.c.h.b16 %v3045
    %v3125 = vunpack.c.l.b16 %v3046
    %v3126 = vunpack.c.h.b16 %v3046
    %v3127 = vunpack.c.l.b16 %v3047
    %v3128 = vunpack.c.h.b16 %v3047
    %v3129 = vunpack.c.l.b16 %v3048
    %v3130 = vunpack.c.h.b16 %v3048
    %v3131 = vunpack.c.l.b16 %v3049
    %v3132 = vunpack.c.h.b16 %v3049
    %v3133 = vunpack.c.l.b16 %v3050
    %v3134 = vunpack.c.h.b16 %v3050
    %v3135 = vunpack.c.l.b16 %v3051
    %v3136 = vunpack.c.h.b16 %v3051
    %v3137 = vunpack.c.l.b16 %v3052
    %v3138 = vunpack.c.h.b16 %v3052
    %v3139 = vunpack.c.l.b16 %v3053
    %v3140 = vunpack.c.h.b16 %v3053
    %v3141 = vunpack.c.l.b16 %v3054
    %v3142 = vunpack.c.h.b16 %v3054
    %v3143 = vunpack.c.l.b16 %v3055
    %v3144 = vunpack.c.h.b16 %v3055
    %v3145 = vunpack.c.l.b16 %v3056
    %v3146 = vunpack.c.h.b16 %v3056
    %v3147 = vunpack.c.l.b16 %v3057
    %v3148 = vunpack.c.h.b16 %v3057
    %v3149 = vunpack.c.l.b16 %v3058
    %v3150 = vunpack.c.h.b16 %v3058
    %v3151 = vunpack.c.l.b16 %v3059
    %v3152 = vunpack.c.h.b16 %v3059
    %v3153 = vunpack.c.l.b16 %v3060
    %v3154 = vunpack.c.h.b16 %v3060
    %v3155 = vunpack.c.l.b16 %v3061
    %v3156 = vunpack.c.h.b16 %v3061
    %v3157 = vunpack.c.l.b16 %v3062
    %v3158 = vunpack.c.h.b16 %v3062
    %v3159 = vpack.c.b16 %v3099, %v3095
    %v3160 = vpack.c.b16 %v3100, %v3096
    %v3161 = vpack.c.b16 %v3101, %v3097
    %v3162 = vpack.c.b16 %v3102, %v3098
    %v3163 = vpack.c.b16 %v3107, %v3103
    %v3164 = vpack.c.b16 %v3108, %v3104
    %v3165 = vpack.c.b16 %v3109, %v3105
    %v3166 = vpack.c.b16 %v3110, %v3106
    %v3167 = vpack.c.b16 %v3115, %v3111
    %v3168 = vpack.c.b16 %v3116, %v3112
    %v3169 = vpack.c.b16 %v3117, %v3113
    %v3170 = vpack.c.b16 %v3118, %v3114
    %v3171 = vpack.c.b16 %v3123, %v3119
    %v3172 = vpack.c.b16 %v3124, %v3120
    %v3173 = vpack.c.b16 %v3125, %v3121
    %v3174 = vpack.c.b16 %v3126, %v3122
    %v3175 = vpack.c.b16 %v3131, %v3127
    %v3176 = vpack.c.b16 %v3132, %v3128
    %v3177 = vpack.c.b16 %v3133, %v3129
    %v3178 = vpack.c.b16 %v3134, %v3130
    %v3179 = vpack.c.b16 %v3139, %v3135
    %v3180 = vpack.c.b16 %v3140, %v3136
    %v3181 = vpack.c.b16 %v3141, %v3137
    %v3182 = vpack.c.b16 %v3142, %v3138
    %v3183 = vpack.c.b16 %v3147, %v3143
    %v3184 = vpack.c.b16 %v3148, %v3144
    %v3185 = vpack.c.b16 %v3149, %v3145
    %v3186 = vpack.c.b16 %v3150, %v3146
    %v3187 = vpack.c.b16 %v3155, %v3151
    %v3188 = vpack.c.b16 %v3156, %v3152
    %v3189 = vpack.c.b16 %v3157, %v3153
    %v3190 = vpack.c.b16 %v3158, %v3154
    %3223 = vmatpush.bf16.msra.mxu0 %v3187
    %3224 = vmatpush.bf16.msra.mxu0 %v3183
    %3225 = vmatpush.bf16.msra.mxu0 %v3179
    %3226 = vmatpush.bf16.msra.mxu0 %v3175
    %3227 = vmatpush.bf16.msra.mxu0 %v3171
    %3228 = vmatpush.bf16.msra.mxu0 %v3167
    %3229 = vmatpush.bf16.msra.mxu0 %v3163
    %3230 = vmatpush.bf16.msra.mxu0 %v3159
    %3231 = vmatmul.bf16.gmra.mxu0 %v3030
    %v3232 = vpop.f32.mrf.mxu0
    %v3233 = vadd.f32 0.0, %v3232
    %v3234 = vpop.f32.mrf.mxu0
    %3235 = vdwg.mxu0
    %3236 = vmatpush.bf16.msra.mxu0 %v3188
    %3237 = vmatpush.bf16.msra.mxu0 %v3184
    %3238 = vmatpush.bf16.msra.mxu0 %v3180
    %3239 = vmatpush.bf16.msra.mxu0 %v3176
    %3240 = vmatpush.bf16.msra.mxu0 %v3172
    %3241 = vmatpush.bf16.msra.mxu0 %v3168
    %3242 = vmatpush.bf16.msra.mxu0 %v3164
    %3243 = vmatpush.bf16.msra.mxu0 %v3160
    %3244 = vmatmul.bf16.gmra.mxu0 %v3030
    %v3245 = vpop.f32.mrf.mxu0
    %v3246 = vadd.f32 0.0, %v3245
    %v3247 = vpop.f32.mrf.mxu0
    %3248 = vdwg.mxu0
    %3249 = vmatpush.bf16.msra.mxu0 %v3189
    %3250 = vmatpush.bf16.msra.mxu0 %v3185
    %3251 = vmatpush.bf16.msra.mxu0 %v3181
    %3252 = vmatpush.bf16.msra.mxu0 %v3177
    %3253 = vmatpush.bf16.msra.mxu0 %v3173
    %3254 = vmatpush.bf16.msra.mxu0 %v3169
    %3255 = vmatpush.bf16.msra.mxu0 %v3165
    %3256 = vmatpush.bf16.msra.mxu0 %v3161
    %3257 = vmatmul.bf16.gmra.mxu0 %v3030
    %v3258 = vpop.f32.mrf.mxu0
    %v3259 = vadd.f32 0.0, %v3258
    %v3260 = vpop.f32.mrf.mxu0
    %3261 = vdwg.mxu0
    %3262 = vmatpush.bf16.msra.mxu0 %v3190
    %3263 = vmatpush.bf16.msra.mxu0 %v3186
    %3264 = vmatpush.bf16.msra.mxu0 %v3182
    %3265 = vmatpush.bf16.msra.mxu0 %v3178
    %3266 = vmatpush.bf16.msra.mxu0 %v3174
    %3267 = vmatpush.bf16.msra.mxu0 %v3170
    %3268 = vmatpush.bf16.msra.mxu0 %v3166
    %3269 = vmatpush.bf16.msra.mxu0 %v3162
    %3270 = vmatmul.bf16.gmra.mxu0 %v3030
    %v3271 = vpop.f32.mrf.mxu0
    %v3272 = vadd.f32 0.0, %v3271
    %v3273 = vpop.f32.mrf.mxu0
    %3274 = vdwg.mxu0
    %v3279 = vrot.slane %v3233, 4
    %v3280 = vrot.slane %v3246, 4
    %v3281 = vrot.slane %v3259, 4
    %v3282 = vrot.slane %v3272, 4
    %v3287 = vadd.f32 %v3026, %v3279
    %v3288 = vadd.f32 %v3027, %v3280
    %v3289 = vadd.f32 %v3028, %v3281
    %v3290 = vadd.f32 %v3029, %v3282
    %v3291 = vxor.u32 %v3287, 2147483648
    %v3292 = vxor.u32 %v3288, 2147483648
    %v3293 = vxor.u32 %v3289, 2147483648
    %v3294 = vmul.f32 %v3291, 1.442695
    %v3295 = vpow.pop %v3294
    %v3296 = vmul.f32 %v3292, 1.442695
    %v3297 = vpow.pop %v3296
    %v3298 = vmul.f32 %v3293, 1.442695
    %v3299 = vpow.pop %v3298
    %v3300 = vadd.f32 %v3295, 1.0
    %v3301 = vadd.f32 %v3297, 1.0
    %v3302 = vadd.f32 %v3299, 1.0
    %v3303 = vrcp.pop %v3300
    %v3304 = vmul.f32 %v3300, %v3303
    %v3305 = vsub.f32 1.0, %v3304
    %v3306 = vmul.f32 %v3303, %v3305
    %v3307 = vadd.f32 %v3303, %v3306
    %vm3308 = vweird.f32 %v3300
    %vm3309 = vweird.f32 %v3303
    %vm3310 = vmor %vm3308, %vm3309
    %v3311 = vsel %vm3310, %v3303, %v3307
    %v3312 = vand.u32 2147483647, %v3300
    %vm3313 = vcmp.eq.f32.partialorder %v3312, 8.507059e+37
    %v3314 = vand.u32 %v3300, 2147483648
    %v3315 = vor.u32 1.1754944e-38, %v3314
    %v3316 = vsel %vm3313, %v3315, %v3311
    %v3317 = vmul.f32 1.0, %v3316
    %v3318 = vrcp.pop %v3301
    %v3319 = vmul.f32 %v3301, %v3318
    %v3320 = vsub.f32 1.0, %v3319
    %v3321 = vmul.f32 %v3318, %v3320
    %v3322 = vadd.f32 %v3318, %v3321
    %vm3323 = vweird.f32 %v3301
    %vm3324 = vweird.f32 %v3318
    %vm3325 = vmor %vm3323, %vm3324
    %v3326 = vsel %vm3325, %v3318, %v3322
    %v3327 = vand.u32 2147483647, %v3301
    %vm3328 = vcmp.eq.f32.partialorder %v3327, 8.507059e+37
    %v3329 = vand.u32 %v3301, 2147483648
    %v3330 = vor.u32 1.1754944e-38, %v3329
    %v3331 = vsel %vm3328, %v3330, %v3326
    %v3332 = vmul.f32 1.0, %v3331
    %v3333 = vrcp.pop %v3302
    %v3334 = vmul.f32 %v3302, %v3333
    %v3335 = vsub.f32 1.0, %v3334
    %v3336 = vmul.f32 %v3333, %v3335
    %v3337 = vadd.f32 %v3333, %v3336
    %vm3338 = vweird.f32 %v3302
    %vm3339 = vweird.f32 %v3333
    %vm3340 = vmor %vm3338, %vm3339
    %v3341 = vsel %vm3340, %v3333, %v3337
    %v3342 = vand.u32 2147483647, %v3302
    %vm3343 = vcmp.eq.f32.partialorder %v3342, 8.507059e+37
    %v3344 = vand.u32 %v3302, 2147483648
    %v3345 = vor.u32 1.1754944e-38, %v3344
    %v3346 = vsel %vm3343, %v3345, %v3341
    %v3347 = vmul.f32 1.0, %v3346
    %v3348 = vtanh.pop %v3290
    %v3350 = vrot.slane %v3024, 4
    %v3352 = vmul.f32 %v3332, %v3350
    %v3353 = vmul.f32 %v3317, %v3348
    %v3354 = vadd.f32 %v3352, %v3353
    %v3355 = vtanh.pop %v3354
    %v3356 = vmul.f32 %v3347, %v3355
    %v3357 = vld [vmem:[%s0 + $0x14] sm:$0xf]
    %vm3358 = vcmp.gt.f32.partialorder %v3357, 0.5
    %v3360 = vrot.slane %v3356, 4
    %v3362 = vsel %vm3358, %v3360, %v3023
    %v3364 = vrot.slane %v3354, 4
    %v3366 = vsel %vm3358, %v3364, %v3024
    %3367 = vst [vmem:[#allocation4 + $0x10] sm:$0xf] %v3362
    %v3368 = vld [vmem:[#allocation3 + $0x60] sm:$0xf]
    %v3369 = vld [vmem:[#allocation3 + $0x68] sm:$0xf]
    %v3370 = vld [vmem:[#allocation3 + $0x70] sm:$0xf]
    %v3371 = vld [vmem:[#allocation3 + $0x78] sm:$0xf]
    %v3372 = vpack.c.bf16 %v3362, %v3362
    %v3373 = vld [vmem:[%s7] sm:$0xff]
    %v3374 = vld [vmem:[%s7 + $0x8] sm:$0xff]
    %v3375 = vld [vmem:[%s7 + $0x10] sm:$0xff]
    %v3376 = vld [vmem:[%s7 + $0x18] sm:$0xff]
    %v3377 = vld [vmem:[%s7 + $0x20] sm:$0xff]
    %v3378 = vld [vmem:[%s7 + $0x28] sm:$0xff]
    %v3379 = vld [vmem:[%s7 + $0x30] sm:$0xff]
    %v3380 = vld [vmem:[%s7 + $0x38] sm:$0xff]
    %v3381 = vld [vmem:[%s7 + $0x40] sm:$0xff]
    %v3382 = vld [vmem:[%s7 + $0x48] sm:$0xff]
    %v3383 = vld [vmem:[%s7 + $0x50] sm:$0xff]
    %v3384 = vld [vmem:[%s7 + $0x58] sm:$0xff]
    %v3385 = vld [vmem:[%s7 + $0x60] sm:$0xff]
    %v3386 = vld [vmem:[%s7 + $0x68] sm:$0xff]
    %v3387 = vld [vmem:[%s7 + $0x70] sm:$0xff]
    %v3388 = vld [vmem:[%s7 + $0x78] sm:$0xff]
    %v3389 = vld [vmem:[%s7 + $0x80] sm:$0xff]
    %v3390 = vld [vmem:[%s7 + $0x88] sm:$0xff]
    %v3391 = vld [vmem:[%s7 + $0x90] sm:$0xff]
    %v3392 = vld [vmem:[%s7 + $0x98] sm:$0xff]
    %v3393 = vld [vmem:[%s7 + $0xa0] sm:$0xff]
    %v3394 = vld [vmem:[%s7 + $0xa8] sm:$0xff]
    %v3395 = vld [vmem:[%s7 + $0xb0] sm:$0xff]
    %v3396 = vld [vmem:[%s7 + $0xb8] sm:$0xff]
    %v3397 = vld [vmem:[%s7 + $0xc0] sm:$0xff]
    %v3398 = vld [vmem:[%s7 + $0xc8] sm:$0xff]
    %v3399 = vld [vmem:[%s7 + $0xd0] sm:$0xff]
    %v3400 = vld [vmem:[%s7 + $0xd8] sm:$0xff]
    %v3401 = vld [vmem:[%s7 + $0xe0] sm:$0xff]
    %v3402 = vld [vmem:[%s7 + $0xe8] sm:$0xff]
    %v3403 = vld [vmem:[%s7 + $0xf0] sm:$0xff]
    %v3404 = vld [vmem:[%s7 + $0xf8] sm:$0xff]
    %v3437 = vunpack.c.l.b16 %v3373
    %v3438 = vunpack.c.h.b16 %v3373
    %v3439 = vunpack.c.l.b16 %v3374
    %v3440 = vunpack.c.h.b16 %v3374
    %v3441 = vunpack.c.l.b16 %v3375
    %v3442 = vunpack.c.h.b16 %v3375
    %v3443 = vunpack.c.l.b16 %v3376
    %v3444 = vunpack.c.h.b16 %v3376
    %v3445 = vunpack.c.l.b16 %v3377
    %v3446 = vunpack.c.h.b16 %v3377
    %v3447 = vunpack.c.l.b16 %v3378
    %v3448 = vunpack.c.h.b16 %v3378
    %v3449 = vunpack.c.l.b16 %v3379
    %v3450 = vunpack.c.h.b16 %v3379
    %v3451 = vunpack.c.l.b16 %v3380
    %v3452 = vunpack.c.h.b16 %v3380
    %v3453 = vunpack.c.l.b16 %v3381
    %v3454 = vunpack.c.h.b16 %v3381
    %v3455 = vunpack.c.l.b16 %v3382
    %v3456 = vunpack.c.h.b16 %v3382
    %v3457 = vunpack.c.l.b16 %v3383
    %v3458 = vunpack.c.h.b16 %v3383
    %v3459 = vunpack.c.l.b16 %v3384
    %v3460 = vunpack.c.h.b16 %v3384
    %v3461 = vunpack.c.l.b16 %v3385
    %v3462 = vunpack.c.h.b16 %v3385
    %v3463 = vunpack.c.l.b16 %v3386
    %v3464 = vunpack.c.h.b16 %v3386
    %v3465 = vunpack.c.l.b16 %v3387
    %v3466 = vunpack.c.h.b16 %v3387
    %v3467 = vunpack.c.l.b16 %v3388
    %v3468 = vunpack.c.h.b16 %v3388
    %v3469 = vunpack.c.l.b16 %v3389
    %v3470 = vunpack.c.h.b16 %v3389
    %v3471 = vunpack.c.l.b16 %v3390
    %v3472 = vunpack.c.h.b16 %v3390
    %v3473 = vunpack.c.l.b16 %v3391
    %v3474 = vunpack.c.h.b16 %v3391
    %v3475 = vunpack.c.l.b16 %v3392
    %v3476 = vunpack.c.h.b16 %v3392
    %v3477 = vunpack.c.l.b16 %v3393
    %v3478 = vunpack.c.h.b16 %v3393
    %v3479 = vunpack.c.l.b16 %v3394
    %v3480 = vunpack.c.h.b16 %v3394
    %v3481 = vunpack.c.l.b16 %v3395
    %v3482 = vunpack.c.h.b16 %v3395
    %v3483 = vunpack.c.l.b16 %v3396
    %v3484 = vunpack.c.h.b16 %v3396
    %v3485 = vunpack.c.l.b16 %v3397
    %v3486 = vunpack.c.h.b16 %v3397
    %v3487 = vunpack.c.l.b16 %v3398
    %v3488 = vunpack.c.h.b16 %v3398
    %v3489 = vunpack.c.l.b16 %v3399
    %v3490 = vunpack.c.h.b16 %v3399
    %v3491 = vunpack.c.l.b16 %v3400
    %v3492 = vunpack.c.h.b16 %v3400
    %v3493 = vunpack.c.l.b16 %v3401
    %v3494 = vunpack.c.h.b16 %v3401
    %v3495 = vunpack.c.l.b16 %v3402
    %v3496 = vunpack.c.h.b16 %v3402
    %v3497 = vunpack.c.l.b16 %v3403
    %v3498 = vunpack.c.h.b16 %v3403
    %v3499 = vunpack.c.l.b16 %v3404
    %v3500 = vunpack.c.h.b16 %v3404
    %v3501 = vpack.c.b16 %v3441, %v3437
    %v3502 = vpack.c.b16 %v3442, %v3438
    %v3503 = vpack.c.b16 %v3443, %v3439
    %v3504 = vpack.c.b16 %v3444, %v3440
    %v3505 = vpack.c.b16 %v3449, %v3445
    %v3506 = vpack.c.b16 %v3450, %v3446
    %v3507 = vpack.c.b16 %v3451, %v3447
    %v3508 = vpack.c.b16 %v3452, %v3448
    %v3509 = vpack.c.b16 %v3457, %v3453
    %v3510 = vpack.c.b16 %v3458, %v3454
    %v3511 = vpack.c.b16 %v3459, %v3455
    %v3512 = vpack.c.b16 %v3460, %v3456
    %v3513 = vpack.c.b16 %v3465, %v3461
    %v3514 = vpack.c.b16 %v3466, %v3462
    %v3515 = vpack.c.b16 %v3467, %v3463
    %v3516 = vpack.c.b16 %v3468, %v3464
    %v3517 = vpack.c.b16 %v3473, %v3469
    %v3518 = vpack.c.b16 %v3474, %v3470
    %v3519 = vpack.c.b16 %v3475, %v3471
    %v3520 = vpack.c.b16 %v3476, %v3472
    %v3521 = vpack.c.b16 %v3481, %v3477
    %v3522 = vpack.c.b16 %v3482, %v3478
    %v3523 = vpack.c.b16 %v3483, %v3479
    %v3524 = vpack.c.b16 %v3484, %v3480
    %v3525 = vpack.c.b16 %v3489, %v3485
    %v3526 = vpack.c.b16 %v3490, %v3486
    %v3527 = vpack.c.b16 %v3491, %v3487
    %v3528 = vpack.c.b16 %v3492, %v3488
    %v3529 = vpack.c.b16 %v3497, %v3493
    %v3530 = vpack.c.b16 %v3498, %v3494
    %v3531 = vpack.c.b16 %v3499, %v3495
    %v3532 = vpack.c.b16 %v3500, %v3496
    %3565 = vmatpush.bf16.msra.mxu0 %v3529
    %3566 = vmatpush.bf16.msra.mxu0 %v3525
    %3567 = vmatpush.bf16.msra.mxu0 %v3521
    %3568 = vmatpush.bf16.msra.mxu0 %v3517
    %3569 = vmatpush.bf16.msra.mxu0 %v3513
    %3570 = vmatpush.bf16.msra.mxu0 %v3509
    %3571 = vmatpush.bf16.msra.mxu0 %v3505
    %3572 = vmatpush.bf16.msra.mxu0 %v3501
    %3573 = vmatmul.bf16.gmra.mxu0 %v3372
    %v3574 = vpop.f32.mrf.mxu0
    %v3575 = vadd.f32 0.0, %v3574
    %v3576 = vpop.f32.mrf.mxu0
    %3577 = vdwg.mxu0
    %3578 = vmatpush.bf16.msra.mxu0 %v3530
    %3579 = vmatpush.bf16.msra.mxu0 %v3526
    %3580 = vmatpush.bf16.msra.mxu0 %v3522
    %3581 = vmatpush.bf16.msra.mxu0 %v3518
    %3582 = vmatpush.bf16.msra.mxu0 %v3514
    %3583 = vmatpush.bf16.msra.mxu0 %v3510
    %3584 = vmatpush.bf16.msra.mxu0 %v3506
    %3585 = vmatpush.bf16.msra.mxu0 %v3502
    %3586 = vmatmul.bf16.gmra.mxu0 %v3372
    %v3587 = vpop.f32.mrf.mxu0
    %v3588 = vadd.f32 0.0, %v3587
    %v3589 = vpop.f32.mrf.mxu0
    %3590 = vdwg.mxu0
    %3591 = vmatpush.bf16.msra.mxu0 %v3531
    %3592 = vmatpush.bf16.msra.mxu0 %v3527
    %3593 = vmatpush.bf16.msra.mxu0 %v3523
    %3594 = vmatpush.bf16.msra.mxu0 %v3519
    %3595 = vmatpush.bf16.msra.mxu0 %v3515
    %3596 = vmatpush.bf16.msra.mxu0 %v3511
    %3597 = vmatpush.bf16.msra.mxu0 %v3507
    %3598 = vmatpush.bf16.msra.mxu0 %v3503
    %3599 = vmatmul.bf16.gmra.mxu0 %v3372
    %v3600 = vpop.f32.mrf.mxu0
    %v3601 = vadd.f32 0.0, %v3600
    %v3602 = vpop.f32.mrf.mxu0
    %3603 = vdwg.mxu0
    %3604 = vmatpush.bf16.msra.mxu0 %v3532
    %3605 = vmatpush.bf16.msra.mxu0 %v3528
    %3606 = vmatpush.bf16.msra.mxu0 %v3524
    %3607 = vmatpush.bf16.msra.mxu0 %v3520
    %3608 = vmatpush.bf16.msra.mxu0 %v3516
    %3609 = vmatpush.bf16.msra.mxu0 %v3512
    %3610 = vmatpush.bf16.msra.mxu0 %v3508
    %3611 = vmatpush.bf16.msra.mxu0 %v3504
    %3612 = vmatmul.bf16.gmra.mxu0 %v3372
    %v3613 = vpop.f32.mrf.mxu0
    %v3614 = vadd.f32 0.0, %v3613
    %v3615 = vpop.f32.mrf.mxu0
    %3616 = vdwg.mxu0
    %v3617 = vadd.f32 %v3368, %v3575
    %v3618 = vadd.f32 %v3369, %v3588
    %v3619 = vadd.f32 %v3370, %v3601
    %v3620 = vadd.f32 %v3371, %v3614
    %v3621 = vxor.u32 %v3617, 2147483648
    %v3622 = vxor.u32 %v3618, 2147483648
    %v3623 = vxor.u32 %v3619, 2147483648
    %v3624 = vmul.f32 %v3621, 1.442695
    %v3625 = vpow.pop %v3624
    %v3626 = vmul.f32 %v3622, 1.442695
    %v3627 = vpow.pop %v3626
    %v3628 = vmul.f32 %v3623, 1.442695
    %v3629 = vpow.pop %v3628
    %v3630 = vadd.f32 %v3625, 1.0
    %v3631 = vadd.f32 %v3627, 1.0
    %v3632 = vadd.f32 %v3629, 1.0
    %v3633 = vrcp.pop %v3630
    %v3634 = vmul.f32 %v3630, %v3633
    %v3635 = vsub.f32 1.0, %v3634
    %v3636 = vmul.f32 %v3633, %v3635
    %v3637 = vadd.f32 %v3633, %v3636
    %vm3638 = vweird.f32 %v3630
    %vm3639 = vweird.f32 %v3633
    %vm3640 = vmor %vm3638, %vm3639
    %v3641 = vsel %vm3640, %v3633, %v3637
    %v3642 = vand.u32 2147483647, %v3630
    %vm3643 = vcmp.eq.f32.partialorder %v3642, 8.507059e+37
    %v3644 = vand.u32 %v3630, 2147483648
    %v3645 = vor.u32 1.1754944e-38, %v3644
    %v3646 = vsel %vm3643, %v3645, %v3641
    %v3647 = vmul.f32 1.0, %v3646
    %v3648 = vrcp.pop %v3631
    %v3649 = vmul.f32 %v3631, %v3648
    %v3650 = vsub.f32 1.0, %v3649
    %v3651 = vmul.f32 %v3648, %v3650
    %v3652 = vadd.f32 %v3648, %v3651
    %vm3653 = vweird.f32 %v3631
    %vm3654 = vweird.f32 %v3648
    %vm3655 = vmor %vm3653, %vm3654
    %v3656 = vsel %vm3655, %v3648, %v3652
    %v3657 = vand.u32 2147483647, %v3631
    %vm3658 = vcmp.eq.f32.partialorder %v3657, 8.507059e+37
    %v3659 = vand.u32 %v3631, 2147483648
    %v3660 = vor.u32 1.1754944e-38, %v3659
    %v3661 = vsel %vm3658, %v3660, %v3656
    %v3662 = vmul.f32 1.0, %v3661
    %v3663 = vrcp.pop %v3632
    %v3664 = vmul.f32 %v3632, %v3663
    %v3665 = vsub.f32 1.0, %v3664
    %v3666 = vmul.f32 %v3663, %v3665
    %v3667 = vadd.f32 %v3663, %v3666
    %vm3668 = vweird.f32 %v3632
    %vm3669 = vweird.f32 %v3663
    %vm3670 = vmor %vm3668, %vm3669
    %v3671 = vsel %vm3670, %v3663, %v3667
    %v3672 = vand.u32 2147483647, %v3632
    %vm3673 = vcmp.eq.f32.partialorder %v3672, 8.507059e+37
    %v3674 = vand.u32 %v3632, 2147483648
    %v3675 = vor.u32 1.1754944e-38, %v3674
    %v3676 = vsel %vm3673, %v3675, %v3671
    %v3677 = vmul.f32 1.0, %v3676
    %v3678 = vtanh.pop %v3620
    %v3679 = vmul.f32 %v3662, %v3366
    %v3680 = vmul.f32 %v3647, %v3678
    %v3681 = vadd.f32 %v3679, %v3680
    %v3682 = vtanh.pop %v3681
    %v3683 = vmul.f32 %v3677, %v3682
    %v3684 = vld [vmem:[%s0 + $0x18] sm:$0xf]
    %vm3685 = vcmp.gt.f32.partialorder %v3684, 0.5
    %v3686 = vsel %vm3685, %v3683, %v3362
    %v3687 = vsel %vm3685, %v3681, %v3366
    %3688 = vst [vmem:[#allocation4 + $0x14] sm:$0xf] %v3686
    %v3689 = vld [vmem:[#allocation3 + $0x60] sm:$0xf0]
    %v3690 = vld [vmem:[#allocation3 + $0x68] sm:$0xf0]
    %v3691 = vld [vmem:[#allocation3 + $0x70] sm:$0xf0]
    %v3692 = vld [vmem:[#allocation3 + $0x78] sm:$0xf0]
    %v3693 = vpack.c.bf16 %v3686, %v3686
    %v3694 = vld [vmem:[%s7] sm:$0xff]
    %v3695 = vld [vmem:[%s7 + $0x8] sm:$0xff]
    %v3696 = vld [vmem:[%s7 + $0x10] sm:$0xff]
    %v3697 = vld [vmem:[%s7 + $0x18] sm:$0xff]
    %v3698 = vld [vmem:[%s7 + $0x20] sm:$0xff]
    %v3699 = vld [vmem:[%s7 + $0x28] sm:$0xff]
    %v3700 = vld [vmem:[%s7 + $0x30] sm:$0xff]
    %v3701 = vld [vmem:[%s7 + $0x38] sm:$0xff]
    %v3702 = vld [vmem:[%s7 + $0x40] sm:$0xff]
    %v3703 = vld [vmem:[%s7 + $0x48] sm:$0xff]
    %v3704 = vld [vmem:[%s7 + $0x50] sm:$0xff]
    %v3705 = vld [vmem:[%s7 + $0x58] sm:$0xff]
    %v3706 = vld [vmem:[%s7 + $0x60] sm:$0xff]
    %v3707 = vld [vmem:[%s7 + $0x68] sm:$0xff]
    %v3708 = vld [vmem:[%s7 + $0x70] sm:$0xff]
    %v3709 = vld [vmem:[%s7 + $0x78] sm:$0xff]
    %v3710 = vld [vmem:[%s7 + $0x80] sm:$0xff]
    %v3711 = vld [vmem:[%s7 + $0x88] sm:$0xff]
    %v3712 = vld [vmem:[%s7 + $0x90] sm:$0xff]
    %v3713 = vld [vmem:[%s7 + $0x98] sm:$0xff]
    %v3714 = vld [vmem:[%s7 + $0xa0] sm:$0xff]
    %v3715 = vld [vmem:[%s7 + $0xa8] sm:$0xff]
    %v3716 = vld [vmem:[%s7 + $0xb0] sm:$0xff]
    %v3717 = vld [vmem:[%s7 + $0xb8] sm:$0xff]
    %v3718 = vld [vmem:[%s7 + $0xc0] sm:$0xff]
    %v3719 = vld [vmem:[%s7 + $0xc8] sm:$0xff]
    %v3720 = vld [vmem:[%s7 + $0xd0] sm:$0xff]
    %v3721 = vld [vmem:[%s7 + $0xd8] sm:$0xff]
    %v3722 = vld [vmem:[%s7 + $0xe0] sm:$0xff]
    %v3723 = vld [vmem:[%s7 + $0xe8] sm:$0xff]
    %v3724 = vld [vmem:[%s7 + $0xf0] sm:$0xff]
    %v3725 = vld [vmem:[%s7 + $0xf8] sm:$0xff]
    %v3758 = vunpack.c.l.b16 %v3694
    %v3759 = vunpack.c.h.b16 %v3694
    %v3760 = vunpack.c.l.b16 %v3695
    %v3761 = vunpack.c.h.b16 %v3695
    %v3762 = vunpack.c.l.b16 %v3696
    %v3763 = vunpack.c.h.b16 %v3696
    %v3764 = vunpack.c.l.b16 %v3697
    %v3765 = vunpack.c.h.b16 %v3697
    %v3766 = vunpack.c.l.b16 %v3698
    %v3767 = vunpack.c.h.b16 %v3698
    %v3768 = vunpack.c.l.b16 %v3699
    %v3769 = vunpack.c.h.b16 %v3699
    %v3770 = vunpack.c.l.b16 %v3700
    %v3771 = vunpack.c.h.b16 %v3700
    %v3772 = vunpack.c.l.b16 %v3701
    %v3773 = vunpack.c.h.b16 %v3701
    %v3774 = vunpack.c.l.b16 %v3702
    %v3775 = vunpack.c.h.b16 %v3702
    %v3776 = vunpack.c.l.b16 %v3703
    %v3777 = vunpack.c.h.b16 %v3703
    %v3778 = vunpack.c.l.b16 %v3704
    %v3779 = vunpack.c.h.b16 %v3704
    %v3780 = vunpack.c.l.b16 %v3705
    %v3781 = vunpack.c.h.b16 %v3705
    %v3782 = vunpack.c.l.b16 %v3706
    %v3783 = vunpack.c.h.b16 %v3706
    %v3784 = vunpack.c.l.b16 %v3707
    %v3785 = vunpack.c.h.b16 %v3707
    %v3786 = vunpack.c.l.b16 %v3708
    %v3787 = vunpack.c.h.b16 %v3708
    %v3788 = vunpack.c.l.b16 %v3709
    %v3789 = vunpack.c.h.b16 %v3709
    %v3790 = vunpack.c.l.b16 %v3710
    %v3791 = vunpack.c.h.b16 %v3710
    %v3792 = vunpack.c.l.b16 %v3711
    %v3793 = vunpack.c.h.b16 %v3711
    %v3794 = vunpack.c.l.b16 %v3712
    %v3795 = vunpack.c.h.b16 %v3712
    %v3796 = vunpack.c.l.b16 %v3713
    %v3797 = vunpack.c.h.b16 %v3713
    %v3798 = vunpack.c.l.b16 %v3714
    %v3799 = vunpack.c.h.b16 %v3714
    %v3800 = vunpack.c.l.b16 %v3715
    %v3801 = vunpack.c.h.b16 %v3715
    %v3802 = vunpack.c.l.b16 %v3716
    %v3803 = vunpack.c.h.b16 %v3716
    %v3804 = vunpack.c.l.b16 %v3717
    %v3805 = vunpack.c.h.b16 %v3717
    %v3806 = vunpack.c.l.b16 %v3718
    %v3807 = vunpack.c.h.b16 %v3718
    %v3808 = vunpack.c.l.b16 %v3719
    %v3809 = vunpack.c.h.b16 %v3719
    %v3810 = vunpack.c.l.b16 %v3720
    %v3811 = vunpack.c.h.b16 %v3720
    %v3812 = vunpack.c.l.b16 %v3721
    %v3813 = vunpack.c.h.b16 %v3721
    %v3814 = vunpack.c.l.b16 %v3722
    %v3815 = vunpack.c.h.b16 %v3722
    %v3816 = vunpack.c.l.b16 %v3723
    %v3817 = vunpack.c.h.b16 %v3723
    %v3818 = vunpack.c.l.b16 %v3724
    %v3819 = vunpack.c.h.b16 %v3724
    %v3820 = vunpack.c.l.b16 %v3725
    %v3821 = vunpack.c.h.b16 %v3725
    %v3822 = vpack.c.b16 %v3762, %v3758
    %v3823 = vpack.c.b16 %v3763, %v3759
    %v3824 = vpack.c.b16 %v3764, %v3760
    %v3825 = vpack.c.b16 %v3765, %v3761
    %v3826 = vpack.c.b16 %v3770, %v3766
    %v3827 = vpack.c.b16 %v3771, %v3767
    %v3828 = vpack.c.b16 %v3772, %v3768
    %v3829 = vpack.c.b16 %v3773, %v3769
    %v3830 = vpack.c.b16 %v3778, %v3774
    %v3831 = vpack.c.b16 %v3779, %v3775
    %v3832 = vpack.c.b16 %v3780, %v3776
    %v3833 = vpack.c.b16 %v3781, %v3777
    %v3834 = vpack.c.b16 %v3786, %v3782
    %v3835 = vpack.c.b16 %v3787, %v3783
    %v3836 = vpack.c.b16 %v3788, %v3784
    %v3837 = vpack.c.b16 %v3789, %v3785
    %v3838 = vpack.c.b16 %v3794, %v3790
    %v3839 = vpack.c.b16 %v3795, %v3791
    %v3840 = vpack.c.b16 %v3796, %v3792
    %v3841 = vpack.c.b16 %v3797, %v3793
    %v3842 = vpack.c.b16 %v3802, %v3798
    %v3843 = vpack.c.b16 %v3803, %v3799
    %v3844 = vpack.c.b16 %v3804, %v3800
    %v3845 = vpack.c.b16 %v3805, %v3801
    %v3846 = vpack.c.b16 %v3810, %v3806
    %v3847 = vpack.c.b16 %v3811, %v3807
    %v3848 = vpack.c.b16 %v3812, %v3808
    %v3849 = vpack.c.b16 %v3813, %v3809
    %v3850 = vpack.c.b16 %v3818, %v3814
    %v3851 = vpack.c.b16 %v3819, %v3815
    %v3852 = vpack.c.b16 %v3820, %v3816
    %v3853 = vpack.c.b16 %v3821, %v3817
    %3886 = vmatpush.bf16.msra.mxu0 %v3850
    %3887 = vmatpush.bf16.msra.mxu0 %v3846
    %3888 = vmatpush.bf16.msra.mxu0 %v3842
    %3889 = vmatpush.bf16.msra.mxu0 %v3838
    %3890 = vmatpush.bf16.msra.mxu0 %v3834
    %3891 = vmatpush.bf16.msra.mxu0 %v3830
    %3892 = vmatpush.bf16.msra.mxu0 %v3826
    %3893 = vmatpush.bf16.msra.mxu0 %v3822
    %3894 = vmatmul.bf16.gmra.mxu0 %v3693
    %v3895 = vpop.f32.mrf.mxu0
    %v3896 = vadd.f32 0.0, %v3895
    %v3897 = vpop.f32.mrf.mxu0
    %3898 = vdwg.mxu0
    %3899 = vmatpush.bf16.msra.mxu0 %v3851
    %3900 = vmatpush.bf16.msra.mxu0 %v3847
    %3901 = vmatpush.bf16.msra.mxu0 %v3843
    %3902 = vmatpush.bf16.msra.mxu0 %v3839
    %3903 = vmatpush.bf16.msra.mxu0 %v3835
    %3904 = vmatpush.bf16.msra.mxu0 %v3831
    %3905 = vmatpush.bf16.msra.mxu0 %v3827
    %3906 = vmatpush.bf16.msra.mxu0 %v3823
    %3907 = vmatmul.bf16.gmra.mxu0 %v3693
    %v3908 = vpop.f32.mrf.mxu0
    %v3909 = vadd.f32 0.0, %v3908
    %v3910 = vpop.f32.mrf.mxu0
    %3911 = vdwg.mxu0
    %3912 = vmatpush.bf16.msra.mxu0 %v3852
    %3913 = vmatpush.bf16.msra.mxu0 %v3848
    %3914 = vmatpush.bf16.msra.mxu0 %v3844
    %3915 = vmatpush.bf16.msra.mxu0 %v3840
    %3916 = vmatpush.bf16.msra.mxu0 %v3836
    %3917 = vmatpush.bf16.msra.mxu0 %v3832
    %3918 = vmatpush.bf16.msra.mxu0 %v3828
    %3919 = vmatpush.bf16.msra.mxu0 %v3824
    %3920 = vmatmul.bf16.gmra.mxu0 %v3693
    %v3921 = vpop.f32.mrf.mxu0
    %v3922 = vadd.f32 0.0, %v3921
    %v3923 = vpop.f32.mrf.mxu0
    %3924 = vdwg.mxu0
    %3925 = vmatpush.bf16.msra.mxu0 %v3853
    %3926 = vmatpush.bf16.msra.mxu0 %v3849
    %3927 = vmatpush.bf16.msra.mxu0 %v3845
    %3928 = vmatpush.bf16.msra.mxu0 %v3841
    %3929 = vmatpush.bf16.msra.mxu0 %v3837
    %3930 = vmatpush.bf16.msra.mxu0 %v3833
    %3931 = vmatpush.bf16.msra.mxu0 %v3829
    %3932 = vmatpush.bf16.msra.mxu0 %v3825
    %3933 = vmatmul.bf16.gmra.mxu0 %v3693
    %v3934 = vpop.f32.mrf.mxu0
    %v3935 = vadd.f32 0.0, %v3934
    %v3936 = vpop.f32.mrf.mxu0
    %3937 = vdwg.mxu0
    %v3942 = vrot.slane %v3896, 4
    %v3943 = vrot.slane %v3909, 4
    %v3944 = vrot.slane %v3922, 4
    %v3945 = vrot.slane %v3935, 4
    %v3950 = vadd.f32 %v3689, %v3942
    %v3951 = vadd.f32 %v3690, %v3943
    %v3952 = vadd.f32 %v3691, %v3944
    %v3953 = vadd.f32 %v3692, %v3945
    %v3954 = vxor.u32 %v3950, 2147483648
    %v3955 = vxor.u32 %v3951, 2147483648
    %v3956 = vxor.u32 %v3952, 2147483648
    %v3957 = vmul.f32 %v3954, 1.442695
    %v3958 = vpow.pop %v3957
    %v3959 = vmul.f32 %v3955, 1.442695
    %v3960 = vpow.pop %v3959
    %v3961 = vmul.f32 %v3956, 1.442695
    %v3962 = vpow.pop %v3961
    %v3963 = vadd.f32 %v3958, 1.0
    %v3964 = vadd.f32 %v3960, 1.0
    %v3965 = vadd.f32 %v3962, 1.0
    %v3966 = vrcp.pop %v3963
    %v3967 = vmul.f32 %v3963, %v3966
    %v3968 = vsub.f32 1.0, %v3967
    %v3969 = vmul.f32 %v3966, %v3968
    %v3970 = vadd.f32 %v3966, %v3969
    %vm3971 = vweird.f32 %v3963
    %vm3972 = vweird.f32 %v3966
    %vm3973 = vmor %vm3971, %vm3972
    %v3974 = vsel %vm3973, %v3966, %v3970
    %v3975 = vand.u32 2147483647, %v3963
    %vm3976 = vcmp.eq.f32.partialorder %v3975, 8.507059e+37
    %v3977 = vand.u32 %v3963, 2147483648
    %v3978 = vor.u32 1.1754944e-38, %v3977
    %v3979 = vsel %vm3976, %v3978, %v3974
    %v3980 = vmul.f32 1.0, %v3979
    %v3981 = vrcp.pop %v3964
    %v3982 = vmul.f32 %v3964, %v3981
    %v3983 = vsub.f32 1.0, %v3982
    %v3984 = vmul.f32 %v3981, %v3983
    %v3985 = vadd.f32 %v3981, %v3984
    %vm3986 = vweird.f32 %v3964
    %vm3987 = vweird.f32 %v3981
    %vm3988 = vmor %vm3986, %vm3987
    %v3989 = vsel %vm3988, %v3981, %v3985
    %v3990 = vand.u32 2147483647, %v3964
    %vm3991 = vcmp.eq.f32.partialorder %v3990, 8.507059e+37
    %v3992 = vand.u32 %v3964, 2147483648
    %v3993 = vor.u32 1.1754944e-38, %v3992
    %v3994 = vsel %vm3991, %v3993, %v3989
    %v3995 = vmul.f32 1.0, %v3994
    %v3996 = vrcp.pop %v3965
    %v3997 = vmul.f32 %v3965, %v3996
    %v3998 = vsub.f32 1.0, %v3997
    %v3999 = vmul.f32 %v3996, %v3998
    %v4000 = vadd.f32 %v3996, %v3999
    %vm4001 = vweird.f32 %v3965
    %vm4002 = vweird.f32 %v3996
    %vm4003 = vmor %vm4001, %vm4002
    %v4004 = vsel %vm4003, %v3996, %v4000
    %v4005 = vand.u32 2147483647, %v3965
    %vm4006 = vcmp.eq.f32.partialorder %v4005, 8.507059e+37
    %v4007 = vand.u32 %v3965, 2147483648
    %v4008 = vor.u32 1.1754944e-38, %v4007
    %v4009 = vsel %vm4006, %v4008, %v4004
    %v4010 = vmul.f32 1.0, %v4009
    %v4011 = vtanh.pop %v3953
    %v4013 = vrot.slane %v3687, 4
    %v4015 = vmul.f32 %v3995, %v4013
    %v4016 = vmul.f32 %v3980, %v4011
    %v4017 = vadd.f32 %v4015, %v4016
    %v4018 = vtanh.pop %v4017
    %v4019 = vmul.f32 %v4010, %v4018
    %v4020 = vld [vmem:[%s0 + $0x1c] sm:$0xf]
    %vm4021 = vcmp.gt.f32.partialorder %v4020, 0.5
    %v4023 = vrot.slane %v4019, 4
    %v4025 = vsel %vm4021, %v4023, %v3686
    %v4027 = vrot.slane %v4017, 4
    %v4029 = vsel %vm4021, %v4027, %v3687
    %4030 = vst [vmem:[#allocation4 + $0x18] sm:$0xf] %v4025
    %v4031 = vld [vmem:[#allocation3 + $0x60] sm:$0xf0]
    %v4032 = vld [vmem:[#allocation3 + $0x68] sm:$0xf0]
    %v4033 = vld [vmem:[#allocation3 + $0x70] sm:$0xf0]
    %v4034 = vld [vmem:[#allocation3 + $0x78] sm:$0xf0]
    %v4035 = vpack.c.bf16 %v4025, %v4025
    %v4036 = vld [vmem:[%s7] sm:$0xff]
    %v4037 = vld [vmem:[%s7 + $0x8] sm:$0xff]
    %v4038 = vld [vmem:[%s7 + $0x10] sm:$0xff]
    %v4039 = vld [vmem:[%s7 + $0x18] sm:$0xff]
    %v4040 = vld [vmem:[%s7 + $0x20] sm:$0xff]
    %v4041 = vld [vmem:[%s7 + $0x28] sm:$0xff]
    %v4042 = vld [vmem:[%s7 + $0x30] sm:$0xff]
    %v4043 = vld [vmem:[%s7 + $0x38] sm:$0xff]
    %v4044 = vld [vmem:[%s7 + $0x40] sm:$0xff]
    %v4045 = vld [vmem:[%s7 + $0x48] sm:$0xff]
    %v4046 = vld [vmem:[%s7 + $0x50] sm:$0xff]
    %v4047 = vld [vmem:[%s7 + $0x58] sm:$0xff]
    %v4048 = vld [vmem:[%s7 + $0x60] sm:$0xff]
    %v4049 = vld [vmem:[%s7 + $0x68] sm:$0xff]
    %v4050 = vld [vmem:[%s7 + $0x70] sm:$0xff]
    %v4051 = vld [vmem:[%s7 + $0x78] sm:$0xff]
    %v4052 = vld [vmem:[%s7 + $0x80] sm:$0xff]
    %v4053 = vld [vmem:[%s7 + $0x88] sm:$0xff]
    %v4054 = vld [vmem:[%s7 + $0x90] sm:$0xff]
    %v4055 = vld [vmem:[%s7 + $0x98] sm:$0xff]
    %v4056 = vld [vmem:[%s7 + $0xa0] sm:$0xff]
    %v4057 = vld [vmem:[%s7 + $0xa8] sm:$0xff]
    %v4058 = vld [vmem:[%s7 + $0xb0] sm:$0xff]
    %v4059 = vld [vmem:[%s7 + $0xb8] sm:$0xff]
    %v4060 = vld [vmem:[%s7 + $0xc0] sm:$0xff]
    %v4061 = vld [vmem:[%s7 + $0xc8] sm:$0xff]
    %v4062 = vld [vmem:[%s7 + $0xd0] sm:$0xff]
    %v4063 = vld [vmem:[%s7 + $0xd8] sm:$0xff]
    %v4064 = vld [vmem:[%s7 + $0xe0] sm:$0xff]
    %v4065 = vld [vmem:[%s7 + $0xe8] sm:$0xff]
    %v4066 = vld [vmem:[%s7 + $0xf0] sm:$0xff]
    %v4067 = vld [vmem:[%s7 + $0xf8] sm:$0xff]
    %v4100 = vunpack.c.l.b16 %v4036
    %v4101 = vunpack.c.h.b16 %v4036
    %v4102 = vunpack.c.l.b16 %v4037
    %v4103 = vunpack.c.h.b16 %v4037
    %v4104 = vunpack.c.l.b16 %v4038
    %v4105 = vunpack.c.h.b16 %v4038
    %v4106 = vunpack.c.l.b16 %v4039
    %v4107 = vunpack.c.h.b16 %v4039
    %v4108 = vunpack.c.l.b16 %v4040
    %v4109 = vunpack.c.h.b16 %v4040
    %v4110 = vunpack.c.l.b16 %v4041
    %v4111 = vunpack.c.h.b16 %v4041
    %v4112 = vunpack.c.l.b16 %v4042
    %v4113 = vunpack.c.h.b16 %v4042
    %v4114 = vunpack.c.l.b16 %v4043
    %v4115 = vunpack.c.h.b16 %v4043
    %v4116 = vunpack.c.l.b16 %v4044
    %v4117 = vunpack.c.h.b16 %v4044
    %v4118 = vunpack.c.l.b16 %v4045
    %v4119 = vunpack.c.h.b16 %v4045
    %v4120 = vunpack.c.l.b16 %v4046
    %v4121 = vunpack.c.h.b16 %v4046
    %v4122 = vunpack.c.l.b16 %v4047
    %v4123 = vunpack.c.h.b16 %v4047
    %v4124 = vunpack.c.l.b16 %v4048
    %v4125 = vunpack.c.h.b16 %v4048
    %v4126 = vunpack.c.l.b16 %v4049
    %v4127 = vunpack.c.h.b16 %v4049
    %v4128 = vunpack.c.l.b16 %v4050
    %v4129 = vunpack.c.h.b16 %v4050
    %v4130 = vunpack.c.l.b16 %v4051
    %v4131 = vunpack.c.h.b16 %v4051
    %v4132 = vunpack.c.l.b16 %v4052
    %v4133 = vunpack.c.h.b16 %v4052
    %v4134 = vunpack.c.l.b16 %v4053
    %v4135 = vunpack.c.h.b16 %v4053
    %v4136 = vunpack.c.l.b16 %v4054
    %v4137 = vunpack.c.h.b16 %v4054
    %v4138 = vunpack.c.l.b16 %v4055
    %v4139 = vunpack.c.h.b16 %v4055
    %v4140 = vunpack.c.l.b16 %v4056
    %v4141 = vunpack.c.h.b16 %v4056
    %v4142 = vunpack.c.l.b16 %v4057
    %v4143 = vunpack.c.h.b16 %v4057
    %v4144 = vunpack.c.l.b16 %v4058
    %v4145 = vunpack.c.h.b16 %v4058
    %v4146 = vunpack.c.l.b16 %v4059
    %v4147 = vunpack.c.h.b16 %v4059
    %v4148 = vunpack.c.l.b16 %v4060
    %v4149 = vunpack.c.h.b16 %v4060
    %v4150 = vunpack.c.l.b16 %v4061
    %v4151 = vunpack.c.h.b16 %v4061
    %v4152 = vunpack.c.l.b16 %v4062
    %v4153 = vunpack.c.h.b16 %v4062
    %v4154 = vunpack.c.l.b16 %v4063
    %v4155 = vunpack.c.h.b16 %v4063
    %v4156 = vunpack.c.l.b16 %v4064
    %v4157 = vunpack.c.h.b16 %v4064
    %v4158 = vunpack.c.l.b16 %v4065
    %v4159 = vunpack.c.h.b16 %v4065
    %v4160 = vunpack.c.l.b16 %v4066
    %v4161 = vunpack.c.h.b16 %v4066
    %v4162 = vunpack.c.l.b16 %v4067
    %v4163 = vunpack.c.h.b16 %v4067
    %v4164 = vpack.c.b16 %v4104, %v4100
    %v4165 = vpack.c.b16 %v4105, %v4101
    %v4166 = vpack.c.b16 %v4106, %v4102
    %v4167 = vpack.c.b16 %v4107, %v4103
    %v4168 = vpack.c.b16 %v4112, %v4108
    %v4169 = vpack.c.b16 %v4113, %v4109
    %v4170 = vpack.c.b16 %v4114, %v4110
    %v4171 = vpack.c.b16 %v4115, %v4111
    %v4172 = vpack.c.b16 %v4120, %v4116
    %v4173 = vpack.c.b16 %v4121, %v4117
    %v4174 = vpack.c.b16 %v4122, %v4118
    %v4175 = vpack.c.b16 %v4123, %v4119
    %v4176 = vpack.c.b16 %v4128, %v4124
    %v4177 = vpack.c.b16 %v4129, %v4125
    %v4178 = vpack.c.b16 %v4130, %v4126
    %v4179 = vpack.c.b16 %v4131, %v4127
    %v4180 = vpack.c.b16 %v4136, %v4132
    %v4181 = vpack.c.b16 %v4137, %v4133
    %v4182 = vpack.c.b16 %v4138, %v4134
    %v4183 = vpack.c.b16 %v4139, %v4135
    %v4184 = vpack.c.b16 %v4144, %v4140
    %v4185 = vpack.c.b16 %v4145, %v4141
    %v4186 = vpack.c.b16 %v4146, %v4142
    %v4187 = vpack.c.b16 %v4147, %v4143
    %v4188 = vpack.c.b16 %v4152, %v4148
    %v4189 = vpack.c.b16 %v4153, %v4149
    %v4190 = vpack.c.b16 %v4154, %v4150
    %v4191 = vpack.c.b16 %v4155, %v4151
    %v4192 = vpack.c.b16 %v4160, %v4156
    %v4193 = vpack.c.b16 %v4161, %v4157
    %v4194 = vpack.c.b16 %v4162, %v4158
    %v4195 = vpack.c.b16 %v4163, %v4159
    %4228 = vmatpush.bf16.msra.mxu0 %v4192
    %4229 = vmatpush.bf16.msra.mxu0 %v4188
    %4230 = vmatpush.bf16.msra.mxu0 %v4184
    %4231 = vmatpush.bf16.msra.mxu0 %v4180
    %4232 = vmatpush.bf16.msra.mxu0 %v4176
    %4233 = vmatpush.bf16.msra.mxu0 %v4172
    %4234 = vmatpush.bf16.msra.mxu0 %v4168
    %4235 = vmatpush.bf16.msra.mxu0 %v4164
    %4236 = vmatmul.bf16.gmra.mxu0 %v4035
    %v4237 = vpop.f32.mrf.mxu0
    %v4238 = vadd.f32 0.0, %v4237
    %v4239 = vpop.f32.mrf.mxu0
    %4240 = vdwg.mxu0
    %4241 = vmatpush.bf16.msra.mxu0 %v4193
    %4242 = vmatpush.bf16.msra.mxu0 %v4189
    %4243 = vmatpush.bf16.msra.mxu0 %v4185
    %4244 = vmatpush.bf16.msra.mxu0 %v4181
    %4245 = vmatpush.bf16.msra.mxu0 %v4177
    %4246 = vmatpush.bf16.msra.mxu0 %v4173
    %4247 = vmatpush.bf16.msra.mxu0 %v4169
    %4248 = vmatpush.bf16.msra.mxu0 %v4165
    %4249 = vmatmul.bf16.gmra.mxu0 %v4035
    %v4250 = vpop.f32.mrf.mxu0
    %v4251 = vadd.f32 0.0, %v4250
    %v4252 = vpop.f32.mrf.mxu0
    %4253 = vdwg.mxu0
    %4254 = vmatpush.bf16.msra.mxu0 %v4194
    %4255 = vmatpush.bf16.msra.mxu0 %v4190
    %4256 = vmatpush.bf16.msra.mxu0 %v4186
    %4257 = vmatpush.bf16.msra.mxu0 %v4182
    %4258 = vmatpush.bf16.msra.mxu0 %v4178
    %4259 = vmatpush.bf16.msra.mxu0 %v4174
    %4260 = vmatpush.bf16.msra.mxu0 %v4170
    %4261 = vmatpush.bf16.msra.mxu0 %v4166
    %4262 = vmatmul.bf16.gmra.mxu0 %v4035
    %v4263 = vpop.f32.mrf.mxu0
    %v4264 = vadd.f32 0.0, %v4263
    %v4265 = vpop.f32.mrf.mxu0
    %4266 = vdwg.mxu0
    %4267 = vmatpush.bf16.msra.mxu0 %v4195
    %4268 = vmatpush.bf16.msra.mxu0 %v4191
    %4269 = vmatpush.bf16.msra.mxu0 %v4187
    %4270 = vmatpush.bf16.msra.mxu0 %v4183
    %4271 = vmatpush.bf16.msra.mxu0 %v4179
    %4272 = vmatpush.bf16.msra.mxu0 %v4175
    %4273 = vmatpush.bf16.msra.mxu0 %v4171
    %4274 = vmatpush.bf16.msra.mxu0 %v4167
    %4275 = vmatmul.bf16.gmra.mxu0 %v4035
    %v4276 = vpop.f32.mrf.mxu0
    %v4277 = vadd.f32 0.0, %v4276
    %v4278 = vpop.f32.mrf.mxu0
    %4279 = vdwg.mxu0
    %v4284 = vrot.slane %v4238, 4
    %v4285 = vrot.slane %v4251, 4
    %v4286 = vrot.slane %v4264, 4
    %v4287 = vrot.slane %v4277, 4
    %v4292 = vadd.f32 %v4031, %v4284
    %v4293 = vadd.f32 %v4032, %v4285
    %v4294 = vadd.f32 %v4033, %v4286
    %v4295 = vadd.f32 %v4034, %v4287
    %v4296 = vxor.u32 %v4292, 2147483648
    %v4297 = vxor.u32 %v4293, 2147483648
    %v4298 = vxor.u32 %v4294, 2147483648
    %v4299 = vmul.f32 %v4296, 1.442695
    %v4300 = vpow.pop %v4299
    %v4301 = vmul.f32 %v4297, 1.442695
    %v4302 = vpow.pop %v4301
    %v4303 = vmul.f32 %v4298, 1.442695
    %v4304 = vpow.pop %v4303
    %v4305 = vadd.f32 %v4300, 1.0
    %v4306 = vadd.f32 %v4302, 1.0
    %v4307 = vadd.f32 %v4304, 1.0
    %v4308 = vrcp.pop %v4305
    %v4309 = vmul.f32 %v4305, %v4308
    %v4310 = vsub.f32 1.0, %v4309
    %v4311 = vmul.f32 %v4308, %v4310
    %v4312 = vadd.f32 %v4308, %v4311
    %vm4313 = vweird.f32 %v4305
    %vm4314 = vweird.f32 %v4308
    %vm4315 = vmor %vm4313, %vm4314
    %v4316 = vsel %vm4315, %v4308, %v4312
    %v4317 = vand.u32 2147483647, %v4305
    %vm4318 = vcmp.eq.f32.partialorder %v4317, 8.507059e+37
    %v4319 = vand.u32 %v4305, 2147483648
    %v4320 = vor.u32 1.1754944e-38, %v4319
    %v4321 = vsel %vm4318, %v4320, %v4316
    %v4322 = vmul.f32 1.0, %v4321
    %v4323 = vrcp.pop %v4306
    %v4324 = vmul.f32 %v4306, %v4323
    %v4325 = vsub.f32 1.0, %v4324
    %v4326 = vmul.f32 %v4323, %v4325
    %v4327 = vadd.f32 %v4323, %v4326
    %vm4328 = vweird.f32 %v4306
    %vm4329 = vweird.f32 %v4323
    %vm4330 = vmor %vm4328, %vm4329
    %v4331 = vsel %vm4330, %v4323, %v4327
    %v4332 = vand.u32 2147483647, %v4306
    %vm4333 = vcmp.eq.f32.partialorder %v4332, 8.507059e+37
    %v4334 = vand.u32 %v4306, 2147483648
    %v4335 = vor.u32 1.1754944e-38, %v4334
    %v4336 = vsel %vm4333, %v4335, %v4331
    %v4337 = vmul.f32 1.0, %v4336
    %v4338 = vrcp.pop %v4307
    %v4339 = vmul.f32 %v4307, %v4338
    %v4340 = vsub.f32 1.0, %v4339
    %v4341 = vmul.f32 %v4338, %v4340
    %v4342 = vadd.f32 %v4338, %v4341
    %vm4343 = vweird.f32 %v4307
    %vm4344 = vweird.f32 %v4338
    %vm4345 = vmor %vm4343, %vm4344
    %v4346 = vsel %vm4345, %v4338, %v4342
    %v4347 = vand.u32 2147483647, %v4307
    %vm4348 = vcmp.eq.f32.partialorder %v4347, 8.507059e+37
    %v4349 = vand.u32 %v4307, 2147483648
    %v4350 = vor.u32 1.1754944e-38, %v4349
    %v4351 = vsel %vm4348, %v4350, %v4346
    %v4352 = vmul.f32 1.0, %v4351
    %v4353 = vtanh.pop %v4295
    %v4355 = vrot.slane %v4029, 4
    %v4357 = vmul.f32 %v4337, %v4355
    %v4358 = vmul.f32 %v4322, %v4353
    %v4359 = vadd.f32 %v4357, %v4358
    %v4360 = vtanh.pop %v4359
    %v4361 = vmul.f32 %v4352, %v4360
    %v4362 = vld [vmem:[%s0 + $0x20] sm:$0xf]
    %vm4363 = vcmp.gt.f32.partialorder %v4362, 0.5
    %v4365 = vrot.slane %v4361, 4
    %v4367 = vsel %vm4363, %v4365, %v4025
    %v4369 = vrot.slane %v4359, 4
    %v4371 = vsel %vm4363, %v4369, %v4029
    %4372 = vst [vmem:[#allocation4 + $0x1c] sm:$0xf] %v4367
    %v4373 = vld [vmem:[#allocation4] sm:$0xff]
    %v4374 = vld [vmem:[#allocation4 + $0x8] sm:$0xff]
    %v4375 = vld [vmem:[#allocation4 + $0x10] sm:$0xff]
    %v4376 = vld [vmem:[#allocation4 + $0x18] sm:$0xff]
    %v4377 = vpack.c.bf16 %v4374, %v4373
    %v4378 = vpack.c.bf16 %v4376, %v4375
    %v4379 = vld [vmem:[%s8] sm:$0xf]
    %v4380 = vld [vmem:[%s8 + $0x4] sm:$0xf]
    %v4381 = vld [vmem:[%s8 + $0x8] sm:$0xf]
    %v4382 = vld [vmem:[%s8 + $0xc] sm:$0xf]
    %v4383 = vld [vmem:[%s8 + $0x10] sm:$0xf]
    %v4384 = vld [vmem:[%s8 + $0x14] sm:$0xf]
    %v4385 = vld [vmem:[%s8 + $0x18] sm:$0xf]
    %v4386 = vld [vmem:[%s8 + $0x1c] sm:$0xf]
    %v4387 = vld [vmem:[%s8 + $0x20] sm:$0xf]
    %v4388 = vld [vmem:[%s8 + $0x24] sm:$0xf]
    %v4389 = vld [vmem:[%s8 + $0x28] sm:$0xf]
    %v4390 = vld [vmem:[%s8 + $0x2c] sm:$0xf]
    %v4391 = vld [vmem:[%s8 + $0x30] sm:$0xf]
    %v4392 = vld [vmem:[%s8 + $0x34] sm:$0xf]
    %v4393 = vld [vmem:[%s8 + $0x38] sm:$0xf]
    %v4394 = vld [vmem:[%s8 + $0x3c] sm:$0xf]
    %v4395 = vld [vmem:[%s9] sm:$0x1]
    %v4397 = vperm.slane %v4395, 0
    %v4415 = vunpack.c.l.b16 %v4379
    %v4416 = vunpack.c.l.b16 %v4380
    %v4417 = vunpack.c.l.b16 %v4381
    %v4418 = vunpack.c.l.b16 %v4382
    %v4419 = vunpack.c.l.b16 %v4383
    %v4420 = vunpack.c.l.b16 %v4384
    %v4421 = vunpack.c.l.b16 %v4385
    %v4422 = vunpack.c.l.b16 %v4386
    %v4423 = vunpack.c.l.b16 %v4387
    %v4424 = vunpack.c.l.b16 %v4388
    %v4425 = vunpack.c.l.b16 %v4389
    %v4426 = vunpack.c.l.b16 %v4390
    %v4427 = vunpack.c.l.b16 %v4391
    %v4428 = vunpack.c.l.b16 %v4392
    %v4429 = vunpack.c.l.b16 %v4393
    %v4430 = vunpack.c.l.b16 %v4394
    %v4431 = vpack.c.b16 %v4416, %v4415
    %v4432 = vpack.c.b16 %v4418, %v4417
    %v4433 = vpack.c.b16 %v4420, %v4419
    %v4434 = vpack.c.b16 %v4422, %v4421
    %v4435 = vpack.c.b16 %v4424, %v4423
    %v4436 = vpack.c.b16 %v4426, %v4425
    %v4437 = vpack.c.b16 %v4428, %v4427
    %v4438 = vpack.c.b16 %v4430, %v4429
    %4447 = vmatpush.bf16.msra.mxu0 %v4438
    %4448 = vmatpush.bf16.msra.mxu0 %v4437
    %4449 = vmatpush.bf16.msra.mxu0 %v4436
    %4450 = vmatpush.bf16.msra.mxu0 %v4435
    %4451 = vmatpush.bf16.msra.mxu0 %v4434
    %4452 = vmatpush.bf16.msra.mxu0 %v4433
    %4453 = vmatpush.bf16.msra.mxu0 %v4432
    %4454 = vmatpush.bf16.msra.mxu0 %v4431
    %4455 = vmatmul.bf16.gmra.mxu0 %v4377
    %v4456 = vpop.f32.mrf.mxu0
    %v4457 = vadd.f32 %v4397, %v4456
    %v4458 = vpop.f32.mrf.mxu0
    %v4459 = vadd.f32 %v4397, %v4458
    %4460 = vmatmul.bf16.gmra.mxu0 %v4378
    %v4461 = vpop.f32.mrf.mxu0
    %v4462 = vadd.f32 %v4397, %v4461
    %v4463 = vpop.f32.mrf.mxu0
    %v4464 = vadd.f32 %v4397, %v4463
    %4465 = vdwg.mxu0
    %4466 = vst [vmem:[#allocation5] sm:$0xff] %v4457
    %4467 = vst [vmem:[#allocation5 + $0x8] sm:$0xff] %v4459
    %4468 = vst [vmem:[#allocation5 + $0x10] sm:$0xff] %v4462
    %4469 = vst [vmem:[#allocation5 + $0x18] sm:$0xff] %v4464
    %4470 = vst.msk [vmem:[#allocation7] sm:$0xf] %vm1352, %v4367
    %4472 = vrot.lane.b32.xlu0 %v4367, 64
    %v4473 = vpop.permute.xlu0 %4472
    %s4475 = scalar_lea.vmem [#allocation7], 4
    %4476 = vst.msk [vmem:[%s4475] sm:$0xf] %vm1352, %v4473
    %4477 = vst.msk [vmem:[#allocation9] sm:$0xf] %vm1352, %v4371
    %4479 = vrot.lane.b32.xlu0 %v4371, 64
    %v4480 = vpop.permute.xlu0 %4479
    %s4482 = scalar_lea.vmem [#allocation9], 4
    %4483 = vst.msk [vmem:[%s4482] sm:$0xf] %vm1352, %v4480
    // Predicated region
    $region42: #{_net_forward_core.1} parent=1 // pred_check
      _
    $region43: #{_net_forward_core.1} parent=1 // pred_check_branch
      %4485 = sbr.rel (0) target = $region45
    $region44: #{_net_forward_core.1} parent=1 // pred_region
      %4487 = vsyncadd [#allocation6], 0
      %s4488 = sshll.u32 [#allocation5], 4
      %s4489 = int_to_ptr.vmem [resolvable:$true] %s4488
      %s4490 = sshll.u32 %s10, 4
      %s4491 = int_to_ptr.hbm [resolvable:$true] %s4490
      %4496 = dma.vmem_to_hbm [thread:$0]  %s4489, 512, %s4491, [#allocation6], 128, 128, 8
    $region45: #{_net_forward_core.1} parent=1 // pred_fallthru
      _
    // Predicated region
    $region46: #{_net_forward_core.1} parent=1 // pred_check
      _
    $region47: #{_net_forward_core.1} parent=1 // pred_check_branch
      %4498 = sbr.rel (0) target = $region49
    $region48: #{_net_forward_core.1} parent=1 // pred_region
      %4500 = vsyncadd [#allocation8], 0
      %s4501 = sshll.u32 [#allocation7], 4
      %s4502 = int_to_ptr.vmem [resolvable:$true] %s4501
      %s4503 = sshll.u32 %s11, 4
      %s4504 = int_to_ptr.hbm [resolvable:$true] %s4503
      %4509 = dma.vmem_to_hbm [thread:$0]  %s4502, 128, %s4504, [#allocation8], 64, 64, 4
    $region49: #{_net_forward_core.1} parent=1 // pred_fallthru
      _
    // Predicated region
    $region50: #{_net_forward_core.1} parent=1 // pred_check
      _
    $region51: #{_net_forward_core.1} parent=1 // pred_check_branch
      %4511 = sbr.rel (0) target = $region53
    $region52: #{_net_forward_core.1} parent=1 // pred_region
      %4513 = vsyncadd [#allocation8], 0
      %s4514 = sshll.u32 [#allocation9], 4
      %s4515 = int_to_ptr.vmem [resolvable:$true] %s4514
      %s4516 = sshll.u32 %s12, 4
      %s4517 = int_to_ptr.hbm [resolvable:$true] %s4516
      %4522 = dma.vmem_to_hbm [thread:$0]  %s4515, 128, %s4517, [#allocation8], 64, 64, 4
    $region53: #{_net_forward_core.1} parent=1 // pred_fallthru
      _
    // Predicated region
    $region54: #{_net_forward_core.1} parent=1 // pred_check
      _
    $region55: #{_net_forward_core.1} parent=1 // pred_check_branch
      %4524 = sbr.rel (0) target = $region57
    $region56: #{_net_forward_core.1} parent=1 // pred_region
      %4526 = dma.done [#allocation6], 512
    $region57: #{_net_forward_core.1} parent=1 // pred_fallthru
      _
    // Predicated region
    $region58: #{_net_forward_core.1} parent=1 // pred_check
      _
    $region59: #{_net_forward_core.1} parent=1 // pred_check_branch
      %4528 = sbr.rel (0) target = $region61
    $region60: #{_net_forward_core.1} parent=1 // pred_region
      %4530 = dma.done [#allocation8], 128
    $region61: #{_net_forward_core.1} parent=1 // pred_fallthru
      _
    // Predicated region
    $region62: #{_net_forward_core.1} parent=1 // pred_check
      _
    $region63: #{_net_forward_core.1} parent=1 // pred_check_branch
      %4532 = sbr.rel (0) target = $region65
    $region64: #{_net_forward_core.1} parent=1 // pred_region
      %4534 = dma.done [#allocation8], 128
    $region65: #{_net_forward_core.1} parent=1 // pred_fallthru
      _
    %4535 = vsyncpa [#allocation6], 1
    %4536 = vsyncpa [#allocation8], 1

</llo_original>
